<compile_context>
chip_gen: v7x
topology: tpu7x:2x2x1
jax: 0.10.0
libtpu: 0.0.40
codegen_flags: <defaults>
</compile_context>

<pallas_src>
import functools
import math

import jax
import jax.numpy as jnp
from jax.experimental import pallas as pl
from jax.experimental.pallas import tpu as pltpu

IN_DIM = 2
HID_DIM = 16
PAD = 128          # lane padding for the tiny feature dims
H_MAX = 0.05       # matches ode_solve's h_max


def _elu(x):
    # PyTorch nn.ELU(alpha=1): x if x > 0 else exp(x) - 1.
    # No clamp needed: jnp.where is a true select, so the (possibly inf) exp
    # branch is discarded for x > 0; padded lanes are exactly 0 (ELU(0) == 0).
    return jnp.where(x > 0.0, x, jnp.exp(x) - 1.0)


def _euler_kernel(z0_ref, w1_ref, w2_ref, w31_ref, w3_ref, zseq_ref, zc_ref,
                  *, n_steps):
    """One ode_solve segment per grid iteration, restructured recurrence.

    Per-step serial chain: ELU -> matmul(W2') -> ELU -> matmul(W31) -> add.
    Biases and h are pre-folded into the weights (ones-lane trick), so there
    are no bias adds or scalar h multiplies.  z is carried across segments in
    the persistent VMEM scratch zc_ref.
    """
    @pl.when(pl.program_id(0) == 0)
    def _():
        zc_ref[...] = z0_ref[...]

    z = zc_ref[...]                          # (bs_pad, PAD) f32, lane 127 == 1
    u = jnp.dot(z, w1_ref[...], preferred_element_type=jnp.float32)   # z @ W1'
    s = jnp.zeros_like(u)
    # Fully unrolled at trace time (n_steps is a Python int, <= ~20) so the
    # LLO scheduler can overlap MXU/EUP/VPU work across step boundaries.
    for step in range(n_steps):
        h1 = _elu(u)
        h2 = _elu(jnp.dot(h1, w2_ref[...], preferred_element_type=jnp.float32))
        s = s + h2                           # VPU add, off the critical chain
        if step + 1 < n_steps:               # last u update would be dead code
            u = u + jnp.dot(h2, w31_ref[...],
                            preferred_element_type=jnp.float32)
    # Deferred z update: one matmul per segment instead of one per step.
    z_new = z + jnp.dot(s, w3_ref[...], preferred_element_type=jnp.float32)
    zc_ref[...] = z_new                      # carry to next segment
    zseq_ref[...] = z_new                    # per-segment snapshot


def _segment_steps(t0, t1):
    """n_steps / h exactly as ode_solve computes them (host-side floats)."""
    n_steps = int(math.ceil(abs(t1 - t0) / H_MAX))
    h = (t1 - t0) / n_steps
    return n_steps, float(h)


def _fold_shared(params):
    """h-independent padded W1', W2' with biases folded via the ones lane.

    W1': rows 0..1  = W1, row 127 cols 0..15 = b1, [127,127] = 1
    W2': rows 0..15 = W2, row 127 cols 0..15 = b2, [127,127] = 1
    (ELU(1) == 1, so the ones lane propagates exactly through both layers.)
    """
    w1, b1, w2, b2, _, _ = params
    W1 = (jnp.zeros((PAD, PAD), jnp.float32)
          .at[:IN_DIM, :HID_DIM].set(w1)
          .at[PAD - 1, :HID_DIM].set(b1)
          .at[PAD - 1, PAD - 1].set(1.0))
    W2 = (jnp.zeros((PAD, PAD), jnp.float32)
          .at[:HID_DIM, :HID_DIM].set(w2)
          .at[PAD - 1, :HID_DIM].set(b2)
          .at[PAD - 1, PAD - 1].set(1.0))
    return W1, W2


def _fold_segment(params, W1, h):
    """Per-segment W3' (h, b3 folded; column 127 zero so the ones lane and the
    carried z lane are untouched) and the precomposed W31 = W3' @ W1'."""
    _, _, _, _, w3, b3 = params
    h = jnp.float32(h)
    W3 = (jnp.zeros((PAD, PAD), jnp.float32)
          .at[:HID_DIM, :IN_DIM].set(h * w3)
          .at[PAD - 1, :IN_DIM].set(h * b3))
    # One-time host-side precompute; HIGHEST precision keeps the reassociation
    # exact at f32 level (W31 column 127 is zero, so u's ones lane stays 1).
    W31 = jnp.dot(W3, W1, preferred_element_type=jnp.float32,
                  precision=jax.lax.Precision.HIGHEST)
    return W3, W31


def _pad_z0(z0, bs_pad):
    bs, in_dim = z0.shape
    z = jnp.zeros((bs_pad, PAD), jnp.float32)
    z = z.at[:bs, :in_dim].set(z0.astype(jnp.float32))
    z = z.at[:, PAD - 1].set(1.0)            # constant ones lane for bias fold
    return z


def _euler_segments(z_pad, W1, W2, w31_stack, w3_stack, n_steps):
    """All same-n_steps ode_solve segments fused into ONE pallas_call.

    grid=(n_segments,), sequential ("arbitrary"); z carried across segments in
    a persistent VMEM scratch; per-segment z written to a lane-dense output.
    """
    n_seg = w3_stack.shape[0]
    bs_pad = z_pad.shape[0]
    grid_spec = pltpu.PrefetchScalarGridSpec(
        num_scalar_prefetch=0,
        grid=(n_seg,),
        in_specs=[
            pl.BlockSpec((bs_pad, PAD), lambda i: (0, 0)),         # z0 (+ones)
            pl.BlockSpec((PAD, PAD), lambda i: (0, 0)),            # W1'
            pl.BlockSpec((PAD, PAD), lambda i: (0, 0)),            # W2'
            pl.BlockSpec((None, PAD, PAD), lambda i: (i, 0, 0)),   # W31 per seg
            pl.BlockSpec((None, PAD, PAD), lambda i: (i, 0, 0)),   # W3' per seg
        ],
        out_specs=pl.BlockSpec((None, bs_pad, PAD), lambda i: (i, 0, 0)),
        scratch_shapes=[pltpu.VMEM((bs_pad, PAD), jnp.float32)],   # z carry
    )
    kern = functools.partial(_euler_kernel, n_steps=n_steps)
    return pl.pallas_call(
        kern,
        out_shape=jax.ShapeDtypeStruct((n_seg, bs_pad, PAD), jnp.float32),
        grid_spec=grid_spec,
        compiler_params=pltpu.CompilerParams(
            dimension_semantics=("arbitrary",)),
    )(z_pad, W1, W2, w31_stack, w3_stack)


def init_params(key):
    """Deterministic PyTorch-style nn.Linear init (uniform +/- 1/sqrt(fan_in)).

    Weights are stored as (in, out) == W_pytorch.T so everything is x @ W + b.
    """
    def linear(k, fan_in, fan_out):
        k_w, k_b = jax.random.split(k)
        bound = 1.0 / math.sqrt(fan_in)
        w = jax.random.uniform(k_w, (fan_in, fan_out), jnp.float32, -bound, bound)
        b = jax.random.uniform(k_b, (fan_out,), jnp.float32, -bound, bound)
        return w, b

    k1, k2, k3 = jax.random.split(key, 3)
    w1, b1 = linear(k1, IN_DIM, HID_DIM)
    w2, b2 = linear(k2, HID_DIM, HID_DIM)
    w3, b3 = linear(k3, HID_DIM, IN_DIM)
    return (w1, b1, w2, b2, w3, b3)


def neural_ode_forward(z0, params, t=(0.0, 1.0), return_whole_sequence=False):
    """Equivalent of NeuralODE(func).forward(z0, t, return_whole_sequence)."""
    bs, in_dim = z0.shape
    assert in_dim == IN_DIM
    bs_pad = max(8, ((bs + 7) // 8) * 8)
    z_pad = _pad_z0(z0, bs_pad)

    segs = [_segment_steps(float(t[i]), float(t[i + 1]))
            for i in range(len(t) - 1)]
    W1, W2 = _fold_shared(params)

    seq = [z0.astype(jnp.float32)]
    if segs and len({n for n, _ in segs}) == 1:
        # All segments share n_steps -> one fused pallas_call over the segment
        # grid (amortizes launch/DMA prologue across segments).
        n_steps = segs[0][0]
        folds = [_fold_segment(params, W1, h) for _, h in segs]
        w3_stack = jnp.stack([f[0] for f in folds], axis=0)
        w31_stack = jnp.stack([f[1] for f in folds], axis=0)
        zseq = _euler_segments(z_pad, W1, W2, w31_stack, w3_stack, n_steps)
        for i in range(len(segs)):
            seq.append(zseq[i, :bs, :in_dim])
    else:
        # Non-uniform step counts: one (fully unrolled) call per segment.
        for n_steps, h in segs:
            W3, W31 = _fold_segment(params, W1, h)
            zseq = _euler_segments(z_pad, W1, W2, W31[None], W3[None], n_steps)
            z_pad = zseq[0]                   # ones lane preserved by the kernel
            seq.append(z_pad[:bs, :in_dim])

    if return_whole_sequence:
        return jnp.stack(seq, axis=0)         # (time_len, bs, in_dim)
    return seq[-1]                            # z[-1], shape (bs, in_dim)


# ----------------------------------------------------------------------------
# References for validation.
# ----------------------------------------------------------------------------
def _reference_forward(z0, params, t=(0.0, 1.0)):
    """Independent pure-JAX reference mirroring ode_solve + NNODEF.forward."""
    w1, b1, w2, b2, w3, b3 = params

    def f(z):
        h1 = jax.nn.elu(z @ w1 + b1)
        h2 = jax.nn.elu(h1 @ w2 + b2)
        return h2 @ w3 + b3

    z = z0.astype(jnp.float32)
    for i in range(len(t) - 1):
        n_steps, h = _segment_steps(float(t[i]), float(t[i + 1]))
        for _ in range(n_steps):
            z = z + h * f(z)
    return z


def _reference_forward_folded(z0, params, t=(0.0, 1.0)):
    """Plain-XLA reference using the SAME restructured recurrence and folded
    matrices as the kernel (isolates kernel-mechanics / layout / unroll bugs
    from matmul-precision differences)."""
    bs = z0.shape[0]
    bs_pad = max(8, ((bs + 7) // 8) * 8)
    z = _pad_z0(z0, bs_pad)
    W1, W2 = _fold_shared(params)
    for i in range(len(t) - 1):
        n_steps, h = _segment_steps(float(t[i]), float(t[i + 1]))
        W3, W31 = _fold_segment(params, W1, h)
        u = z @ W1
        s = jnp.zeros_like(u)
        for step in range(n_steps):
            h1 = _elu(u)
            h2 = _elu(h1 @ W2)
            s = s + h2
            if step + 1 < n_steps:
                u = u + h2 @ W31
        z = z + s @ W3
    return z[:bs, :IN_DIM]


if __name__ == "__main__":
    key = jax.random.PRNGKey(0)
    k_params, k_z = jax.random.split(key)

    params = init_params(k_params)          # NNODEF(2, 16, time_invariant=True)
    z0 = jax.random.normal(k_z, (8, IN_DIM), jnp.float32)   # batch=8, in_dim=2

    out = neural_ode_forward(z0, params)    # default t = [0.0, 1.0], z[-1]
    out = jax.block_until_ready(out)
    assert out.shape == (8, IN_DIM), out.shape

    # Tight check: same restructured recurrence + folded matrices through plain
    # XLA (catches any kernel mechanics / layout / unroll-count bug).
    ref_folded = _reference_forward_folded(z0, params)
    assert jnp.allclose(out, ref_folded, atol=1e-4, rtol=1e-4), (out, ref_folded)

    # Independent check against the PyTorch-structured reference (separate bias
    # adds, h outside the matmul, per-step z update).  Slightly looser: the
    # folding / W31 precompose / deferred S @ W3' change rounding order, while
    # real bugs would show up as O(1e-1) errors.
    ref_indep = _reference_forward(z0, params)
    assert jnp.allclose(out, ref_indep, atol=2e-3, rtol=2e-3), (out, ref_indep)

    # Multi-segment / whole-sequence path (uniform spacing -> single fused
    # pallas_call with grid over segments).
    t_multi = (0.0, 0.5, 1.0)
    seq = neural_ode_forward(z0, params, t=t_multi, return_whole_sequence=True)
    seq = jax.block_until_ready(seq)
    assert seq.shape == (len(t_multi), 8, IN_DIM), seq.shape
    ref_multi = _reference_forward(z0, params, t=t_multi)
    assert jnp.allclose(seq[-1], ref_multi, atol=2e-3, rtol=2e-3)

    # Non-uniform spacing exercises the per-segment fallback path.
    t_nonuni = (0.0, 0.3, 1.0)
    out_nu = neural_ode_forward(z0, params, t=t_nonuni)
    out_nu = jax.block_until_ready(out_nu)
    ref_nu = _reference_forward(z0, params, t=t_nonuni)
    assert jnp.allclose(out_nu, ref_nu, atol=2e-3, rtol=2e-3), (out_nu, ref_nu)

    print("KERNEL_OK")
</pallas_src>

<mosaic_0001>
module attributes {stable_mosaic.version = 11 : i64} {
  func.func @_euler_kernel(%arg0: i32, %arg1: memref<8x128xf32, #tpu.memory_space<vmem>>, %arg2: memref<128x128xf32, #tpu.memory_space<vmem>>, %arg3: memref<128x128xf32, #tpu.memory_space<vmem>>, %arg4: memref<1x128x128xf32, #tpu.memory_space<vmem>>, %arg5: memref<1x128x128xf32, #tpu.memory_space<vmem>>, %arg6: memref<1x8x128xf32, #tpu.memory_space<vmem>>, %arg7: memref<8x128xf32, #tpu.memory_space<vmem>>) attributes {dimension_semantics = [#tpu.dimension_semantics<arbitrary>], iteration_bounds = array<i64: 1>, scalar_prefetch = 0 : i64, scratch_operands = 1 : i64, tpu.core_type = #tpu.core_type<tc>, window_params = [{pipeline_mode = #tpu.pipeline_mode<synchronous>, transform_indices = @transform_0, window_bounds = array<i64: 8, 128>}, {pipeline_mode = #tpu.pipeline_mode<synchronous>, transform_indices = @transform_1, window_bounds = array<i64: 128, 128>}, {pipeline_mode = #tpu.pipeline_mode<synchronous>, transform_indices = @transform_2, window_bounds = array<i64: 128, 128>}, {transform_indices = @transform_3, window_bounds = array<i64: 1, 128, 128>}, {transform_indices = @transform_4, window_bounds = array<i64: 1, 128, 128>}, {transform_indices = @transform_5, window_bounds = array<i64: 1, 8, 128>}]} {
    %c0_i32 = arith.constant 0 : i32
    %0 = arith.cmpi eq, %arg0, %c0_i32 : i32
    %1 = arith.extui %0 : i1 to i32
    %c0_i32_0 = arith.constant 0 : i32
    %2 = arith.cmpi ne, %1, %c0_i32_0 : i32
    scf.if %2 {
      %c0_230 = arith.constant 0 : index
      %c0_231 = arith.constant 0 : index
      %391 = vector.load %arg1[%c0_230, %c0_231] : memref<8x128xf32, #tpu.memory_space<vmem>>, vector<8x128xf32>
      %c0_232 = arith.constant 0 : index
      %c0_233 = arith.constant 0 : index
      %392 = vector.load %arg7[%c0_232, %c0_233] : memref<8x128xf32, #tpu.memory_space<vmem>>, vector<8x128xf32>
      tpu.vector_store %arg7[%c0_232, %c0_233], %391 {strides = array<i32>} : memref<8x128xf32, #tpu.memory_space<vmem>>, vector<8x128xf32>,
    } else {
    }
    %c0 = arith.constant 0 : index
    %c0_1 = arith.constant 0 : index
    %3 = vector.load %arg7[%c0, %c0_1] : memref<8x128xf32, #tpu.memory_space<vmem>>, vector<8x128xf32>
    %c0_2 = arith.constant 0 : index
    %c0_3 = arith.constant 0 : index
    %4 = vector.load %arg2[%c0_2, %c0_3] : memref<128x128xf32, #tpu.memory_space<vmem>>, vector<128x128xf32>
    %cst = arith.constant dense<0.000000e+00> : vector<8x128xf32>
    %5 = tpu.matmul %3, %4, %cst {dimension_numbers = #tpu.dot_dimension_numbers<[1], [0], [0], [1], [0, 0, 1, 1], [], []>} : vector<8x128xf32>, vector<128x128xf32>, vector<8x128xf32> -> vector<8x128xf32>
    %cst_4 = arith.constant 0.000000e+00 : f32
    %6 = vector.broadcast %cst_4 : f32 to vector<8x128xf32>
    %cst_5 = arith.constant 0.000000e+00 : f32
    %7 = vector.broadcast %cst_5 : f32 to vector<8x128xf32>
    %8 = arith.cmpf ogt, %5, %7 : vector<8x128xf32>
    %9 = math.exp %5 : vector<8x128xf32>
    %cst_6 = arith.constant 1.000000e+00 : f32
    %10 = vector.broadcast %cst_6 : f32 to vector<8x128xf32>
    %11 = arith.subf %9, %10 : vector<8x128xf32>
    %12 = arith.select %8, %5, %11 : vector<8x128xi1>, vector<8x128xf32>
    %c0_7 = arith.constant 0 : index
    %c0_8 = arith.constant 0 : index
    %13 = vector.load %arg3[%c0_7, %c0_8] : memref<128x128xf32, #tpu.memory_space<vmem>>, vector<128x128xf32>
    %cst_9 = arith.constant dense<0.000000e+00> : vector<8x128xf32>
    %14 = tpu.matmul %12, %13, %cst_9 {dimension_numbers = #tpu.dot_dimension_numbers<[1], [0], [0], [1], [0, 0, 1, 1], [], []>} : vector<8x128xf32>, vector<128x128xf32>, vector<8x128xf32> -> vector<8x128xf32>
    %cst_10 = arith.constant 0.000000e+00 : f32
    %15 = vector.broadcast %cst_10 : f32 to vector<8x128xf32>
    %16 = arith.cmpf ogt, %14, %15 : vector<8x128xf32>
    %17 = math.exp %14 : vector<8x128xf32>
    %cst_11 = arith.constant 1.000000e+00 : f32
    %18 = vector.broadcast %cst_11 : f32 to vector<8x128xf32>
    %19 = arith.subf %17, %18 : vector<8x128xf32>
    %20 = arith.select %16, %14, %19 : vector<8x128xi1>, vector<8x128xf32>
    %21 = arith.addf %6, %20 : vector<8x128xf32>
    %c0_12 = arith.constant 0 : index
    %c0_13 = arith.constant 0 : index
    %c0_14 = arith.constant 0 : index
    %22 = vector.load %arg4[%c0_12, %c0_13, %c0_14] : memref<1x128x128xf32, #tpu.memory_space<vmem>>, vector<1x128x128xf32>
    %23 = vector.shape_cast %22 : vector<1x128x128xf32> to vector<128x128xf32>
    %cst_15 = arith.constant dense<0.000000e+00> : vector<8x128xf32>
    %24 = tpu.matmul %20, %23, %cst_15 {dimension_numbers = #tpu.dot_dimension_numbers<[1], [0], [0], [1], [0, 0, 1, 1], [], []>} : vector<8x128xf32>, vector<128x128xf32>, vector<8x128xf32> -> vector<8x128xf32>
    %25 = arith.addf %5, %24 : vector<8x128xf32>
    %cst_16 = arith.constant 0.000000e+00 : f32
    %26 = vector.broadcast %cst_16 : f32 to vector<8x128xf32>
    %27 = arith.cmpf ogt, %25, %26 : vector<8x128xf32>
    %28 = math.exp %25 : vector<8x128xf32>
    %cst_17 = arith.constant 1.000000e+00 : f32
    %29 = vector.broadcast %cst_17 : f32 to vector<8x128xf32>
    %30 = arith.subf %28, %29 : vector<8x128xf32>
    %31 = arith.select %27, %25, %30 : vector<8x128xi1>, vector<8x128xf32>
    %c0_18 = arith.constant 0 : index
    %c0_19 = arith.constant 0 : index
    %32 = vector.load %arg3[%c0_18, %c0_19] : memref<128x128xf32, #tpu.memory_space<vmem>>, vector<128x128xf32>
    %cst_20 = arith.constant dense<0.000000e+00> : vector<8x128xf32>
    %33 = tpu.matmul %31, %32, %cst_20 {dimension_numbers = #tpu.dot_dimension_numbers<[1], [0], [0], [1], [0, 0, 1, 1], [], []>} : vector<8x128xf32>, vector<128x128xf32>, vector<8x128xf32> -> vector<8x128xf32>
    %cst_21 = arith.constant 0.000000e+00 : f32
    %34 = vector.broadcast %cst_21 : f32 to vector<8x128xf32>
    %35 = arith.cmpf ogt, %33, %34 : vector<8x128xf32>
    %36 = math.exp %33 : vector<8x128xf32>
    %cst_22 = arith.constant 1.000000e+00 : f32
    %37 = vector.broadcast %cst_22 : f32 to vector<8x128xf32>
    %38 = arith.subf %36, %37 : vector<8x128xf32>
    %39 = arith.select %35, %33, %38 : vector<8x128xi1>, vector<8x128xf32>
    %40 = arith.addf %21, %39 : vector<8x128xf32>
    %c0_23 = arith.constant 0 : index
    %c0_24 = arith.constant 0 : index
    %c0_25 = arith.constant 0 : index
    %41 = vector.load %arg4[%c0_23, %c0_24, %c0_25] : memref<1x128x128xf32, #tpu.memory_space<vmem>>, vector<1x128x128xf32>
    %42 = vector.shape_cast %41 : vector<1x128x128xf32> to vector<128x128xf32>
    %cst_26 = arith.constant dense<0.000000e+00> : vector<8x128xf32>
    %43 = tpu.matmul %39, %42, %cst_26 {dimension_numbers = #tpu.dot_dimension_numbers<[1], [0], [0], [1], [0, 0, 1, 1], [], []>} : vector<8x128xf32>, vector<128x128xf32>, vector<8x128xf32> -> vector<8x128xf32>
    %44 = arith.addf %25, %43 : vector<8x128xf32>
    %cst_27 = arith.constant 0.000000e+00 : f32
    %45 = vector.broadcast %cst_27 : f32 to vector<8x128xf32>
    %46 = arith.cmpf ogt, %44, %45 : vector<8x128xf32>
    %47 = math.exp %44 : vector<8x128xf32>
    %cst_28 = arith.constant 1.000000e+00 : f32
    %48 = vector.broadcast %cst_28 : f32 to vector<8x128xf32>
    %49 = arith.subf %47, %48 : vector<8x128xf32>
    %50 = arith.select %46, %44, %49 : vector<8x128xi1>, vector<8x128xf32>
    %c0_29 = arith.constant 0 : index
    %c0_30 = arith.constant 0 : index
    %51 = vector.load %arg3[%c0_29, %c0_30] : memref<128x128xf32, #tpu.memory_space<vmem>>, vector<128x128xf32>
    %cst_31 = arith.constant dense<0.000000e+00> : vector<8x128xf32>
    %52 = tpu.matmul %50, %51, %cst_31 {dimension_numbers = #tpu.dot_dimension_numbers<[1], [0], [0], [1], [0, 0, 1, 1], [], []>} : vector<8x128xf32>, vector<128x128xf32>, vector<8x128xf32> -> vector<8x128xf32>
    %cst_32 = arith.constant 0.000000e+00 : f32
    %53 = vector.broadcast %cst_32 : f32 to vector<8x128xf32>
    %54 = arith.cmpf ogt, %52, %53 : vector<8x128xf32>
    %55 = math.exp %52 : vector<8x128xf32>
    %cst_33 = arith.constant 1.000000e+00 : f32
    %56 = vector.broadcast %cst_33 : f32 to vector<8x128xf32>
    %57 = arith.subf %55, %56 : vector<8x128xf32>
    %58 = arith.select %54, %52, %57 : vector<8x128xi1>, vector<8x128xf32>
    %59 = arith.addf %40, %58 : vector<8x128xf32>
    %c0_34 = arith.constant 0 : index
    %c0_35 = arith.constant 0 : index
    %c0_36 = arith.constant 0 : index
    %60 = vector.load %arg4[%c0_34, %c0_35, %c0_36] : memref<1x128x128xf32, #tpu.memory_space<vmem>>, vector<1x128x128xf32>
    %61 = vector.shape_cast %60 : vector<1x128x128xf32> to vector<128x128xf32>
    %cst_37 = arith.constant dense<0.000000e+00> : vector<8x128xf32>
    %62 = tpu.matmul %58, %61, %cst_37 {dimension_numbers = #tpu.dot_dimension_numbers<[1], [0], [0], [1], [0, 0, 1, 1], [], []>} : vector<8x128xf32>, vector<128x128xf32>, vector<8x128xf32> -> vector<8x128xf32>
    %63 = arith.addf %44, %62 : vector<8x128xf32>
    %cst_38 = arith.constant 0.000000e+00 : f32
    %64 = vector.broadcast %cst_38 : f32 to vector<8x128xf32>
    %65 = arith.cmpf ogt, %63, %64 : vector<8x128xf32>
    %66 = math.exp %63 : vector<8x128xf32>
    %cst_39 = arith.constant 1.000000e+00 : f32
    %67 = vector.broadcast %cst_39 : f32 to vector<8x128xf32>
    %68 = arith.subf %66, %67 : vector<8x128xf32>
    %69 = arith.select %65, %63, %68 : vector<8x128xi1>, vector<8x128xf32>
    %c0_40 = arith.constant 0 : index
    %c0_41 = arith.constant 0 : index
    %70 = vector.load %arg3[%c0_40, %c0_41] : memref<128x128xf32, #tpu.memory_space<vmem>>, vector<128x128xf32>
    %cst_42 = arith.constant dense<0.000000e+00> : vector<8x128xf32>
    %71 = tpu.matmul %69, %70, %cst_42 {dimension_numbers = #tpu.dot_dimension_numbers<[1], [0], [0], [1], [0, 0, 1, 1], [], []>} : vector<8x128xf32>, vector<128x128xf32>, vector<8x128xf32> -> vector<8x128xf32>
    %cst_43 = arith.constant 0.000000e+00 : f32
    %72 = vector.broadcast %cst_43 : f32 to vector<8x128xf32>
    %73 = arith.cmpf ogt, %71, %72 : vector<8x128xf32>
    %74 = math.exp %71 : vector<8x128xf32>
    %cst_44 = arith.constant 1.000000e+00 : f32
    %75 = vector.broadcast %cst_44 : f32 to vector<8x128xf32>
    %76 = arith.subf %74, %75 : vector<8x128xf32>
    %77 = arith.select %73, %71, %76 : vector<8x128xi1>, vector<8x128xf32>
    %78 = arith.addf %59, %77 : vector<8x128xf32>
    %c0_45 = arith.constant 0 : index
    %c0_46 = arith.constant 0 : index
    %c0_47 = arith.constant 0 : index
    %79 = vector.load %arg4[%c0_45, %c0_46, %c0_47] : memref<1x128x128xf32, #tpu.memory_space<vmem>>, vector<1x128x128xf32>
    %80 = vector.shape_cast %79 : vector<1x128x128xf32> to vector<128x128xf32>
    %cst_48 = arith.constant dense<0.000000e+00> : vector<8x128xf32>
    %81 = tpu.matmul %77, %80, %cst_48 {dimension_numbers = #tpu.dot_dimension_numbers<[1], [0], [0], [1], [0, 0, 1, 1], [], []>} : vector<8x128xf32>, vector<128x128xf32>, vector<8x128xf32> -> vector<8x128xf32>
    %82 = arith.addf %63, %81 : vector<8x128xf32>
    %cst_49 = arith.constant 0.000000e+00 : f32
    %83 = vector.broadcast %cst_49 : f32 to vector<8x128xf32>
    %84 = arith.cmpf ogt, %82, %83 : vector<8x128xf32>
    %85 = math.exp %82 : vector<8x128xf32>
    %cst_50 = arith.constant 1.000000e+00 : f32
    %86 = vector.broadcast %cst_50 : f32 to vector<8x128xf32>
    %87 = arith.subf %85, %86 : vector<8x128xf32>
    %88 = arith.select %84, %82, %87 : vector<8x128xi1>, vector<8x128xf32>
    %c0_51 = arith.constant 0 : index
    %c0_52 = arith.constant 0 : index
    %89 = vector.load %arg3[%c0_51, %c0_52] : memref<128x128xf32, #tpu.memory_space<vmem>>, vector<128x128xf32>
    %cst_53 = arith.constant dense<0.000000e+00> : vector<8x128xf32>
    %90 = tpu.matmul %88, %89, %cst_53 {dimension_numbers = #tpu.dot_dimension_numbers<[1], [0], [0], [1], [0, 0, 1, 1], [], []>} : vector<8x128xf32>, vector<128x128xf32>, vector<8x128xf32> -> vector<8x128xf32>
    %cst_54 = arith.constant 0.000000e+00 : f32
    %91 = vector.broadcast %cst_54 : f32 to vector<8x128xf32>
    %92 = arith.cmpf ogt, %90, %91 : vector<8x128xf32>
    %93 = math.exp %90 : vector<8x128xf32>
    %cst_55 = arith.constant 1.000000e+00 : f32
    %94 = vector.broadcast %cst_55 : f32 to vector<8x128xf32>
    %95 = arith.subf %93, %94 : vector<8x128xf32>
    %96 = arith.select %92, %90, %95 : vector<8x128xi1>, vector<8x128xf32>
    %97 = arith.addf %78, %96 : vector<8x128xf32>
    %c0_56 = arith.constant 0 : index
    %c0_57 = arith.constant 0 : index
    %c0_58 = arith.constant 0 : index
    %98 = vector.load %arg4[%c0_56, %c0_57, %c0_58] : memref<1x128x128xf32, #tpu.memory_space<vmem>>, vector<1x128x128xf32>
    %99 = vector.shape_cast %98 : vector<1x128x128xf32> to vector<128x128xf32>
    %cst_59 = arith.constant dense<0.000000e+00> : vector<8x128xf32>
    %100 = tpu.matmul %96, %99, %cst_59 {dimension_numbers = #tpu.dot_dimension_numbers<[1], [0], [0], [1], [0, 0, 1, 1], [], []>} : vector<8x128xf32>, vector<128x128xf32>, vector<8x128xf32> -> vector<8x128xf32>
    %101 = arith.addf %82, %100 : vector<8x128xf32>
    %cst_60 = arith.constant 0.000000e+00 : f32
    %102 = vector.broadcast %cst_60 : f32 to vector<8x128xf32>
    %103 = arith.cmpf ogt, %101, %102 : vector<8x128xf32>
    %104 = math.exp %101 : vector<8x128xf32>
    %cst_61 = arith.constant 1.000000e+00 : f32
    %105 = vector.broadcast %cst_61 : f32 to vector<8x128xf32>
    %106 = arith.subf %104, %105 : vector<8x128xf32>
    %107 = arith.select %103, %101, %106 : vector<8x128xi1>, vector<8x128xf32>
    %c0_62 = arith.constant 0 : index
    %c0_63 = arith.constant 0 : index
    %108 = vector.load %arg3[%c0_62, %c0_63] : memref<128x128xf32, #tpu.memory_space<vmem>>, vector<128x128xf32>
    %cst_64 = arith.constant dense<0.000000e+00> : vector<8x128xf32>
    %109 = tpu.matmul %107, %108, %cst_64 {dimension_numbers = #tpu.dot_dimension_numbers<[1], [0], [0], [1], [0, 0, 1, 1], [], []>} : vector<8x128xf32>, vector<128x128xf32>, vector<8x128xf32> -> vector<8x128xf32>
    %cst_65 = arith.constant 0.000000e+00 : f32
    %110 = vector.broadcast %cst_65 : f32 to vector<8x128xf32>
    %111 = arith.cmpf ogt, %109, %110 : vector<8x128xf32>
    %112 = math.exp %109 : vector<8x128xf32>
    %cst_66 = arith.constant 1.000000e+00 : f32
    %113 = vector.broadcast %cst_66 : f32 to vector<8x128xf32>
    %114 = arith.subf %112, %113 : vector<8x128xf32>
    %115 = arith.select %111, %109, %114 : vector<8x128xi1>, vector<8x128xf32>
    %116 = arith.addf %97, %115 : vector<8x128xf32>
    %c0_67 = arith.constant 0 : index
    %c0_68 = arith.constant 0 : index
    %c0_69 = arith.constant 0 : index
    %117 = vector.load %arg4[%c0_67, %c0_68, %c0_69] : memref<1x128x128xf32, #tpu.memory_space<vmem>>, vector<1x128x128xf32>
    %118 = vector.shape_cast %117 : vector<1x128x128xf32> to vector<128x128xf32>
    %cst_70 = arith.constant dense<0.000000e+00> : vector<8x128xf32>
    %119 = tpu.matmul %115, %118, %cst_70 {dimension_numbers = #tpu.dot_dimension_numbers<[1], [0], [0], [1], [0, 0, 1, 1], [], []>} : vector<8x128xf32>, vector<128x128xf32>, vector<8x128xf32> -> vector<8x128xf32>
    %120 = arith.addf %101, %119 : vector<8x128xf32>
    %cst_71 = arith.constant 0.000000e+00 : f32
    %121 = vector.broadcast %cst_71 : f32 to vector<8x128xf32>
    %122 = arith.cmpf ogt, %120, %121 : vector<8x128xf32>
    %123 = math.exp %120 : vector<8x128xf32>
    %cst_72 = arith.constant 1.000000e+00 : f32
    %124 = vector.broadcast %cst_72 : f32 to vector<8x128xf32>
    %125 = arith.subf %123, %124 : vector<8x128xf32>
    %126 = arith.select %122, %120, %125 : vector<8x128xi1>, vector<8x128xf32>
    %c0_73 = arith.constant 0 : index
    %c0_74 = arith.constant 0 : index
    %127 = vector.load %arg3[%c0_73, %c0_74] : memref<128x128xf32, #tpu.memory_space<vmem>>, vector<128x128xf32>
    %cst_75 = arith.constant dense<0.000000e+00> : vector<8x128xf32>
    %128 = tpu.matmul %126, %127, %cst_75 {dimension_numbers = #tpu.dot_dimension_numbers<[1], [0], [0], [1], [0, 0, 1, 1], [], []>} : vector<8x128xf32>, vector<128x128xf32>, vector<8x128xf32> -> vector<8x128xf32>
    %cst_76 = arith.constant 0.000000e+00 : f32
    %129 = vector.broadcast %cst_76 : f32 to vector<8x128xf32>
    %130 = arith.cmpf ogt, %128, %129 : vector<8x128xf32>
    %131 = math.exp %128 : vector<8x128xf32>
    %cst_77 = arith.constant 1.000000e+00 : f32
    %132 = vector.broadcast %cst_77 : f32 to vector<8x128xf32>
    %133 = arith.subf %131, %132 : vector<8x128xf32>
    %134 = arith.select %130, %128, %133 : vector<8x128xi1>, vector<8x128xf32>
    %135 = arith.addf %116, %134 : vector<8x128xf32>
    %c0_78 = arith.constant 0 : index
    %c0_79 = arith.constant 0 : index
    %c0_80 = arith.constant 0 : index
    %136 = vector.load %arg4[%c0_78, %c0_79, %c0_80] : memref<1x128x128xf32, #tpu.memory_space<vmem>>, vector<1x128x128xf32>
    %137 = vector.shape_cast %136 : vector<1x128x128xf32> to vector<128x128xf32>
    %cst_81 = arith.constant dense<0.000000e+00> : vector<8x128xf32>
    %138 = tpu.matmul %134, %137, %cst_81 {dimension_numbers = #tpu.dot_dimension_numbers<[1], [0], [0], [1], [0, 0, 1, 1], [], []>} : vector<8x128xf32>, vector<128x128xf32>, vector<8x128xf32> -> vector<8x128xf32>
    %139 = arith.addf %120, %138 : vector<8x128xf32>
    %cst_82 = arith.constant 0.000000e+00 : f32
    %140 = vector.broadcast %cst_82 : f32 to vector<8x128xf32>
    %141 = arith.cmpf ogt, %139, %140 : vector<8x128xf32>
    %142 = math.exp %139 : vector<8x128xf32>
    %cst_83 = arith.constant 1.000000e+00 : f32
    %143 = vector.broadcast %cst_83 : f32 to vector<8x128xf32>
    %144 = arith.subf %142, %143 : vector<8x128xf32>
    %145 = arith.select %141, %139, %144 : vector<8x128xi1>, vector<8x128xf32>
    %c0_84 = arith.constant 0 : index
    %c0_85 = arith.constant 0 : index
    %146 = vector.load %arg3[%c0_84, %c0_85] : memref<128x128xf32, #tpu.memory_space<vmem>>, vector<128x128xf32>
    %cst_86 = arith.constant dense<0.000000e+00> : vector<8x128xf32>
    %147 = tpu.matmul %145, %146, %cst_86 {dimension_numbers = #tpu.dot_dimension_numbers<[1], [0], [0], [1], [0, 0, 1, 1], [], []>} : vector<8x128xf32>, vector<128x128xf32>, vector<8x128xf32> -> vector<8x128xf32>
    %cst_87 = arith.constant 0.000000e+00 : f32
    %148 = vector.broadcast %cst_87 : f32 to vector<8x128xf32>
    %149 = arith.cmpf ogt, %147, %148 : vector<8x128xf32>
    %150 = math.exp %147 : vector<8x128xf32>
    %cst_88 = arith.constant 1.000000e+00 : f32
    %151 = vector.broadcast %cst_88 : f32 to vector<8x128xf32>
    %152 = arith.subf %150, %151 : vector<8x128xf32>
    %153 = arith.select %149, %147, %152 : vector<8x128xi1>, vector<8x128xf32>
    %154 = arith.addf %135, %153 : vector<8x128xf32>
    %c0_89 = arith.constant 0 : index
    %c0_90 = arith.constant 0 : index
    %c0_91 = arith.constant 0 : index
    %155 = vector.load %arg4[%c0_89, %c0_90, %c0_91] : memref<1x128x128xf32, #tpu.memory_space<vmem>>, vector<1x128x128xf32>
    %156 = vector.shape_cast %155 : vector<1x128x128xf32> to vector<128x128xf32>
    %cst_92 = arith.constant dense<0.000000e+00> : vector<8x128xf32>
    %157 = tpu.matmul %153, %156, %cst_92 {dimension_numbers = #tpu.dot_dimension_numbers<[1], [0], [0], [1], [0, 0, 1, 1], [], []>} : vector<8x128xf32>, vector<128x128xf32>, vector<8x128xf32> -> vector<8x128xf32>
    %158 = arith.addf %139, %157 : vector<8x128xf32>
    %cst_93 = arith.constant 0.000000e+00 : f32
    %159 = vector.broadcast %cst_93 : f32 to vector<8x128xf32>
    %160 = arith.cmpf ogt, %158, %159 : vector<8x128xf32>
    %161 = math.exp %158 : vector<8x128xf32>
    %cst_94 = arith.constant 1.000000e+00 : f32
    %162 = vector.broadcast %cst_94 : f32 to vector<8x128xf32>
    %163 = arith.subf %161, %162 : vector<8x128xf32>
    %164 = arith.select %160, %158, %163 : vector<8x128xi1>, vector<8x128xf32>
    %c0_95 = arith.constant 0 : index
    %c0_96 = arith.constant 0 : index
    %165 = vector.load %arg3[%c0_95, %c0_96] : memref<128x128xf32, #tpu.memory_space<vmem>>, vector<128x128xf32>
    %cst_97 = arith.constant dense<0.000000e+00> : vector<8x128xf32>
    %166 = tpu.matmul %164, %165, %cst_97 {dimension_numbers = #tpu.dot_dimension_numbers<[1], [0], [0], [1], [0, 0, 1, 1], [], []>} : vector<8x128xf32>, vector<128x128xf32>, vector<8x128xf32> -> vector<8x128xf32>
    %cst_98 = arith.constant 0.000000e+00 : f32
    %167 = vector.broadcast %cst_98 : f32 to vector<8x128xf32>
    %168 = arith.cmpf ogt, %166, %167 : vector<8x128xf32>
    %169 = math.exp %166 : vector<8x128xf32>
    %cst_99 = arith.constant 1.000000e+00 : f32
    %170 = vector.broadcast %cst_99 : f32 to vector<8x128xf32>
    %171 = arith.subf %169, %170 : vector<8x128xf32>
    %172 = arith.select %168, %166, %171 : vector<8x128xi1>, vector<8x128xf32>
    %173 = arith.addf %154, %172 : vector<8x128xf32>
    %c0_100 = arith.constant 0 : index
    %c0_101 = arith.constant 0 : index
    %c0_102 = arith.constant 0 : index
    %174 = vector.load %arg4[%c0_100, %c0_101, %c0_102] : memref<1x128x128xf32, #tpu.memory_space<vmem>>, vector<1x128x128xf32>
    %175 = vector.shape_cast %174 : vector<1x128x128xf32> to vector<128x128xf32>
    %cst_103 = arith.constant dense<0.000000e+00> : vector<8x128xf32>
    %176 = tpu.matmul %172, %175, %cst_103 {dimension_numbers = #tpu.dot_dimension_numbers<[1], [0], [0], [1], [0, 0, 1, 1], [], []>} : vector<8x128xf32>, vector<128x128xf32>, vector<8x128xf32> -> vector<8x128xf32>
    %177 = arith.addf %158, %176 : vector<8x128xf32>
    %cst_104 = arith.constant 0.000000e+00 : f32
    %178 = vector.broadcast %cst_104 : f32 to vector<8x128xf32>
    %179 = arith.cmpf ogt, %177, %178 : vector<8x128xf32>
    %180 = math.exp %177 : vector<8x128xf32>
    %cst_105 = arith.constant 1.000000e+00 : f32
    %181 = vector.broadcast %cst_105 : f32 to vector<8x128xf32>
    %182 = arith.subf %180, %181 : vector<8x128xf32>
    %183 = arith.select %179, %177, %182 : vector<8x128xi1>, vector<8x128xf32>
    %c0_106 = arith.constant 0 : index
    %c0_107 = arith.constant 0 : index
    %184 = vector.load %arg3[%c0_106, %c0_107] : memref<128x128xf32, #tpu.memory_space<vmem>>, vector<128x128xf32>
    %cst_108 = arith.constant dense<0.000000e+00> : vector<8x128xf32>
    %185 = tpu.matmul %183, %184, %cst_108 {dimension_numbers = #tpu.dot_dimension_numbers<[1], [0], [0], [1], [0, 0, 1, 1], [], []>} : vector<8x128xf32>, vector<128x128xf32>, vector<8x128xf32> -> vector<8x128xf32>
    %cst_109 = arith.constant 0.000000e+00 : f32
    %186 = vector.broadcast %cst_109 : f32 to vector<8x128xf32>
    %187 = arith.cmpf ogt, %185, %186 : vector<8x128xf32>
    %188 = math.exp %185 : vector<8x128xf32>
    %cst_110 = arith.constant 1.000000e+00 : f32
    %189 = vector.broadcast %cst_110 : f32 to vector<8x128xf32>
    %190 = arith.subf %188, %189 : vector<8x128xf32>
    %191 = arith.select %187, %185, %190 : vector<8x128xi1>, vector<8x128xf32>
    %192 = arith.addf %173, %191 : vector<8x128xf32>
    %c0_111 = arith.constant 0 : index
    %c0_112 = arith.constant 0 : index
    %c0_113 = arith.constant 0 : index
    %193 = vector.load %arg4[%c0_111, %c0_112, %c0_113] : memref<1x128x128xf32, #tpu.memory_space<vmem>>, vector<1x128x128xf32>
    %194 = vector.shape_cast %193 : vector<1x128x128xf32> to vector<128x128xf32>
    %cst_114 = arith.constant dense<0.000000e+00> : vector<8x128xf32>
    %195 = tpu.matmul %191, %194, %cst_114 {dimension_numbers = #tpu.dot_dimension_numbers<[1], [0], [0], [1], [0, 0, 1, 1], [], []>} : vector<8x128xf32>, vector<128x128xf32>, vector<8x128xf32> -> vector<8x128xf32>
    %196 = arith.addf %177, %195 : vector<8x128xf32>
    %cst_115 = arith.constant 0.000000e+00 : f32
    %197 = vector.broadcast %cst_115 : f32 to vector<8x128xf32>
    %198 = arith.cmpf ogt, %196, %197 : vector<8x128xf32>
    %199 = math.exp %196 : vector<8x128xf32>
    %cst_116 = arith.constant 1.000000e+00 : f32
    %200 = vector.broadcast %cst_116 : f32 to vector<8x128xf32>
    %201 = arith.subf %199, %200 : vector<8x128xf32>
    %202 = arith.select %198, %196, %201 : vector<8x128xi1>, vector<8x128xf32>
    %c0_117 = arith.constant 0 : index
    %c0_118 = arith.constant 0 : index
    %203 = vector.load %arg3[%c0_117, %c0_118] : memref<128x128xf32, #tpu.memory_space<vmem>>, vector<128x128xf32>
    %cst_119 = arith.constant dense<0.000000e+00> : vector<8x128xf32>
    %204 = tpu.matmul %202, %203, %cst_119 {dimension_numbers = #tpu.dot_dimension_numbers<[1], [0], [0], [1], [0, 0, 1, 1], [], []>} : vector<8x128xf32>, vector<128x128xf32>, vector<8x128xf32> -> vector<8x128xf32>
    %cst_120 = arith.constant 0.000000e+00 : f32
    %205 = vector.broadcast %cst_120 : f32 to vector<8x128xf32>
    %206 = arith.cmpf ogt, %204, %205 : vector<8x128xf32>
    %207 = math.exp %204 : vector<8x128xf32>
    %cst_121 = arith.constant 1.000000e+00 : f32
    %208 = vector.broadcast %cst_121 : f32 to vector<8x128xf32>
    %209 = arith.subf %207, %208 : vector<8x128xf32>
    %210 = arith.select %206, %204, %209 : vector<8x128xi1>, vector<8x128xf32>
    %211 = arith.addf %192, %210 : vector<8x128xf32>
    %c0_122 = arith.constant 0 : index
    %c0_123 = arith.constant 0 : index
    %c0_124 = arith.constant 0 : index
    %212 = vector.load %arg4[%c0_122, %c0_123, %c0_124] : memref<1x128x128xf32, #tpu.memory_space<vmem>>, vector<1x128x128xf32>
    %213 = vector.shape_cast %212 : vector<1x128x128xf32> to vector<128x128xf32>
    %cst_125 = arith.constant dense<0.000000e+00> : vector<8x128xf32>
    %214 = tpu.matmul %210, %213, %cst_125 {dimension_numbers = #tpu.dot_dimension_numbers<[1], [0], [0], [1], [0, 0, 1, 1], [], []>} : vector<8x128xf32>, vector<128x128xf32>, vector<8x128xf32> -> vector<8x128xf32>
    %215 = arith.addf %196, %214 : vector<8x128xf32>
    %cst_126 = arith.constant 0.000000e+00 : f32
    %216 = vector.broadcast %cst_126 : f32 to vector<8x128xf32>
    %217 = arith.cmpf ogt, %215, %216 : vector<8x128xf32>
    %218 = math.exp %215 : vector<8x128xf32>
    %cst_127 = arith.constant 1.000000e+00 : f32
    %219 = vector.broadcast %cst_127 : f32 to vector<8x128xf32>
    %220 = arith.subf %218, %219 : vector<8x128xf32>
    %221 = arith.select %217, %215, %220 : vector<8x128xi1>, vector<8x128xf32>
    %c0_128 = arith.constant 0 : index
    %c0_129 = arith.constant 0 : index
    %222 = vector.load %arg3[%c0_128, %c0_129] : memref<128x128xf32, #tpu.memory_space<vmem>>, vector<128x128xf32>
    %cst_130 = arith.constant dense<0.000000e+00> : vector<8x128xf32>
    %223 = tpu.matmul %221, %222, %cst_130 {dimension_numbers = #tpu.dot_dimension_numbers<[1], [0], [0], [1], [0, 0, 1, 1], [], []>} : vector<8x128xf32>, vector<128x128xf32>, vector<8x128xf32> -> vector<8x128xf32>
    %cst_131 = arith.constant 0.000000e+00 : f32
    %224 = vector.broadcast %cst_131 : f32 to vector<8x128xf32>
    %225 = arith.cmpf ogt, %223, %224 : vector<8x128xf32>
    %226 = math.exp %223 : vector<8x128xf32>
    %cst_132 = arith.constant 1.000000e+00 : f32
    %227 = vector.broadcast %cst_132 : f32 to vector<8x128xf32>
    %228 = arith.subf %226, %227 : vector<8x128xf32>
    %229 = arith.select %225, %223, %228 : vector<8x128xi1>, vector<8x128xf32>
    %230 = arith.addf %211, %229 : vector<8x128xf32>
    %c0_133 = arith.constant 0 : index
    %c0_134 = arith.constant 0 : index
    %c0_135 = arith.constant 0 : index
    %231 = vector.load %arg4[%c0_133, %c0_134, %c0_135] : memref<1x128x128xf32, #tpu.memory_space<vmem>>, vector<1x128x128xf32>
    %232 = vector.shape_cast %231 : vector<1x128x128xf32> to vector<128x128xf32>
    %cst_136 = arith.constant dense<0.000000e+00> : vector<8x128xf32>
    %233 = tpu.matmul %229, %232, %cst_136 {dimension_numbers = #tpu.dot_dimension_numbers<[1], [0], [0], [1], [0, 0, 1, 1], [], []>} : vector<8x128xf32>, vector<128x128xf32>, vector<8x128xf32> -> vector<8x128xf32>
    %234 = arith.addf %215, %233 : vector<8x128xf32>
    %cst_137 = arith.constant 0.000000e+00 : f32
    %235 = vector.broadcast %cst_137 : f32 to vector<8x128xf32>
    %236 = arith.cmpf ogt, %234, %235 : vector<8x128xf32>
    %237 = math.exp %234 : vector<8x128xf32>
    %cst_138 = arith.constant 1.000000e+00 : f32
    %238 = vector.broadcast %cst_138 : f32 to vector<8x128xf32>
    %239 = arith.subf %237, %238 : vector<8x128xf32>
    %240 = arith.select %236, %234, %239 : vector<8x128xi1>, vector<8x128xf32>
    %c0_139 = arith.constant 0 : index
    %c0_140 = arith.constant 0 : index
    %241 = vector.load %arg3[%c0_139, %c0_140] : memref<128x128xf32, #tpu.memory_space<vmem>>, vector<128x128xf32>
    %cst_141 = arith.constant dense<0.000000e+00> : vector<8x128xf32>
    %242 = tpu.matmul %240, %241, %cst_141 {dimension_numbers = #tpu.dot_dimension_numbers<[1], [0], [0], [1], [0, 0, 1, 1], [], []>} : vector<8x128xf32>, vector<128x128xf32>, vector<8x128xf32> -> vector<8x128xf32>
    %cst_142 = arith.constant 0.000000e+00 : f32
    %243 = vector.broadcast %cst_142 : f32 to vector<8x128xf32>
    %244 = arith.cmpf ogt, %242, %243 : vector<8x128xf32>
    %245 = math.exp %242 : vector<8x128xf32>
    %cst_143 = arith.constant 1.000000e+00 : f32
    %246 = vector.broadcast %cst_143 : f32 to vector<8x128xf32>
    %247 = arith.subf %245, %246 : vector<8x128xf32>
    %248 = arith.select %244, %242, %247 : vector<8x128xi1>, vector<8x128xf32>
    %249 = arith.addf %230, %248 : vector<8x128xf32>
    %c0_144 = arith.constant 0 : index
    %c0_145 = arith.constant 0 : index
    %c0_146 = arith.constant 0 : index
    %250 = vector.load %arg4[%c0_144, %c0_145, %c0_146] : memref<1x128x128xf32, #tpu.memory_space<vmem>>, vector<1x128x128xf32>
    %251 = vector.shape_cast %250 : vector<1x128x128xf32> to vector<128x128xf32>
    %cst_147 = arith.constant dense<0.000000e+00> : vector<8x128xf32>
    %252 = tpu.matmul %248, %251, %cst_147 {dimension_numbers = #tpu.dot_dimension_numbers<[1], [0], [0], [1], [0, 0, 1, 1], [], []>} : vector<8x128xf32>, vector<128x128xf32>, vector<8x128xf32> -> vector<8x128xf32>
    %253 = arith.addf %234, %252 : vector<8x128xf32>
    %cst_148 = arith.constant 0.000000e+00 : f32
    %254 = vector.broadcast %cst_148 : f32 to vector<8x128xf32>
    %255 = arith.cmpf ogt, %253, %254 : vector<8x128xf32>
    %256 = math.exp %253 : vector<8x128xf32>
    %cst_149 = arith.constant 1.000000e+00 : f32
    %257 = vector.broadcast %cst_149 : f32 to vector<8x128xf32>
    %258 = arith.subf %256, %257 : vector<8x128xf32>
    %259 = arith.select %255, %253, %258 : vector<8x128xi1>, vector<8x128xf32>
    %c0_150 = arith.constant 0 : index
    %c0_151 = arith.constant 0 : index
    %260 = vector.load %arg3[%c0_150, %c0_151] : memref<128x128xf32, #tpu.memory_space<vmem>>, vector<128x128xf32>
    %cst_152 = arith.constant dense<0.000000e+00> : vector<8x128xf32>
    %261 = tpu.matmul %259, %260, %cst_152 {dimension_numbers = #tpu.dot_dimension_numbers<[1], [0], [0], [1], [0, 0, 1, 1], [], []>} : vector<8x128xf32>, vector<128x128xf32>, vector<8x128xf32> -> vector<8x128xf32>
    %cst_153 = arith.constant 0.000000e+00 : f32
    %262 = vector.broadcast %cst_153 : f32 to vector<8x128xf32>
    %263 = arith.cmpf ogt, %261, %262 : vector<8x128xf32>
    %264 = math.exp %261 : vector<8x128xf32>
    %cst_154 = arith.constant 1.000000e+00 : f32
    %265 = vector.broadcast %cst_154 : f32 to vector<8x128xf32>
    %266 = arith.subf %264, %265 : vector<8x128xf32>
    %267 = arith.select %263, %261, %266 : vector<8x128xi1>, vector<8x128xf32>
    %268 = arith.addf %249, %267 : vector<8x128xf32>
    %c0_155 = arith.constant 0 : index
    %c0_156 = arith.constant 0 : index
    %c0_157 = arith.constant 0 : index
    %269 = vector.load %arg4[%c0_155, %c0_156, %c0_157] : memref<1x128x128xf32, #tpu.memory_space<vmem>>, vector<1x128x128xf32>
    %270 = vector.shape_cast %269 : vector<1x128x128xf32> to vector<128x128xf32>
    %cst_158 = arith.constant dense<0.000000e+00> : vector<8x128xf32>
    %271 = tpu.matmul %267, %270, %cst_158 {dimension_numbers = #tpu.dot_dimension_numbers<[1], [0], [0], [1], [0, 0, 1, 1], [], []>} : vector<8x128xf32>, vector<128x128xf32>, vector<8x128xf32> -> vector<8x128xf32>
    %272 = arith.addf %253, %271 : vector<8x128xf32>
    %cst_159 = arith.constant 0.000000e+00 : f32
    %273 = vector.broadcast %cst_159 : f32 to vector<8x128xf32>
    %274 = arith.cmpf ogt, %272, %273 : vector<8x128xf32>
    %275 = math.exp %272 : vector<8x128xf32>
    %cst_160 = arith.constant 1.000000e+00 : f32
    %276 = vector.broadcast %cst_160 : f32 to vector<8x128xf32>
    %277 = arith.subf %275, %276 : vector<8x128xf32>
    %278 = arith.select %274, %272, %277 : vector<8x128xi1>, vector<8x128xf32>
    %c0_161 = arith.constant 0 : index
    %c0_162 = arith.constant 0 : index
    %279 = vector.load %arg3[%c0_161, %c0_162] : memref<128x128xf32, #tpu.memory_space<vmem>>, vector<128x128xf32>
    %cst_163 = arith.constant dense<0.000000e+00> : vector<8x128xf32>
    %280 = tpu.matmul %278, %279, %cst_163 {dimension_numbers = #tpu.dot_dimension_numbers<[1], [0], [0], [1], [0, 0, 1, 1], [], []>} : vector<8x128xf32>, vector<128x128xf32>, vector<8x128xf32> -> vector<8x128xf32>
    %cst_164 = arith.constant 0.000000e+00 : f32
    %281 = vector.broadcast %cst_164 : f32 to vector<8x128xf32>
    %282 = arith.cmpf ogt, %280, %281 : vector<8x128xf32>
    %283 = math.exp %280 : vector<8x128xf32>
    %cst_165 = arith.constant 1.000000e+00 : f32
    %284 = vector.broadcast %cst_165 : f32 to vector<8x128xf32>
    %285 = arith.subf %283, %284 : vector<8x128xf32>
    %286 = arith.select %282, %280, %285 : vector<8x128xi1>, vector<8x128xf32>
    %287 = arith.addf %268, %286 : vector<8x128xf32>
    %c0_166 = arith.constant 0 : index
    %c0_167 = arith.constant 0 : index
    %c0_168 = arith.constant 0 : index
    %288 = vector.load %arg4[%c0_166, %c0_167, %c0_168] : memref<1x128x128xf32, #tpu.memory_space<vmem>>, vector<1x128x128xf32>
    %289 = vector.shape_cast %288 : vector<1x128x128xf32> to vector<128x128xf32>
    %cst_169 = arith.constant dense<0.000000e+00> : vector<8x128xf32>
    %290 = tpu.matmul %286, %289, %cst_169 {dimension_numbers = #tpu.dot_dimension_numbers<[1], [0], [0], [1], [0, 0, 1, 1], [], []>} : vector<8x128xf32>, vector<128x128xf32>, vector<8x128xf32> -> vector<8x128xf32>
    %291 = arith.addf %272, %290 : vector<8x128xf32>
    %cst_170 = arith.constant 0.000000e+00 : f32
    %292 = vector.broadcast %cst_170 : f32 to vector<8x128xf32>
    %293 = arith.cmpf ogt, %291, %292 : vector<8x128xf32>
    %294 = math.exp %291 : vector<8x128xf32>
    %cst_171 = arith.constant 1.000000e+00 : f32
    %295 = vector.broadcast %cst_171 : f32 to vector<8x128xf32>
    %296 = arith.subf %294, %295 : vector<8x128xf32>
    %297 = arith.select %293, %291, %296 : vector<8x128xi1>, vector<8x128xf32>
    %c0_172 = arith.constant 0 : index
    %c0_173 = arith.constant 0 : index
    %298 = vector.load %arg3[%c0_172, %c0_173] : memref<128x128xf32, #tpu.memory_space<vmem>>, vector<128x128xf32>
    %cst_174 = arith.constant dense<0.000000e+00> : vector<8x128xf32>
    %299 = tpu.matmul %297, %298, %cst_174 {dimension_numbers = #tpu.dot_dimension_numbers<[1], [0], [0], [1], [0, 0, 1, 1], [], []>} : vector<8x128xf32>, vector<128x128xf32>, vector<8x128xf32> -> vector<8x128xf32>
    %cst_175 = arith.constant 0.000000e+00 : f32
    %300 = vector.broadcast %cst_175 : f32 to vector<8x128xf32>
    %301 = arith.cmpf ogt, %299, %300 : vector<8x128xf32>
    %302 = math.exp %299 : vector<8x128xf32>
    %cst_176 = arith.constant 1.000000e+00 : f32
    %303 = vector.broadcast %cst_176 : f32 to vector<8x128xf32>
    %304 = arith.subf %302, %303 : vector<8x128xf32>
    %305 = arith.select %301, %299, %304 : vector<8x128xi1>, vector<8x128xf32>
    %306 = arith.addf %287, %305 : vector<8x128xf32>
    %c0_177 = arith.constant 0 : index
    %c0_178 = arith.constant 0 : index
    %c0_179 = arith.constant 0 : index
    %307 = vector.load %arg4[%c0_177, %c0_178, %c0_179] : memref<1x128x128xf32, #tpu.memory_space<vmem>>, vector<1x128x128xf32>
    %308 = vector.shape_cast %307 : vector<1x128x128xf32> to vector<128x128xf32>
    %cst_180 = arith.constant dense<0.000000e+00> : vector<8x128xf32>
    %309 = tpu.matmul %305, %308, %cst_180 {dimension_numbers = #tpu.dot_dimension_numbers<[1], [0], [0], [1], [0, 0, 1, 1], [], []>} : vector<8x128xf32>, vector<128x128xf32>, vector<8x128xf32> -> vector<8x128xf32>
    %310 = arith.addf %291, %309 : vector<8x128xf32>
    %cst_181 = arith.constant 0.000000e+00 : f32
    %311 = vector.broadcast %cst_181 : f32 to vector<8x128xf32>
    %312 = arith.cmpf ogt, %310, %311 : vector<8x128xf32>
    %313 = math.exp %310 : vector<8x128xf32>
    %cst_182 = arith.constant 1.000000e+00 : f32
    %314 = vector.broadcast %cst_182 : f32 to vector<8x128xf32>
    %315 = arith.subf %313, %314 : vector<8x128xf32>
    %316 = arith.select %312, %310, %315 : vector<8x128xi1>, vector<8x128xf32>
    %c0_183 = arith.constant 0 : index
    %c0_184 = arith.constant 0 : index
    %317 = vector.load %arg3[%c0_183, %c0_184] : memref<128x128xf32, #tpu.memory_space<vmem>>, vector<128x128xf32>
    %cst_185 = arith.constant dense<0.000000e+00> : vector<8x128xf32>
    %318 = tpu.matmul %316, %317, %cst_185 {dimension_numbers = #tpu.dot_dimension_numbers<[1], [0], [0], [1], [0, 0, 1, 1], [], []>} : vector<8x128xf32>, vector<128x128xf32>, vector<8x128xf32> -> vector<8x128xf32>
    %cst_186 = arith.constant 0.000000e+00 : f32
    %319 = vector.broadcast %cst_186 : f32 to vector<8x128xf32>
    %320 = arith.cmpf ogt, %318, %319 : vector<8x128xf32>
    %321 = math.exp %318 : vector<8x128xf32>
    %cst_187 = arith.constant 1.000000e+00 : f32
    %322 = vector.broadcast %cst_187 : f32 to vector<8x128xf32>
    %323 = arith.subf %321, %322 : vector<8x128xf32>
    %324 = arith.select %320, %318, %323 : vector<8x128xi1>, vector<8x128xf32>
    %325 = arith.addf %306, %324 : vector<8x128xf32>
    %c0_188 = arith.constant 0 : index
    %c0_189 = arith.constant 0 : index
    %c0_190 = arith.constant 0 : index
    %326 = vector.load %arg4[%c0_188, %c0_189, %c0_190] : memref<1x128x128xf32, #tpu.memory_space<vmem>>, vector<1x128x128xf32>
    %327 = vector.shape_cast %326 : vector<1x128x128xf32> to vector<128x128xf32>
    %cst_191 = arith.constant dense<0.000000e+00> : vector<8x128xf32>
    %328 = tpu.matmul %324, %327, %cst_191 {dimension_numbers = #tpu.dot_dimension_numbers<[1], [0], [0], [1], [0, 0, 1, 1], [], []>} : vector<8x128xf32>, vector<128x128xf32>, vector<8x128xf32> -> vector<8x128xf32>
    %329 = arith.addf %310, %328 : vector<8x128xf32>
    %cst_192 = arith.constant 0.000000e+00 : f32
    %330 = vector.broadcast %cst_192 : f32 to vector<8x128xf32>
    %331 = arith.cmpf ogt, %329, %330 : vector<8x128xf32>
    %332 = math.exp %329 : vector<8x128xf32>
    %cst_193 = arith.constant 1.000000e+00 : f32
    %333 = vector.broadcast %cst_193 : f32 to vector<8x128xf32>
    %334 = arith.subf %332, %333 : vector<8x128xf32>
    %335 = arith.select %331, %329, %334 : vector<8x128xi1>, vector<8x128xf32>
    %c0_194 = arith.constant 0 : index
    %c0_195 = arith.constant 0 : index
    %336 = vector.load %arg3[%c0_194, %c0_195] : memref<128x128xf32, #tpu.memory_space<vmem>>, vector<128x128xf32>
    %cst_196 = arith.constant dense<0.000000e+00> : vector<8x128xf32>
    %337 = tpu.matmul %335, %336, %cst_196 {dimension_numbers = #tpu.dot_dimension_numbers<[1], [0], [0], [1], [0, 0, 1, 1], [], []>} : vector<8x128xf32>, vector<128x128xf32>, vector<8x128xf32> -> vector<8x128xf32>
    %cst_197 = arith.constant 0.000000e+00 : f32
    %338 = vector.broadcast %cst_197 : f32 to vector<8x128xf32>
    %339 = arith.cmpf ogt, %337, %338 : vector<8x128xf32>
    %340 = math.exp %337 : vector<8x128xf32>
    %cst_198 = arith.constant 1.000000e+00 : f32
    %341 = vector.broadcast %cst_198 : f32 to vector<8x128xf32>
    %342 = arith.subf %340, %341 : vector<8x128xf32>
    %343 = arith.select %339, %337, %342 : vector<8x128xi1>, vector<8x128xf32>
    %344 = arith.addf %325, %343 : vector<8x128xf32>
    %c0_199 = arith.constant 0 : index
    %c0_200 = arith.constant 0 : index
    %c0_201 = arith.constant 0 : index
    %345 = vector.load %arg4[%c0_199, %c0_200, %c0_201] : memref<1x128x128xf32, #tpu.memory_space<vmem>>, vector<1x128x128xf32>
    %346 = vector.shape_cast %345 : vector<1x128x128xf32> to vector<128x128xf32>
    %cst_202 = arith.constant dense<0.000000e+00> : vector<8x128xf32>
    %347 = tpu.matmul %343, %346, %cst_202 {dimension_numbers = #tpu.dot_dimension_numbers<[1], [0], [0], [1], [0, 0, 1, 1], [], []>} : vector<8x128xf32>, vector<128x128xf32>, vector<8x128xf32> -> vector<8x128xf32>
    %348 = arith.addf %329, %347 : vector<8x128xf32>
    %cst_203 = arith.constant 0.000000e+00 : f32
    %349 = vector.broadcast %cst_203 : f32 to vector<8x128xf32>
    %350 = arith.cmpf ogt, %348, %349 : vector<8x128xf32>
    %351 = math.exp %348 : vector<8x128xf32>
    %cst_204 = arith.constant 1.000000e+00 : f32
    %352 = vector.broadcast %cst_204 : f32 to vector<8x128xf32>
    %353 = arith.subf %351, %352 : vector<8x128xf32>
    %354 = arith.select %350, %348, %353 : vector<8x128xi1>, vector<8x128xf32>
    %c0_205 = arith.constant 0 : index
    %c0_206 = arith.constant 0 : index
    %355 = vector.load %arg3[%c0_205, %c0_206] : memref<128x128xf32, #tpu.memory_space<vmem>>, vector<128x128xf32>
    %cst_207 = arith.constant dense<0.000000e+00> : vector<8x128xf32>
    %356 = tpu.matmul %354, %355, %cst_207 {dimension_numbers = #tpu.dot_dimension_numbers<[1], [0], [0], [1], [0, 0, 1, 1], [], []>} : vector<8x128xf32>, vector<128x128xf32>, vector<8x128xf32> -> vector<8x128xf32>
    %cst_208 = arith.constant 0.000000e+00 : f32
    %357 = vector.broadcast %cst_208 : f32 to vector<8x128xf32>
    %358 = arith.cmpf ogt, %356, %357 : vector<8x128xf32>
    %359 = math.exp %356 : vector<8x128xf32>
    %cst_209 = arith.constant 1.000000e+00 : f32
    %360 = vector.broadcast %cst_209 : f32 to vector<8x128xf32>
    %361 = arith.subf %359, %360 : vector<8x128xf32>
    %362 = arith.select %358, %356, %361 : vector<8x128xi1>, vector<8x128xf32>
    %363 = arith.addf %344, %362 : vector<8x128xf32>
    %c0_210 = arith.constant 0 : index
    %c0_211 = arith.constant 0 : index
    %c0_212 = arith.constant 0 : index
    %364 = vector.load %arg4[%c0_210, %c0_211, %c0_212] : memref<1x128x128xf32, #tpu.memory_space<vmem>>, vector<1x128x128xf32>
    %365 = vector.shape_cast %364 : vector<1x128x128xf32> to vector<128x128xf32>
    %cst_213 = arith.constant dense<0.000000e+00> : vector<8x128xf32>
    %366 = tpu.matmul %362, %365, %cst_213 {dimension_numbers = #tpu.dot_dimension_numbers<[1], [0], [0], [1], [0, 0, 1, 1], [], []>} : vector<8x128xf32>, vector<128x128xf32>, vector<8x128xf32> -> vector<8x128xf32>
    %367 = arith.addf %348, %366 : vector<8x128xf32>
    %cst_214 = arith.constant 0.000000e+00 : f32
    %368 = vector.broadcast %cst_214 : f32 to vector<8x128xf32>
    %369 = arith.cmpf ogt, %367, %368 : vector<8x128xf32>
    %370 = math.exp %367 : vector<8x128xf32>
    %cst_215 = arith.constant 1.000000e+00 : f32
    %371 = vector.broadcast %cst_215 : f32 to vector<8x128xf32>
    %372 = arith.subf %370, %371 : vector<8x128xf32>
    %373 = arith.select %369, %367, %372 : vector<8x128xi1>, vector<8x128xf32>
    %c0_216 = arith.constant 0 : index
    %c0_217 = arith.constant 0 : index
    %374 = vector.load %arg3[%c0_216, %c0_217] : memref<128x128xf32, #tpu.memory_space<vmem>>, vector<128x128xf32>
    %cst_218 = arith.constant dense<0.000000e+00> : vector<8x128xf32>
    %375 = tpu.matmul %373, %374, %cst_218 {dimension_numbers = #tpu.dot_dimension_numbers<[1], [0], [0], [1], [0, 0, 1, 1], [], []>} : vector<8x128xf32>, vector<128x128xf32>, vector<8x128xf32> -> vector<8x128xf32>
    %cst_219 = arith.constant 0.000000e+00 : f32
    %376 = vector.broadcast %cst_219 : f32 to vector<8x128xf32>
    %377 = arith.cmpf ogt, %375, %376 : vector<8x128xf32>
    %378 = math.exp %375 : vector<8x128xf32>
    %cst_220 = arith.constant 1.000000e+00 : f32
    %379 = vector.broadcast %cst_220 : f32 to vector<8x128xf32>
    %380 = arith.subf %378, %379 : vector<8x128xf32>
    %381 = arith.select %377, %375, %380 : vector<8x128xi1>, vector<8x128xf32>
    %382 = arith.addf %363, %381 : vector<8x128xf32>
    %c0_221 = arith.constant 0 : index
    %c0_222 = arith.constant 0 : index
    %c0_223 = arith.constant 0 : index
    %383 = vector.load %arg5[%c0_221, %c0_222, %c0_223] : memref<1x128x128xf32, #tpu.memory_space<vmem>>, vector<1x128x128xf32>
    %384 = vector.shape_cast %383 : vector<1x128x128xf32> to vector<128x128xf32>
    %cst_224 = arith.constant dense<0.000000e+00> : vector<8x128xf32>
    %385 = tpu.matmul %382, %384, %cst_224 {dimension_numbers = #tpu.dot_dimension_numbers<[1], [0], [0], [1], [0, 0, 1, 1], [], []>} : vector<8x128xf32>, vector<128x128xf32>, vector<8x128xf32> -> vector<8x128xf32>
    %386 = arith.addf %3, %385 : vector<8x128xf32>
    %c0_225 = arith.constant 0 : index
    %c0_226 = arith.constant 0 : index
    %387 = vector.load %arg7[%c0_225, %c0_226] : memref<8x128xf32, #tpu.memory_space<vmem>>, vector<8x128xf32>
    tpu.vector_store %arg7[%c0_225, %c0_226], %386 {strides = array<i32>} : memref<8x128xf32, #tpu.memory_space<vmem>>, vector<8x128xf32>,
    %c0_227 = arith.constant 0 : index
    %c0_228 = arith.constant 0 : index
    %c0_229 = arith.constant 0 : index
    %388 = vector.load %arg6[%c0_227, %c0_228, %c0_229] : memref<1x8x128xf32, #tpu.memory_space<vmem>>, vector<1x8x128xf32>
    %389 = vector.shape_cast %388 : vector<1x8x128xf32> to vector<8x128xf32>
    %390 = vector.shape_cast %386 : vector<8x128xf32> to vector<1x8x128xf32>
    tpu.vector_store %arg6[%c0_227, %c0_228, %c0_229], %390 {strides = array<i32>} : memref<1x8x128xf32, #tpu.memory_space<vmem>>, vector<1x8x128xf32>,
    return
  }
  func.func @transform_0(%arg0: i32) -> (i32, i32) {
    %c0_i32 = arith.constant 0 : i32
    %c0_i32_0 = arith.constant 0 : i32
    %c0_i32_1 = arith.constant 0 : i32
    return %c0_i32, %c0_i32_0 : i32, i32
  }
  func.func @transform_1(%arg0: i32) -> (i32, i32) {
    %c0_i32 = arith.constant 0 : i32
    %c0_i32_0 = arith.constant 0 : i32
    %c0_i32_1 = arith.constant 0 : i32
    return %c0_i32, %c0_i32_0 : i32, i32
  }
  func.func @transform_2(%arg0: i32) -> (i32, i32) {
    %c0_i32 = arith.constant 0 : i32
    %c0_i32_0 = arith.constant 0 : i32
    %c0_i32_1 = arith.constant 0 : i32
    return %c0_i32, %c0_i32_0 : i32, i32
  }
  func.func @transform_3(%arg0: i32) -> (i32, i32, i32) {
    %c0_i32 = arith.constant 0 : i32
    %c0_i32_0 = arith.constant 0 : i32
    %c0_i32_1 = arith.constant 0 : i32
    return %arg0, %c0_i32, %c0_i32_0 : i32, i32, i32
  }
  func.func @transform_4(%arg0: i32) -> (i32, i32, i32) {
    %c0_i32 = arith.constant 0 : i32
    %c0_i32_0 = arith.constant 0 : i32
    %c0_i32_1 = arith.constant 0 : i32
    return %arg0, %c0_i32, %c0_i32_0 : i32, i32, i32
  }
  func.func @transform_5(%arg0: i32) -> (i32, i32, i32) {
    %c0_i32 = arith.constant 0 : i32
    %c0_i32_0 = arith.constant 0 : i32
    %c0_i32_1 = arith.constant 0 : i32
    return %arg0, %c0_i32, %c0_i32_0 : i32, i32, i32
  }
}

</mosaic_0001>

<llo_original>
// kernel: tpu_custom_call.1
$region0: #{tpu_custom_call.1}
  #allocation0 [shape = 'u32[]', space=smem, size = 0x4, offset = 0x4, fixed_abs, tag = 'smem constant byte address 0x4 - core index']
  #allocation1 [shape = 'u32[144,128]{1,0:T(1,128)}', space=vmem, size = 0x12000, scoped, tag = 'internal scratch']
  #allocation2 [shape = 'f32[8,128]{1,0:T(8,128)}', space=vmem, size = 0x1000, scoped, tag = 'scratch operand']
  %s0 = inlined_call_operand.hbm [shape: f32[8,128], index: 0, kind: input, shape index: {}]
  %s1 = inlined_call_operand.hbm [shape: f32[128,128], index: 1, kind: input, shape index: {}]
  %s2 = inlined_call_operand.hbm [shape: f32[128,128], index: 2, kind: input, shape index: {}]
  %s3 = inlined_call_operand.hbm [shape: f32[1,128,128], index: 3, kind: input, shape index: {}]
  %s4 = inlined_call_operand.hbm [shape: f32[1,128,128], index: 4, kind: input, shape index: {}]
  %s5 = inlined_call_operand.hbm [shape: f32[1,8,128], index: 5, kind: output, shape index: {}]
  %s6 = sld [smem:[#allocation0]]
  $region54: #{tpu_custom_call.1} parent=0
    _
  %s8 = ssub.s32 1, %s6
  %s9 = scalar_select 0, %s8, %s6
  $region1: #{tpu_custom_call.1} parent=0
    #allocation3 [shape = 'u8[4096]{0}', space=vmem, size = 0x1000, scoped, tag = 'input window, operand 0, single buffered']
    #allocation4 [shape = 's32[1]{0}', space=sflag, size = 0x4, scoped, tag = 'scoped memory for tpu_custom_call.1']
    #allocation5 [shape = 's32[1]{0}', space=sflag, size = 0x4, scoped, tag = 'scoped memory for tpu_custom_call.1']
    #allocation6 [shape = 'u8[65536]{0}', space=vmem, size = 0x10000, scoped, tag = 'input window, operand 1, single buffered']
    #allocation7 [shape = 's32[1]{0}', space=sflag, size = 0x4, scoped, tag = 'scoped memory for tpu_custom_call.1']
    #allocation8 [shape = 'u8[65536]{0}', space=vmem, size = 0x10000, scoped, tag = 'input window, operand 2, single buffered']
    #allocation9 [shape = 'u8[65536]{0}', space=vmem, size = 0x10000, scoped, tag = 'input window, operand 3, single buffered']
    #allocation10 [shape = 's32[1]{0}', space=sflag, size = 0x4, scoped, tag = 'scoped memory for tpu_custom_call.1']
    #allocation11 [shape = 'u8[65536]{0}', space=vmem, size = 0x10000, scoped, tag = 'input window, operand 4, single buffered']
    #allocation12 [shape = 'u8[4096]{0}', space=vmem, size = 0x1000, scoped, tag = 'output window, operand 0, single buffered']
    %10 = vsyncpa [#allocation4], 0
    %11 = vsyncpa [#allocation7], 0
    %12 = vsyncpa [#allocation10], 0
    %13 = vsyncpa [#allocation5], 0
    // Predicated region
    $region2: #{tpu_custom_call.1} parent=1 // pred_check
      _
    $region3: #{tpu_custom_call.1} parent=1 // pred_check_branch
      %15 = sbr.rel (0) target = $region5
    $region4: #{tpu_custom_call.1} parent=1 // pred_region
      %s17 = ssub.s32 128, 128
      %18 = vsyncadd [#allocation4], %s17
      %s20 = sshll.u32 [#allocation3], 4
      %s21 = int_to_ptr.vmem [resolvable:$true] %s20
      %23 = dma.hbm_to_vmem [thread:$0]  %s0, 128, %s21, [#allocation4]
    $region5: #{tpu_custom_call.1} parent=1 // pred_fallthru
      _
    // Predicated region
    $region6: #{tpu_custom_call.1} parent=1 // pred_check
      _
    $region7: #{tpu_custom_call.1} parent=1 // pred_check_branch
      %25 = sbr.rel (0) target = $region9
    $region8: #{tpu_custom_call.1} parent=1 // pred_region
      %s27 = ssub.s32 2048, 2048
      %28 = vsyncadd [#allocation7], %s27
      %s29 = sshll.u32 [#allocation6], 4
      %s30 = int_to_ptr.vmem [resolvable:$true] %s29
      %35 = dma.hbm_to_vmem [thread:$0]  %s1, 2048, %s30, [#allocation7], 128, 128, 8
    $region9: #{tpu_custom_call.1} parent=1 // pred_fallthru
      _
    // Predicated region
    $region10: #{tpu_custom_call.1} parent=1 // pred_check
      _
    $region11: #{tpu_custom_call.1} parent=1 // pred_check_branch
      %37 = sbr.rel (0) target = $region13
    $region12: #{tpu_custom_call.1} parent=1 // pred_region
      %s39 = ssub.s32 2048, 2048
      %40 = vsyncadd [#allocation7], %s39
      %s41 = sshll.u32 [#allocation8], 4
      %s42 = int_to_ptr.vmem [resolvable:$true] %s41
      %47 = dma.hbm_to_vmem [thread:$0]  %s2, 2048, %s42, [#allocation7], 128, 128, 8
    $region13: #{tpu_custom_call.1} parent=1 // pred_fallthru
      _
    // Predicated region
    $region14: #{tpu_custom_call.1} parent=1 // pred_check
      _
    $region15: #{tpu_custom_call.1} parent=1 // pred_check_branch
      %49 = sbr.rel (0) target = $region17
    $region16: #{tpu_custom_call.1} parent=1 // pred_region
      %s51 = ssub.s32 2048, 2048
      %52 = vsyncadd [#allocation10], %s51
      %s53 = sshll.u32 [#allocation9], 4
      %s54 = int_to_ptr.vmem [resolvable:$true] %s53
      %59 = dma.hbm_to_vmem [thread:$0]  %s3, 2048, %s54, [#allocation10], 128, 128, 8
    $region17: #{tpu_custom_call.1} parent=1 // pred_fallthru
      _
    // Predicated region
    $region18: #{tpu_custom_call.1} parent=1 // pred_check
      _
    $region19: #{tpu_custom_call.1} parent=1 // pred_check_branch
      %61 = sbr.rel (0) target = $region21
    $region20: #{tpu_custom_call.1} parent=1 // pred_region
      %s63 = ssub.s32 2048, 2048
      %64 = vsyncadd [#allocation10], %s63
      %s65 = sshll.u32 [#allocation11], 4
      %s66 = int_to_ptr.vmem [resolvable:$true] %s65
      %71 = dma.hbm_to_vmem [thread:$0]  %s4, 2048, %s66, [#allocation10], 128, 128, 8
    $region21: #{tpu_custom_call.1} parent=1 // pred_fallthru
      _
    // Predicated region
    $region22: #{tpu_custom_call.1} parent=1 // pred_check
      _
    $region23: #{tpu_custom_call.1} parent=1 // pred_check_branch
      %73 = sbr.rel (0) target = $region25
    $region24: #{tpu_custom_call.1} parent=1 // pred_region
      %74 = dma.done [#allocation4], 128
    $region25: #{tpu_custom_call.1} parent=1 // pred_fallthru
      _
    // Predicated region
    $region26: #{tpu_custom_call.1} parent=1 // pred_check
      _
    $region27: #{tpu_custom_call.1} parent=1 // pred_check_branch
      %76 = sbr.rel (0) target = $region29
    $region28: #{tpu_custom_call.1} parent=1 // pred_region
      %77 = dma.done [#allocation7], 2048
    $region29: #{tpu_custom_call.1} parent=1 // pred_fallthru
      _
    // Predicated region
    $region30: #{tpu_custom_call.1} parent=1 // pred_check
      _
    $region31: #{tpu_custom_call.1} parent=1 // pred_check_branch
      %79 = sbr.rel (0) target = $region33
    $region32: #{tpu_custom_call.1} parent=1 // pred_region
      %80 = dma.done [#allocation7], 2048
    $region33: #{tpu_custom_call.1} parent=1 // pred_fallthru
      _
    // Predicated region
    $region34: #{tpu_custom_call.1} parent=1 // pred_check
      _
    $region35: #{tpu_custom_call.1} parent=1 // pred_check_branch
      %82 = sbr.rel (0) target = $region37
    $region36: #{tpu_custom_call.1} parent=1 // pred_region
      %83 = dma.done [#allocation10], 2048
    $region37: #{tpu_custom_call.1} parent=1 // pred_fallthru
      _
    // Predicated region
    $region38: #{tpu_custom_call.1} parent=1 // pred_check
      _
    $region39: #{tpu_custom_call.1} parent=1 // pred_check_branch
      %85 = sbr.rel (0) target = $region41
    $region40: #{tpu_custom_call.1} parent=1 // pred_region
      %86 = dma.done [#allocation10], 2048
    $region41: #{tpu_custom_call.1} parent=1 // pred_fallthru
      _
    %p87 = scmp.eq.s32.totalorder 0, 0
    // Predicated region
    $region42: #{tpu_custom_call.1} parent=1 // pred_check
      %p88 = pneg %p87
    $region43: #{tpu_custom_call.1} parent=1 // pred_check_branch
      %90 = sbr.rel (%p88) target = $region45
    $region44: #{tpu_custom_call.1} parent=1 // pred_region
      %v91 = vld [vmem:[#allocation3] sm:$0xff]
      %92 = vst [vmem:[#allocation2] sm:$0xff] %v91
    $region45: #{tpu_custom_call.1} parent=1 // pred_fallthru
      _
    %v93 = vld [vmem:[#allocation2] sm:$0xff]
    %v94 = vld [vmem:[#allocation6] sm:$0xff]
    %v95 = vld [vmem:[#allocation6 + $0x8] sm:$0xff]
    %v96 = vld [vmem:[#allocation6 + $0x10] sm:$0xff]
    %v97 = vld [vmem:[#allocation6 + $0x18] sm:$0xff]
    %v98 = vld [vmem:[#allocation6 + $0x20] sm:$0xff]
    %v99 = vld [vmem:[#allocation6 + $0x28] sm:$0xff]
    %v100 = vld [vmem:[#allocation6 + $0x30] sm:$0xff]
    %v101 = vld [vmem:[#allocation6 + $0x38] sm:$0xff]
    %v102 = vld [vmem:[#allocation6 + $0x40] sm:$0xff]
    %v103 = vld [vmem:[#allocation6 + $0x48] sm:$0xff]
    %v104 = vld [vmem:[#allocation6 + $0x50] sm:$0xff]
    %v105 = vld [vmem:[#allocation6 + $0x58] sm:$0xff]
    %v106 = vld [vmem:[#allocation6 + $0x60] sm:$0xff]
    %v107 = vld [vmem:[#allocation6 + $0x68] sm:$0xff]
    %v108 = vld [vmem:[#allocation6 + $0x70] sm:$0xff]
    %v109 = vld [vmem:[#allocation6 + $0x78] sm:$0xff]
    %110 = vmatprep.subr.mxu0 0.0
    %111 = vmatpush1.msra.mxu0 %v94
    %112 = vmatprep.subr.mxu0 0.0
    %113 = vmatpush1.msra.mxu0 %v95
    %114 = vmatprep.subr.mxu0 0.0
    %115 = vmatpush1.msra.mxu0 %v96
    %116 = vmatprep.subr.mxu0 0.0
    %117 = vmatpush1.msra.mxu0 %v97
    %118 = vmatprep.subr.mxu0 0.0
    %119 = vmatpush1.msra.mxu0 %v98
    %120 = vmatprep.subr.mxu0 0.0
    %121 = vmatpush1.msra.mxu0 %v99
    %122 = vmatprep.subr.mxu0 0.0
    %123 = vmatpush1.msra.mxu0 %v100
    %124 = vmatprep.subr.mxu0 0.0
    %125 = vmatpush1.msra.mxu0 %v101
    %126 = vmatprep.subr.mxu0 0.0
    %127 = vmatpush1.msra.mxu0 %v102
    %128 = vmatprep.subr.mxu0 0.0
    %129 = vmatpush1.msra.mxu0 %v103
    %130 = vmatprep.subr.mxu0 0.0
    %131 = vmatpush1.msra.mxu0 %v104
    %132 = vmatprep.subr.mxu0 0.0
    %133 = vmatpush1.msra.mxu0 %v105
    %134 = vmatprep.subr.mxu0 0.0
    %135 = vmatpush1.msra.mxu0 %v106
    %136 = vmatprep.subr.mxu0 0.0
    %137 = vmatpush1.msra.mxu0 %v107
    %138 = vmatprep.subr.mxu0 0.0
    %139 = vmatpush1.msra.mxu0 %v108
    %140 = vmatprep.subr.mxu0 0.0
    %141 = vmatpush1.msra.mxu0 %v109
    %142 = vmatprep.subr.mxu0 0.0
    %143 = vmatpush1.msra.mxu0 0.0
    %144 = vmatprep.subr.mxu0 0.0
    %145 = vmatpush1.msra.mxu0 0.0
    %146 = vmatprep.subr.mxu0 0.0
    %147 = vmatpush1.msra.mxu0 0.0
    %148 = vmatprep.subr.mxu0 0.0
    %149 = vmatpush1.msra.mxu0 0.0
    %150 = vmatprep.subr.mxu0 0.0
    %151 = vmatpush1.msra.mxu0 0.0
    %152 = vmatprep.subr.mxu0 0.0
    %153 = vmatpush1.msra.mxu0 0.0
    %154 = vmatprep.subr.mxu0 0.0
    %155 = vmatpush1.msra.mxu0 0.0
    %156 = vmatprep.subr.mxu0 0.0
    %157 = vmatpush1.msra.mxu0 0.0
    %158 = vmatprep.subr.mxu0 0.0
    %159 = vmatpush1.msra.mxu0 0.0
    %160 = vmatprep.subr.mxu0 0.0
    %161 = vmatpush1.msra.mxu0 0.0
    %162 = vmatprep.subr.mxu0 0.0
    %163 = vmatpush1.msra.mxu0 0.0
    %164 = vmatprep.subr.mxu0 0.0
    %165 = vmatpush1.msra.mxu0 0.0
    %166 = vmatprep.subr.mxu0 0.0
    %167 = vmatpush1.msra.mxu0 0.0
    %168 = vmatprep.subr.mxu0 0.0
    %169 = vmatpush1.msra.mxu0 0.0
    %170 = vmatprep.subr.mxu0 0.0
    %171 = vmatpush1.msra.mxu0 0.0
    %172 = vmatprep.subr.mxu0 0.0
    %173 = vmatpush1.msra.mxu0 0.0
    %174 = vmatprep.mubr.f32.mxu0 0.0
    %175 = vmatmul.mubr.f32.gmra.mrb[0].mxu0 %v93
    %v176 = vpop.f32.mrb[0].mxu0
    %v177 = vadd.f32 0.0, %v176
    %v178 = vpop.f32.mrb[0].mxu0
    %179 = vdwg.mxu0
    %vm180 = vcmp.gt.f32.partialorder %v177, 0.0
    %v181 = vmul.f32 %v177, 1.442695
    %v182 = vpow.pop %v181
    %v183 = vsub.f32 %v182, 1.0
    %v184 = vsel %vm180, %v177, %v183
    %v185 = vld [vmem:[#allocation8] sm:$0xff]
    %v186 = vld [vmem:[#allocation8 + $0x8] sm:$0xff]
    %v187 = vld [vmem:[#allocation8 + $0x10] sm:$0xff]
    %v188 = vld [vmem:[#allocation8 + $0x18] sm:$0xff]
    %v189 = vld [vmem:[#allocation8 + $0x20] sm:$0xff]
    %v190 = vld [vmem:[#allocation8 + $0x28] sm:$0xff]
    %v191 = vld [vmem:[#allocation8 + $0x30] sm:$0xff]
    %v192 = vld [vmem:[#allocation8 + $0x38] sm:$0xff]
    %v193 = vld [vmem:[#allocation8 + $0x40] sm:$0xff]
    %v194 = vld [vmem:[#allocation8 + $0x48] sm:$0xff]
    %v195 = vld [vmem:[#allocation8 + $0x50] sm:$0xff]
    %v196 = vld [vmem:[#allocation8 + $0x58] sm:$0xff]
    %v197 = vld [vmem:[#allocation8 + $0x60] sm:$0xff]
    %v198 = vld [vmem:[#allocation8 + $0x68] sm:$0xff]
    %v199 = vld [vmem:[#allocation8 + $0x70] sm:$0xff]
    %v200 = vld [vmem:[#allocation8 + $0x78] sm:$0xff]
    %201 = vmatprep.subr.mxu0 0.0
    %202 = vmatpush1.msra.mxu0 %v185
    %203 = vmatprep.subr.mxu0 0.0
    %204 = vmatpush1.msra.mxu0 %v186
    %205 = vmatprep.subr.mxu0 0.0
    %206 = vmatpush1.msra.mxu0 %v187
    %207 = vmatprep.subr.mxu0 0.0
    %208 = vmatpush1.msra.mxu0 %v188
    %209 = vmatprep.subr.mxu0 0.0
    %210 = vmatpush1.msra.mxu0 %v189
    %211 = vmatprep.subr.mxu0 0.0
    %212 = vmatpush1.msra.mxu0 %v190
    %213 = vmatprep.subr.mxu0 0.0
    %214 = vmatpush1.msra.mxu0 %v191
    %215 = vmatprep.subr.mxu0 0.0
    %216 = vmatpush1.msra.mxu0 %v192
    %217 = vmatprep.subr.mxu0 0.0
    %218 = vmatpush1.msra.mxu0 %v193
    %219 = vmatprep.subr.mxu0 0.0
    %220 = vmatpush1.msra.mxu0 %v194
    %221 = vmatprep.subr.mxu0 0.0
    %222 = vmatpush1.msra.mxu0 %v195
    %223 = vmatprep.subr.mxu0 0.0
    %224 = vmatpush1.msra.mxu0 %v196
    %225 = vmatprep.subr.mxu0 0.0
    %226 = vmatpush1.msra.mxu0 %v197
    %227 = vmatprep.subr.mxu0 0.0
    %228 = vmatpush1.msra.mxu0 %v198
    %229 = vmatprep.subr.mxu0 0.0
    %230 = vmatpush1.msra.mxu0 %v199
    %231 = vmatprep.subr.mxu0 0.0
    %232 = vmatpush1.msra.mxu0 %v200
    %233 = vmatprep.subr.mxu0 0.0
    %234 = vmatpush1.msra.mxu0 0.0
    %235 = vmatprep.subr.mxu0 0.0
    %236 = vmatpush1.msra.mxu0 0.0
    %237 = vmatprep.subr.mxu0 0.0
    %238 = vmatpush1.msra.mxu0 0.0
    %239 = vmatprep.subr.mxu0 0.0
    %240 = vmatpush1.msra.mxu0 0.0
    %241 = vmatprep.subr.mxu0 0.0
    %242 = vmatpush1.msra.mxu0 0.0
    %243 = vmatprep.subr.mxu0 0.0
    %244 = vmatpush1.msra.mxu0 0.0
    %245 = vmatprep.subr.mxu0 0.0
    %246 = vmatpush1.msra.mxu0 0.0
    %247 = vmatprep.subr.mxu0 0.0
    %248 = vmatpush1.msra.mxu0 0.0
    %249 = vmatprep.subr.mxu0 0.0
    %250 = vmatpush1.msra.mxu0 0.0
    %251 = vmatprep.subr.mxu0 0.0
    %252 = vmatpush1.msra.mxu0 0.0
    %253 = vmatprep.subr.mxu0 0.0
    %254 = vmatpush1.msra.mxu0 0.0
    %255 = vmatprep.subr.mxu0 0.0
    %256 = vmatpush1.msra.mxu0 0.0
    %257 = vmatprep.subr.mxu0 0.0
    %258 = vmatpush1.msra.mxu0 0.0
    %259 = vmatprep.subr.mxu0 0.0
    %260 = vmatpush1.msra.mxu0 0.0
    %261 = vmatprep.subr.mxu0 0.0
    %262 = vmatpush1.msra.mxu0 0.0
    %263 = vmatprep.subr.mxu0 0.0
    %264 = vmatpush1.msra.mxu0 0.0
    %265 = vmatprep.mubr.f32.mxu0 0.0
    %266 = vmatmul.mubr.f32.gmra.mrb[0].mxu0 %v184
    %v267 = vpop.f32.mrb[0].mxu0
    %v268 = vadd.f32 0.0, %v267
    %v269 = vpop.f32.mrb[0].mxu0
    %270 = vdwg.mxu0
    %vm271 = vcmp.gt.f32.partialorder %v268, 0.0
    %v272 = vmul.f32 %v268, 1.442695
    %v273 = vpow.pop %v272
    %v274 = vsub.f32 %v273, 1.0
    %v275 = vsel %vm271, %v268, %v274
    %v276 = vadd.f32 %v275, 0.0
    %v277 = vld [vmem:[#allocation9] sm:$0xff]
    %v278 = vld [vmem:[#allocation9 + $0x8] sm:$0xff]
    %v279 = vld [vmem:[#allocation9 + $0x10] sm:$0xff]
    %v280 = vld [vmem:[#allocation9 + $0x18] sm:$0xff]
    %v281 = vld [vmem:[#allocation9 + $0x20] sm:$0xff]
    %v282 = vld [vmem:[#allocation9 + $0x28] sm:$0xff]
    %v283 = vld [vmem:[#allocation9 + $0x30] sm:$0xff]
    %v284 = vld [vmem:[#allocation9 + $0x38] sm:$0xff]
    %v285 = vld [vmem:[#allocation9 + $0x40] sm:$0xff]
    %v286 = vld [vmem:[#allocation9 + $0x48] sm:$0xff]
    %v287 = vld [vmem:[#allocation9 + $0x50] sm:$0xff]
    %v288 = vld [vmem:[#allocation9 + $0x58] sm:$0xff]
    %v289 = vld [vmem:[#allocation9 + $0x60] sm:$0xff]
    %v290 = vld [vmem:[#allocation9 + $0x68] sm:$0xff]
    %v291 = vld [vmem:[#allocation9 + $0x70] sm:$0xff]
    %v292 = vld [vmem:[#allocation9 + $0x78] sm:$0xff]
    %293 = vmatprep.subr.mxu0 0.0
    %294 = vmatpush1.msra.mxu0 %v277
    %295 = vmatprep.subr.mxu0 0.0
    %296 = vmatpush1.msra.mxu0 %v278
    %297 = vmatprep.subr.mxu0 0.0
    %298 = vmatpush1.msra.mxu0 %v279
    %299 = vmatprep.subr.mxu0 0.0
    %300 = vmatpush1.msra.mxu0 %v280
    %301 = vmatprep.subr.mxu0 0.0
    %302 = vmatpush1.msra.mxu0 %v281
    %303 = vmatprep.subr.mxu0 0.0
    %304 = vmatpush1.msra.mxu0 %v282
    %305 = vmatprep.subr.mxu0 0.0
    %306 = vmatpush1.msra.mxu0 %v283
    %307 = vmatprep.subr.mxu0 0.0
    %308 = vmatpush1.msra.mxu0 %v284
    %309 = vmatprep.subr.mxu0 0.0
    %310 = vmatpush1.msra.mxu0 %v285
    %311 = vmatprep.subr.mxu0 0.0
    %312 = vmatpush1.msra.mxu0 %v286
    %313 = vmatprep.subr.mxu0 0.0
    %314 = vmatpush1.msra.mxu0 %v287
    %315 = vmatprep.subr.mxu0 0.0
    %316 = vmatpush1.msra.mxu0 %v288
    %317 = vmatprep.subr.mxu0 0.0
    %318 = vmatpush1.msra.mxu0 %v289
    %319 = vmatprep.subr.mxu0 0.0
    %320 = vmatpush1.msra.mxu0 %v290
    %321 = vmatprep.subr.mxu0 0.0
    %322 = vmatpush1.msra.mxu0 %v291
    %323 = vmatprep.subr.mxu0 0.0
    %324 = vmatpush1.msra.mxu0 %v292
    %325 = vmatprep.subr.mxu0 0.0
    %326 = vmatpush1.msra.mxu0 0.0
    %327 = vmatprep.subr.mxu0 0.0
    %328 = vmatpush1.msra.mxu0 0.0
    %329 = vmatprep.subr.mxu0 0.0
    %330 = vmatpush1.msra.mxu0 0.0
    %331 = vmatprep.subr.mxu0 0.0
    %332 = vmatpush1.msra.mxu0 0.0
    %333 = vmatprep.subr.mxu0 0.0
    %334 = vmatpush1.msra.mxu0 0.0
    %335 = vmatprep.subr.mxu0 0.0
    %336 = vmatpush1.msra.mxu0 0.0
    %337 = vmatprep.subr.mxu0 0.0
    %338 = vmatpush1.msra.mxu0 0.0
    %339 = vmatprep.subr.mxu0 0.0
    %340 = vmatpush1.msra.mxu0 0.0
    %341 = vmatprep.subr.mxu0 0.0
    %342 = vmatpush1.msra.mxu0 0.0
    %343 = vmatprep.subr.mxu0 0.0
    %344 = vmatpush1.msra.mxu0 0.0
    %345 = vmatprep.subr.mxu0 0.0
    %346 = vmatpush1.msra.mxu0 0.0
    %347 = vmatprep.subr.mxu0 0.0
    %348 = vmatpush1.msra.mxu0 0.0
    %349 = vmatprep.subr.mxu0 0.0
    %350 = vmatpush1.msra.mxu0 0.0
    %351 = vmatprep.subr.mxu0 0.0
    %352 = vmatpush1.msra.mxu0 0.0
    %353 = vmatprep.subr.mxu0 0.0
    %354 = vmatpush1.msra.mxu0 0.0
    %355 = vmatprep.subr.mxu0 0.0
    %356 = vmatpush1.msra.mxu0 0.0
    %357 = vmatprep.mubr.f32.mxu0 0.0
    %358 = vmatmul.mubr.f32.gmra.mrb[0].mxu0 %v275
    %v359 = vpop.f32.mrb[0].mxu0
    %v360 = vadd.f32 0.0, %v359
    %v361 = vpop.f32.mrb[0].mxu0
    %362 = vdwg.mxu0
    %v363 = vadd.f32 %v177, %v360
    %vm364 = vcmp.gt.f32.partialorder %v363, 0.0
    %v365 = vmul.f32 %v363, 1.442695
    %v366 = vpow.pop %v365
    %v367 = vsub.f32 %v366, 1.0
    %v368 = vsel %vm364, %v363, %v367
    %369 = vmatprep.subr.mxu0 0.0
    %370 = vmatpush1.msra.mxu0 %v185
    %371 = vmatprep.subr.mxu0 0.0
    %372 = vmatpush1.msra.mxu0 %v186
    %373 = vmatprep.subr.mxu0 0.0
    %374 = vmatpush1.msra.mxu0 %v187
    %375 = vmatprep.subr.mxu0 0.0
    %376 = vmatpush1.msra.mxu0 %v188
    %377 = vmatprep.subr.mxu0 0.0
    %378 = vmatpush1.msra.mxu0 %v189
    %379 = vmatprep.subr.mxu0 0.0
    %380 = vmatpush1.msra.mxu0 %v190
    %381 = vmatprep.subr.mxu0 0.0
    %382 = vmatpush1.msra.mxu0 %v191
    %383 = vmatprep.subr.mxu0 0.0
    %384 = vmatpush1.msra.mxu0 %v192
    %385 = vmatprep.subr.mxu0 0.0
    %386 = vmatpush1.msra.mxu0 %v193
    %387 = vmatprep.subr.mxu0 0.0
    %388 = vmatpush1.msra.mxu0 %v194
    %389 = vmatprep.subr.mxu0 0.0
    %390 = vmatpush1.msra.mxu0 %v195
    %391 = vmatprep.subr.mxu0 0.0
    %392 = vmatpush1.msra.mxu0 %v196
    %393 = vmatprep.subr.mxu0 0.0
    %394 = vmatpush1.msra.mxu0 %v197
    %395 = vmatprep.subr.mxu0 0.0
    %396 = vmatpush1.msra.mxu0 %v198
    %397 = vmatprep.subr.mxu0 0.0
    %398 = vmatpush1.msra.mxu0 %v199
    %399 = vmatprep.subr.mxu0 0.0
    %400 = vmatpush1.msra.mxu0 %v200
    %401 = vmatprep.subr.mxu0 0.0
    %402 = vmatpush1.msra.mxu0 0.0
    %403 = vmatprep.subr.mxu0 0.0
    %404 = vmatpush1.msra.mxu0 0.0
    %405 = vmatprep.subr.mxu0 0.0
    %406 = vmatpush1.msra.mxu0 0.0
    %407 = vmatprep.subr.mxu0 0.0
    %408 = vmatpush1.msra.mxu0 0.0
    %409 = vmatprep.subr.mxu0 0.0
    %410 = vmatpush1.msra.mxu0 0.0
    %411 = vmatprep.subr.mxu0 0.0
    %412 = vmatpush1.msra.mxu0 0.0
    %413 = vmatprep.subr.mxu0 0.0
    %414 = vmatpush1.msra.mxu0 0.0
    %415 = vmatprep.subr.mxu0 0.0
    %416 = vmatpush1.msra.mxu0 0.0
    %417 = vmatprep.subr.mxu0 0.0
    %418 = vmatpush1.msra.mxu0 0.0
    %419 = vmatprep.subr.mxu0 0.0
    %420 = vmatpush1.msra.mxu0 0.0
    %421 = vmatprep.subr.mxu0 0.0
    %422 = vmatpush1.msra.mxu0 0.0
    %423 = vmatprep.subr.mxu0 0.0
    %424 = vmatpush1.msra.mxu0 0.0
    %425 = vmatprep.subr.mxu0 0.0
    %426 = vmatpush1.msra.mxu0 0.0
    %427 = vmatprep.subr.mxu0 0.0
    %428 = vmatpush1.msra.mxu0 0.0
    %429 = vmatprep.subr.mxu0 0.0
    %430 = vmatpush1.msra.mxu0 0.0
    %431 = vmatprep.subr.mxu0 0.0
    %432 = vmatpush1.msra.mxu0 0.0
    %433 = vmatprep.mubr.f32.mxu0 0.0
    %434 = vmatmul.mubr.f32.gmra.mrb[0].mxu0 %v368
    %v435 = vpop.f32.mrb[0].mxu0
    %v436 = vadd.f32 0.0, %v435
    %v437 = vpop.f32.mrb[0].mxu0
    %438 = vdwg.mxu0
    %vm439 = vcmp.gt.f32.partialorder %v436, 0.0
    %v440 = vmul.f32 %v436, 1.442695
    %v441 = vpow.pop %v440
    %v442 = vsub.f32 %v441, 1.0
    %v443 = vsel %vm439, %v436, %v442
    %v444 = vadd.f32 %v276, %v443
    %445 = vmatprep.subr.mxu0 0.0
    %446 = vmatpush1.msra.mxu0 %v277
    %447 = vmatprep.subr.mxu0 0.0
    %448 = vmatpush1.msra.mxu0 %v278
    %449 = vmatprep.subr.mxu0 0.0
    %450 = vmatpush1.msra.mxu0 %v279
    %451 = vmatprep.subr.mxu0 0.0
    %452 = vmatpush1.msra.mxu0 %v280
    %453 = vmatprep.subr.mxu0 0.0
    %454 = vmatpush1.msra.mxu0 %v281
    %455 = vmatprep.subr.mxu0 0.0
    %456 = vmatpush1.msra.mxu0 %v282
    %457 = vmatprep.subr.mxu0 0.0
    %458 = vmatpush1.msra.mxu0 %v283
    %459 = vmatprep.subr.mxu0 0.0
    %460 = vmatpush1.msra.mxu0 %v284
    %461 = vmatprep.subr.mxu0 0.0
    %462 = vmatpush1.msra.mxu0 %v285
    %463 = vmatprep.subr.mxu0 0.0
    %464 = vmatpush1.msra.mxu0 %v286
    %465 = vmatprep.subr.mxu0 0.0
    %466 = vmatpush1.msra.mxu0 %v287
    %467 = vmatprep.subr.mxu0 0.0
    %468 = vmatpush1.msra.mxu0 %v288
    %469 = vmatprep.subr.mxu0 0.0
    %470 = vmatpush1.msra.mxu0 %v289
    %471 = vmatprep.subr.mxu0 0.0
    %472 = vmatpush1.msra.mxu0 %v290
    %473 = vmatprep.subr.mxu0 0.0
    %474 = vmatpush1.msra.mxu0 %v291
    %475 = vmatprep.subr.mxu0 0.0
    %476 = vmatpush1.msra.mxu0 %v292
    %477 = vmatprep.subr.mxu0 0.0
    %478 = vmatpush1.msra.mxu0 0.0
    %479 = vmatprep.subr.mxu0 0.0
    %480 = vmatpush1.msra.mxu0 0.0
    %481 = vmatprep.subr.mxu0 0.0
    %482 = vmatpush1.msra.mxu0 0.0
    %483 = vmatprep.subr.mxu0 0.0
    %484 = vmatpush1.msra.mxu0 0.0
    %485 = vmatprep.subr.mxu0 0.0
    %486 = vmatpush1.msra.mxu0 0.0
    %487 = vmatprep.subr.mxu0 0.0
    %488 = vmatpush1.msra.mxu0 0.0
    %489 = vmatprep.subr.mxu0 0.0
    %490 = vmatpush1.msra.mxu0 0.0
    %491 = vmatprep.subr.mxu0 0.0
    %492 = vmatpush1.msra.mxu0 0.0
    %493 = vmatprep.subr.mxu0 0.0
    %494 = vmatpush1.msra.mxu0 0.0
    %495 = vmatprep.subr.mxu0 0.0
    %496 = vmatpush1.msra.mxu0 0.0
    %497 = vmatprep.subr.mxu0 0.0
    %498 = vmatpush1.msra.mxu0 0.0
    %499 = vmatprep.subr.mxu0 0.0
    %500 = vmatpush1.msra.mxu0 0.0
    %501 = vmatprep.subr.mxu0 0.0
    %502 = vmatpush1.msra.mxu0 0.0
    %503 = vmatprep.subr.mxu0 0.0
    %504 = vmatpush1.msra.mxu0 0.0
    %505 = vmatprep.subr.mxu0 0.0
    %506 = vmatpush1.msra.mxu0 0.0
    %507 = vmatprep.subr.mxu0 0.0
    %508 = vmatpush1.msra.mxu0 0.0
    %509 = vmatprep.mubr.f32.mxu0 0.0
    %510 = vmatmul.mubr.f32.gmra.mrb[0].mxu0 %v443
    %v511 = vpop.f32.mrb[0].mxu0
    %v512 = vadd.f32 0.0, %v511
    %v513 = vpop.f32.mrb[0].mxu0
    %514 = vdwg.mxu0
    %v515 = vadd.f32 %v363, %v512
    %vm516 = vcmp.gt.f32.partialorder %v515, 0.0
    %v517 = vmul.f32 %v515, 1.442695
    %v518 = vpow.pop %v517
    %v519 = vsub.f32 %v518, 1.0
    %v520 = vsel %vm516, %v515, %v519
    %521 = vmatprep.subr.mxu0 0.0
    %522 = vmatpush1.msra.mxu0 %v185
    %523 = vmatprep.subr.mxu0 0.0
    %524 = vmatpush1.msra.mxu0 %v186
    %525 = vmatprep.subr.mxu0 0.0
    %526 = vmatpush1.msra.mxu0 %v187
    %527 = vmatprep.subr.mxu0 0.0
    %528 = vmatpush1.msra.mxu0 %v188
    %529 = vmatprep.subr.mxu0 0.0
    %530 = vmatpush1.msra.mxu0 %v189
    %531 = vmatprep.subr.mxu0 0.0
    %532 = vmatpush1.msra.mxu0 %v190
    %533 = vmatprep.subr.mxu0 0.0
    %534 = vmatpush1.msra.mxu0 %v191
    %535 = vmatprep.subr.mxu0 0.0
    %536 = vmatpush1.msra.mxu0 %v192
    %537 = vmatprep.subr.mxu0 0.0
    %538 = vmatpush1.msra.mxu0 %v193
    %539 = vmatprep.subr.mxu0 0.0
    %540 = vmatpush1.msra.mxu0 %v194
    %541 = vmatprep.subr.mxu0 0.0
    %542 = vmatpush1.msra.mxu0 %v195
    %543 = vmatprep.subr.mxu0 0.0
    %544 = vmatpush1.msra.mxu0 %v196
    %545 = vmatprep.subr.mxu0 0.0
    %546 = vmatpush1.msra.mxu0 %v197
    %547 = vmatprep.subr.mxu0 0.0
    %548 = vmatpush1.msra.mxu0 %v198
    %549 = vmatprep.subr.mxu0 0.0
    %550 = vmatpush1.msra.mxu0 %v199
    %551 = vmatprep.subr.mxu0 0.0
    %552 = vmatpush1.msra.mxu0 %v200
    %553 = vmatprep.subr.mxu0 0.0
    %554 = vmatpush1.msra.mxu0 0.0
    %555 = vmatprep.subr.mxu0 0.0
    %556 = vmatpush1.msra.mxu0 0.0
    %557 = vmatprep.subr.mxu0 0.0
    %558 = vmatpush1.msra.mxu0 0.0
    %559 = vmatprep.subr.mxu0 0.0
    %560 = vmatpush1.msra.mxu0 0.0
    %561 = vmatprep.subr.mxu0 0.0
    %562 = vmatpush1.msra.mxu0 0.0
    %563 = vmatprep.subr.mxu0 0.0
    %564 = vmatpush1.msra.mxu0 0.0
    %565 = vmatprep.subr.mxu0 0.0
    %566 = vmatpush1.msra.mxu0 0.0
    %567 = vmatprep.subr.mxu0 0.0
    %568 = vmatpush1.msra.mxu0 0.0
    %569 = vmatprep.subr.mxu0 0.0
    %570 = vmatpush1.msra.mxu0 0.0
    %571 = vmatprep.subr.mxu0 0.0
    %572 = vmatpush1.msra.mxu0 0.0
    %573 = vmatprep.subr.mxu0 0.0
    %574 = vmatpush1.msra.mxu0 0.0
    %575 = vmatprep.subr.mxu0 0.0
    %576 = vmatpush1.msra.mxu0 0.0
    %577 = vmatprep.subr.mxu0 0.0
    %578 = vmatpush1.msra.mxu0 0.0
    %579 = vmatprep.subr.mxu0 0.0
    %580 = vmatpush1.msra.mxu0 0.0
    %581 = vmatprep.subr.mxu0 0.0
    %582 = vmatpush1.msra.mxu0 0.0
    %583 = vmatprep.subr.mxu0 0.0
    %584 = vmatpush1.msra.mxu0 0.0
    %585 = vmatprep.mubr.f32.mxu0 0.0
    %586 = vmatmul.mubr.f32.gmra.mrb[0].mxu0 %v520
    %v587 = vpop.f32.mrb[0].mxu0
    %v588 = vadd.f32 0.0, %v587
    %v589 = vpop.f32.mrb[0].mxu0
    %590 = vdwg.mxu0
    %vm591 = vcmp.gt.f32.partialorder %v588, 0.0
    %v592 = vmul.f32 %v588, 1.442695
    %v593 = vpow.pop %v592
    %v594 = vsub.f32 %v593, 1.0
    %v595 = vsel %vm591, %v588, %v594
    %v596 = vadd.f32 %v444, %v595
    %597 = vmatprep.subr.mxu0 0.0
    %598 = vmatpush1.msra.mxu0 %v277
    %599 = vmatprep.subr.mxu0 0.0
    %600 = vmatpush1.msra.mxu0 %v278
    %601 = vmatprep.subr.mxu0 0.0
    %602 = vmatpush1.msra.mxu0 %v279
    %603 = vmatprep.subr.mxu0 0.0
    %604 = vmatpush1.msra.mxu0 %v280
    %605 = vmatprep.subr.mxu0 0.0
    %606 = vmatpush1.msra.mxu0 %v281
    %607 = vmatprep.subr.mxu0 0.0
    %608 = vmatpush1.msra.mxu0 %v282
    %609 = vmatprep.subr.mxu0 0.0
    %610 = vmatpush1.msra.mxu0 %v283
    %611 = vmatprep.subr.mxu0 0.0
    %612 = vmatpush1.msra.mxu0 %v284
    %613 = vmatprep.subr.mxu0 0.0
    %614 = vmatpush1.msra.mxu0 %v285
    %615 = vmatprep.subr.mxu0 0.0
    %616 = vmatpush1.msra.mxu0 %v286
    %617 = vmatprep.subr.mxu0 0.0
    %618 = vmatpush1.msra.mxu0 %v287
    %619 = vmatprep.subr.mxu0 0.0
    %620 = vmatpush1.msra.mxu0 %v288
    %621 = vmatprep.subr.mxu0 0.0
    %622 = vmatpush1.msra.mxu0 %v289
    %623 = vmatprep.subr.mxu0 0.0
    %624 = vmatpush1.msra.mxu0 %v290
    %625 = vmatprep.subr.mxu0 0.0
    %626 = vmatpush1.msra.mxu0 %v291
    %627 = vmatprep.subr.mxu0 0.0
    %628 = vmatpush1.msra.mxu0 %v292
    %629 = vmatprep.subr.mxu0 0.0
    %630 = vmatpush1.msra.mxu0 0.0
    %631 = vmatprep.subr.mxu0 0.0
    %632 = vmatpush1.msra.mxu0 0.0
    %633 = vmatprep.subr.mxu0 0.0
    %634 = vmatpush1.msra.mxu0 0.0
    %635 = vmatprep.subr.mxu0 0.0
    %636 = vmatpush1.msra.mxu0 0.0
    %637 = vmatprep.subr.mxu0 0.0
    %638 = vmatpush1.msra.mxu0 0.0
    %639 = vmatprep.subr.mxu0 0.0
    %640 = vmatpush1.msra.mxu0 0.0
    %641 = vmatprep.subr.mxu0 0.0
    %642 = vmatpush1.msra.mxu0 0.0
    %643 = vmatprep.subr.mxu0 0.0
    %644 = vmatpush1.msra.mxu0 0.0
    %645 = vmatprep.subr.mxu0 0.0
    %646 = vmatpush1.msra.mxu0 0.0
    %647 = vmatprep.subr.mxu0 0.0
    %648 = vmatpush1.msra.mxu0 0.0
    %649 = vmatprep.subr.mxu0 0.0
    %650 = vmatpush1.msra.mxu0 0.0
    %651 = vmatprep.subr.mxu0 0.0
    %652 = vmatpush1.msra.mxu0 0.0
    %653 = vmatprep.subr.mxu0 0.0
    %654 = vmatpush1.msra.mxu0 0.0
    %655 = vmatprep.subr.mxu0 0.0
    %656 = vmatpush1.msra.mxu0 0.0
    %657 = vmatprep.subr.mxu0 0.0
    %658 = vmatpush1.msra.mxu0 0.0
    %659 = vmatprep.subr.mxu0 0.0
    %660 = vmatpush1.msra.mxu0 0.0
    %661 = vmatprep.mubr.f32.mxu0 0.0
    %662 = vmatmul.mubr.f32.gmra.mrb[0].mxu0 %v595
    %v663 = vpop.f32.mrb[0].mxu0
    %v664 = vadd.f32 0.0, %v663
    %v665 = vpop.f32.mrb[0].mxu0
    %666 = vdwg.mxu0
    %v667 = vadd.f32 %v515, %v664
    %vm668 = vcmp.gt.f32.partialorder %v667, 0.0
    %v669 = vmul.f32 %v667, 1.442695
    %v670 = vpow.pop %v669
    %v671 = vsub.f32 %v670, 1.0
    %v672 = vsel %vm668, %v667, %v671
    %673 = vmatprep.subr.mxu0 0.0
    %674 = vmatpush1.msra.mxu0 %v185
    %675 = vmatprep.subr.mxu0 0.0
    %676 = vmatpush1.msra.mxu0 %v186
    %677 = vmatprep.subr.mxu0 0.0
    %678 = vmatpush1.msra.mxu0 %v187
    %679 = vmatprep.subr.mxu0 0.0
    %680 = vmatpush1.msra.mxu0 %v188
    %681 = vmatprep.subr.mxu0 0.0
    %682 = vmatpush1.msra.mxu0 %v189
    %683 = vmatprep.subr.mxu0 0.0
    %684 = vmatpush1.msra.mxu0 %v190
    %685 = vmatprep.subr.mxu0 0.0
    %686 = vmatpush1.msra.mxu0 %v191
    %687 = vmatprep.subr.mxu0 0.0
    %688 = vmatpush1.msra.mxu0 %v192
    %689 = vmatprep.subr.mxu0 0.0
    %690 = vmatpush1.msra.mxu0 %v193
    %691 = vmatprep.subr.mxu0 0.0
    %692 = vmatpush1.msra.mxu0 %v194
    %693 = vmatprep.subr.mxu0 0.0
    %694 = vmatpush1.msra.mxu0 %v195
    %695 = vmatprep.subr.mxu0 0.0
    %696 = vmatpush1.msra.mxu0 %v196
    %697 = vmatprep.subr.mxu0 0.0
    %698 = vmatpush1.msra.mxu0 %v197
    %699 = vmatprep.subr.mxu0 0.0
    %700 = vmatpush1.msra.mxu0 %v198
    %701 = vmatprep.subr.mxu0 0.0
    %702 = vmatpush1.msra.mxu0 %v199
    %703 = vmatprep.subr.mxu0 0.0
    %704 = vmatpush1.msra.mxu0 %v200
    %705 = vmatprep.subr.mxu0 0.0
    %706 = vmatpush1.msra.mxu0 0.0
    %707 = vmatprep.subr.mxu0 0.0
    %708 = vmatpush1.msra.mxu0 0.0
    %709 = vmatprep.subr.mxu0 0.0
    %710 = vmatpush1.msra.mxu0 0.0
    %711 = vmatprep.subr.mxu0 0.0
    %712 = vmatpush1.msra.mxu0 0.0
    %713 = vmatprep.subr.mxu0 0.0
    %714 = vmatpush1.msra.mxu0 0.0
    %715 = vmatprep.subr.mxu0 0.0
    %716 = vmatpush1.msra.mxu0 0.0
    %717 = vmatprep.subr.mxu0 0.0
    %718 = vmatpush1.msra.mxu0 0.0
    %719 = vmatprep.subr.mxu0 0.0
    %720 = vmatpush1.msra.mxu0 0.0
    %721 = vmatprep.subr.mxu0 0.0
    %722 = vmatpush1.msra.mxu0 0.0
    %723 = vmatprep.subr.mxu0 0.0
    %724 = vmatpush1.msra.mxu0 0.0
    %725 = vmatprep.subr.mxu0 0.0
    %726 = vmatpush1.msra.mxu0 0.0
    %727 = vmatprep.subr.mxu0 0.0
    %728 = vmatpush1.msra.mxu0 0.0
    %729 = vmatprep.subr.mxu0 0.0
    %730 = vmatpush1.msra.mxu0 0.0
    %731 = vmatprep.subr.mxu0 0.0
    %732 = vmatpush1.msra.mxu0 0.0
    %733 = vmatprep.subr.mxu0 0.0
    %734 = vmatpush1.msra.mxu0 0.0
    %735 = vmatprep.subr.mxu0 0.0
    %736 = vmatpush1.msra.mxu0 0.0
    %737 = vmatprep.mubr.f32.mxu0 0.0
    %738 = vmatmul.mubr.f32.gmra.mrb[0].mxu0 %v672
    %v739 = vpop.f32.mrb[0].mxu0
    %v740 = vadd.f32 0.0, %v739
    %v741 = vpop.f32.mrb[0].mxu0
    %742 = vdwg.mxu0
    %vm743 = vcmp.gt.f32.partialorder %v740, 0.0
    %v744 = vmul.f32 %v740, 1.442695
    %v745 = vpow.pop %v744
    %v746 = vsub.f32 %v745, 1.0
    %v747 = vsel %vm743, %v740, %v746
    %v748 = vadd.f32 %v596, %v747
    %749 = vmatprep.subr.mxu0 0.0
    %750 = vmatpush1.msra.mxu0 %v277
    %751 = vmatprep.subr.mxu0 0.0
    %752 = vmatpush1.msra.mxu0 %v278
    %753 = vmatprep.subr.mxu0 0.0
    %754 = vmatpush1.msra.mxu0 %v279
    %755 = vmatprep.subr.mxu0 0.0
    %756 = vmatpush1.msra.mxu0 %v280
    %757 = vmatprep.subr.mxu0 0.0
    %758 = vmatpush1.msra.mxu0 %v281
    %759 = vmatprep.subr.mxu0 0.0
    %760 = vmatpush1.msra.mxu0 %v282
    %761 = vmatprep.subr.mxu0 0.0
    %762 = vmatpush1.msra.mxu0 %v283
    %763 = vmatprep.subr.mxu0 0.0
    %764 = vmatpush1.msra.mxu0 %v284
    %765 = vmatprep.subr.mxu0 0.0
    %766 = vmatpush1.msra.mxu0 %v285
    %767 = vmatprep.subr.mxu0 0.0
    %768 = vmatpush1.msra.mxu0 %v286
    %769 = vmatprep.subr.mxu0 0.0
    %770 = vmatpush1.msra.mxu0 %v287
    %771 = vmatprep.subr.mxu0 0.0
    %772 = vmatpush1.msra.mxu0 %v288
    %773 = vmatprep.subr.mxu0 0.0
    %774 = vmatpush1.msra.mxu0 %v289
    %775 = vmatprep.subr.mxu0 0.0
    %776 = vmatpush1.msra.mxu0 %v290
    %777 = vmatprep.subr.mxu0 0.0
    %778 = vmatpush1.msra.mxu0 %v291
    %779 = vmatprep.subr.mxu0 0.0
    %780 = vmatpush1.msra.mxu0 %v292
    %781 = vmatprep.subr.mxu0 0.0
    %782 = vmatpush1.msra.mxu0 0.0
    %783 = vmatprep.subr.mxu0 0.0
    %784 = vmatpush1.msra.mxu0 0.0
    %785 = vmatprep.subr.mxu0 0.0
    %786 = vmatpush1.msra.mxu0 0.0
    %787 = vmatprep.subr.mxu0 0.0
    %788 = vmatpush1.msra.mxu0 0.0
    %789 = vmatprep.subr.mxu0 0.0
    %790 = vmatpush1.msra.mxu0 0.0
    %791 = vmatprep.subr.mxu0 0.0
    %792 = vmatpush1.msra.mxu0 0.0
    %793 = vmatprep.subr.mxu0 0.0
    %794 = vmatpush1.msra.mxu0 0.0
    %795 = vmatprep.subr.mxu0 0.0
    %796 = vmatpush1.msra.mxu0 0.0
    %797 = vmatprep.subr.mxu0 0.0
    %798 = vmatpush1.msra.mxu0 0.0
    %799 = vmatprep.subr.mxu0 0.0
    %800 = vmatpush1.msra.mxu0 0.0
    %801 = vmatprep.subr.mxu0 0.0
    %802 = vmatpush1.msra.mxu0 0.0
    %803 = vmatprep.subr.mxu0 0.0
    %804 = vmatpush1.msra.mxu0 0.0
    %805 = vmatprep.subr.mxu0 0.0
    %806 = vmatpush1.msra.mxu0 0.0
    %807 = vmatprep.subr.mxu0 0.0
    %808 = vmatpush1.msra.mxu0 0.0
    %809 = vmatprep.subr.mxu0 0.0
    %810 = vmatpush1.msra.mxu0 0.0
    %811 = vmatprep.subr.mxu0 0.0
    %812 = vmatpush1.msra.mxu0 0.0
    %813 = vmatprep.mubr.f32.mxu0 0.0
    %814 = vmatmul.mubr.f32.gmra.mrb[0].mxu0 %v747
    %v815 = vpop.f32.mrb[0].mxu0
    %v816 = vadd.f32 0.0, %v815
    %v817 = vpop.f32.mrb[0].mxu0
    %818 = vdwg.mxu0
    %v819 = vadd.f32 %v667, %v816
    %vm820 = vcmp.gt.f32.partialorder %v819, 0.0
    %v821 = vmul.f32 %v819, 1.442695
    %v822 = vpow.pop %v821
    %v823 = vsub.f32 %v822, 1.0
    %v824 = vsel %vm820, %v819, %v823
    %825 = vmatprep.subr.mxu0 0.0
    %826 = vmatpush1.msra.mxu0 %v185
    %827 = vmatprep.subr.mxu0 0.0
    %828 = vmatpush1.msra.mxu0 %v186
    %829 = vmatprep.subr.mxu0 0.0
    %830 = vmatpush1.msra.mxu0 %v187
    %831 = vmatprep.subr.mxu0 0.0
    %832 = vmatpush1.msra.mxu0 %v188
    %833 = vmatprep.subr.mxu0 0.0
    %834 = vmatpush1.msra.mxu0 %v189
    %835 = vmatprep.subr.mxu0 0.0
    %836 = vmatpush1.msra.mxu0 %v190
    %837 = vmatprep.subr.mxu0 0.0
    %838 = vmatpush1.msra.mxu0 %v191
    %839 = vmatprep.subr.mxu0 0.0
    %840 = vmatpush1.msra.mxu0 %v192
    %841 = vmatprep.subr.mxu0 0.0
    %842 = vmatpush1.msra.mxu0 %v193
    %843 = vmatprep.subr.mxu0 0.0
    %844 = vmatpush1.msra.mxu0 %v194
    %845 = vmatprep.subr.mxu0 0.0
    %846 = vmatpush1.msra.mxu0 %v195
    %847 = vmatprep.subr.mxu0 0.0
    %848 = vmatpush1.msra.mxu0 %v196
    %849 = vmatprep.subr.mxu0 0.0
    %850 = vmatpush1.msra.mxu0 %v197
    %851 = vmatprep.subr.mxu0 0.0
    %852 = vmatpush1.msra.mxu0 %v198
    %853 = vmatprep.subr.mxu0 0.0
    %854 = vmatpush1.msra.mxu0 %v199
    %855 = vmatprep.subr.mxu0 0.0
    %856 = vmatpush1.msra.mxu0 %v200
    %857 = vmatprep.subr.mxu0 0.0
    %858 = vmatpush1.msra.mxu0 0.0
    %859 = vmatprep.subr.mxu0 0.0
    %860 = vmatpush1.msra.mxu0 0.0
    %861 = vmatprep.subr.mxu0 0.0
    %862 = vmatpush1.msra.mxu0 0.0
    %863 = vmatprep.subr.mxu0 0.0
    %864 = vmatpush1.msra.mxu0 0.0
    %865 = vmatprep.subr.mxu0 0.0
    %866 = vmatpush1.msra.mxu0 0.0
    %867 = vmatprep.subr.mxu0 0.0
    %868 = vmatpush1.msra.mxu0 0.0
    %869 = vmatprep.subr.mxu0 0.0
    %870 = vmatpush1.msra.mxu0 0.0
    %871 = vmatprep.subr.mxu0 0.0
    %872 = vmatpush1.msra.mxu0 0.0
    %873 = vmatprep.subr.mxu0 0.0
    %874 = vmatpush1.msra.mxu0 0.0
    %875 = vmatprep.subr.mxu0 0.0
    %876 = vmatpush1.msra.mxu0 0.0
    %877 = vmatprep.subr.mxu0 0.0
    %878 = vmatpush1.msra.mxu0 0.0
    %879 = vmatprep.subr.mxu0 0.0
    %880 = vmatpush1.msra.mxu0 0.0
    %881 = vmatprep.subr.mxu0 0.0
    %882 = vmatpush1.msra.mxu0 0.0
    %883 = vmatprep.subr.mxu0 0.0
    %884 = vmatpush1.msra.mxu0 0.0
    %885 = vmatprep.subr.mxu0 0.0
    %886 = vmatpush1.msra.mxu0 0.0
    %887 = vmatprep.subr.mxu0 0.0
    %888 = vmatpush1.msra.mxu0 0.0
    %889 = vmatprep.mubr.f32.mxu0 0.0
    %890 = vmatmul.mubr.f32.gmra.mrb[0].mxu0 %v824
    %v891 = vpop.f32.mrb[0].mxu0
    %v892 = vadd.f32 0.0, %v891
    %v893 = vpop.f32.mrb[0].mxu0
    %894 = vdwg.mxu0
    %vm895 = vcmp.gt.f32.partialorder %v892, 0.0
    %v896 = vmul.f32 %v892, 1.442695
    %v897 = vpow.pop %v896
    %v898 = vsub.f32 %v897, 1.0
    %v899 = vsel %vm895, %v892, %v898
    %v900 = vadd.f32 %v748, %v899
    %901 = vmatprep.subr.mxu0 0.0
    %902 = vmatpush1.msra.mxu0 %v277
    %903 = vmatprep.subr.mxu0 0.0
    %904 = vmatpush1.msra.mxu0 %v278
    %905 = vmatprep.subr.mxu0 0.0
    %906 = vmatpush1.msra.mxu0 %v279
    %907 = vmatprep.subr.mxu0 0.0
    %908 = vmatpush1.msra.mxu0 %v280
    %909 = vmatprep.subr.mxu0 0.0
    %910 = vmatpush1.msra.mxu0 %v281
    %911 = vmatprep.subr.mxu0 0.0
    %912 = vmatpush1.msra.mxu0 %v282
    %913 = vmatprep.subr.mxu0 0.0
    %914 = vmatpush1.msra.mxu0 %v283
    %915 = vmatprep.subr.mxu0 0.0
    %916 = vmatpush1.msra.mxu0 %v284
    %917 = vmatprep.subr.mxu0 0.0
    %918 = vmatpush1.msra.mxu0 %v285
    %919 = vmatprep.subr.mxu0 0.0
    %920 = vmatpush1.msra.mxu0 %v286
    %921 = vmatprep.subr.mxu0 0.0
    %922 = vmatpush1.msra.mxu0 %v287
    %923 = vmatprep.subr.mxu0 0.0
    %924 = vmatpush1.msra.mxu0 %v288
    %925 = vmatprep.subr.mxu0 0.0
    %926 = vmatpush1.msra.mxu0 %v289
    %927 = vmatprep.subr.mxu0 0.0
    %928 = vmatpush1.msra.mxu0 %v290
    %929 = vmatprep.subr.mxu0 0.0
    %930 = vmatpush1.msra.mxu0 %v291
    %931 = vmatprep.subr.mxu0 0.0
    %932 = vmatpush1.msra.mxu0 %v292
    %933 = vmatprep.subr.mxu0 0.0
    %934 = vmatpush1.msra.mxu0 0.0
    %935 = vmatprep.subr.mxu0 0.0
    %936 = vmatpush1.msra.mxu0 0.0
    %937 = vmatprep.subr.mxu0 0.0
    %938 = vmatpush1.msra.mxu0 0.0
    %939 = vmatprep.subr.mxu0 0.0
    %940 = vmatpush1.msra.mxu0 0.0
    %941 = vmatprep.subr.mxu0 0.0
    %942 = vmatpush1.msra.mxu0 0.0
    %943 = vmatprep.subr.mxu0 0.0
    %944 = vmatpush1.msra.mxu0 0.0
    %945 = vmatprep.subr.mxu0 0.0
    %946 = vmatpush1.msra.mxu0 0.0
    %947 = vmatprep.subr.mxu0 0.0
    %948 = vmatpush1.msra.mxu0 0.0
    %949 = vmatprep.subr.mxu0 0.0
    %950 = vmatpush1.msra.mxu0 0.0
    %951 = vmatprep.subr.mxu0 0.0
    %952 = vmatpush1.msra.mxu0 0.0
    %953 = vmatprep.subr.mxu0 0.0
    %954 = vmatpush1.msra.mxu0 0.0
    %955 = vmatprep.subr.mxu0 0.0
    %956 = vmatpush1.msra.mxu0 0.0
    %957 = vmatprep.subr.mxu0 0.0
    %958 = vmatpush1.msra.mxu0 0.0
    %959 = vmatprep.subr.mxu0 0.0
    %960 = vmatpush1.msra.mxu0 0.0
    %961 = vmatprep.subr.mxu0 0.0
    %962 = vmatpush1.msra.mxu0 0.0
    %963 = vmatprep.subr.mxu0 0.0
    %964 = vmatpush1.msra.mxu0 0.0
    %965 = vmatprep.mubr.f32.mxu0 0.0
    %966 = vmatmul.mubr.f32.gmra.mrb[0].mxu0 %v899
    %v967 = vpop.f32.mrb[0].mxu0
    %v968 = vadd.f32 0.0, %v967
    %v969 = vpop.f32.mrb[0].mxu0
    %970 = vdwg.mxu0
    %v971 = vadd.f32 %v819, %v968
    %vm972 = vcmp.gt.f32.partialorder %v971, 0.0
    %v973 = vmul.f32 %v971, 1.442695
    %v974 = vpow.pop %v973
    %v975 = vsub.f32 %v974, 1.0
    %v976 = vsel %vm972, %v971, %v975
    %977 = vmatprep.subr.mxu0 0.0
    %978 = vmatpush1.msra.mxu0 %v185
    %979 = vmatprep.subr.mxu0 0.0
    %980 = vmatpush1.msra.mxu0 %v186
    %981 = vmatprep.subr.mxu0 0.0
    %982 = vmatpush1.msra.mxu0 %v187
    %983 = vmatprep.subr.mxu0 0.0
    %984 = vmatpush1.msra.mxu0 %v188
    %985 = vmatprep.subr.mxu0 0.0
    %986 = vmatpush1.msra.mxu0 %v189
    %987 = vmatprep.subr.mxu0 0.0
    %988 = vmatpush1.msra.mxu0 %v190
    %989 = vmatprep.subr.mxu0 0.0
    %990 = vmatpush1.msra.mxu0 %v191
    %991 = vmatprep.subr.mxu0 0.0
    %992 = vmatpush1.msra.mxu0 %v192
    %993 = vmatprep.subr.mxu0 0.0
    %994 = vmatpush1.msra.mxu0 %v193
    %995 = vmatprep.subr.mxu0 0.0
    %996 = vmatpush1.msra.mxu0 %v194
    %997 = vmatprep.subr.mxu0 0.0
    %998 = vmatpush1.msra.mxu0 %v195
    %999 = vmatprep.subr.mxu0 0.0
    %1000 = vmatpush1.msra.mxu0 %v196
    %1001 = vmatprep.subr.mxu0 0.0
    %1002 = vmatpush1.msra.mxu0 %v197
    %1003 = vmatprep.subr.mxu0 0.0
    %1004 = vmatpush1.msra.mxu0 %v198
    %1005 = vmatprep.subr.mxu0 0.0
    %1006 = vmatpush1.msra.mxu0 %v199
    %1007 = vmatprep.subr.mxu0 0.0
    %1008 = vmatpush1.msra.mxu0 %v200
    %1009 = vmatprep.subr.mxu0 0.0
    %1010 = vmatpush1.msra.mxu0 0.0
    %1011 = vmatprep.subr.mxu0 0.0
    %1012 = vmatpush1.msra.mxu0 0.0
    %1013 = vmatprep.subr.mxu0 0.0
    %1014 = vmatpush1.msra.mxu0 0.0
    %1015 = vmatprep.subr.mxu0 0.0
    %1016 = vmatpush1.msra.mxu0 0.0
    %1017 = vmatprep.subr.mxu0 0.0
    %1018 = vmatpush1.msra.mxu0 0.0
    %1019 = vmatprep.subr.mxu0 0.0
    %1020 = vmatpush1.msra.mxu0 0.0
    %1021 = vmatprep.subr.mxu0 0.0
    %1022 = vmatpush1.msra.mxu0 0.0
    %1023 = vmatprep.subr.mxu0 0.0
    %1024 = vmatpush1.msra.mxu0 0.0
    %1025 = vmatprep.subr.mxu0 0.0
    %1026 = vmatpush1.msra.mxu0 0.0
    %1027 = vmatprep.subr.mxu0 0.0
    %1028 = vmatpush1.msra.mxu0 0.0
    %1029 = vmatprep.subr.mxu0 0.0
    %1030 = vmatpush1.msra.mxu0 0.0
    %1031 = vmatprep.subr.mxu0 0.0
    %1032 = vmatpush1.msra.mxu0 0.0
    %1033 = vmatprep.subr.mxu0 0.0
    %1034 = vmatpush1.msra.mxu0 0.0
    %1035 = vmatprep.subr.mxu0 0.0
    %1036 = vmatpush1.msra.mxu0 0.0
    %1037 = vmatprep.subr.mxu0 0.0
    %1038 = vmatpush1.msra.mxu0 0.0
    %1039 = vmatprep.subr.mxu0 0.0
    %1040 = vmatpush1.msra.mxu0 0.0
    %1041 = vmatprep.mubr.f32.mxu0 0.0
    %1042 = vmatmul.mubr.f32.gmra.mrb[0].mxu0 %v976
    %v1043 = vpop.f32.mrb[0].mxu0
    %v1044 = vadd.f32 0.0, %v1043
    %v1045 = vpop.f32.mrb[0].mxu0
    %1046 = vdwg.mxu0
    %vm1047 = vcmp.gt.f32.partialorder %v1044, 0.0
    %v1048 = vmul.f32 %v1044, 1.442695
    %v1049 = vpow.pop %v1048
    %v1050 = vsub.f32 %v1049, 1.0
    %v1051 = vsel %vm1047, %v1044, %v1050
    %v1052 = vadd.f32 %v900, %v1051
    %1053 = vmatprep.subr.mxu0 0.0
    %1054 = vmatpush1.msra.mxu0 %v277
    %1055 = vmatprep.subr.mxu0 0.0
    %1056 = vmatpush1.msra.mxu0 %v278
    %1057 = vmatprep.subr.mxu0 0.0
    %1058 = vmatpush1.msra.mxu0 %v279
    %1059 = vmatprep.subr.mxu0 0.0
    %1060 = vmatpush1.msra.mxu0 %v280
    %1061 = vmatprep.subr.mxu0 0.0
    %1062 = vmatpush1.msra.mxu0 %v281
    %1063 = vmatprep.subr.mxu0 0.0
    %1064 = vmatpush1.msra.mxu0 %v282
    %1065 = vmatprep.subr.mxu0 0.0
    %1066 = vmatpush1.msra.mxu0 %v283
    %1067 = vmatprep.subr.mxu0 0.0
    %1068 = vmatpush1.msra.mxu0 %v284
    %1069 = vmatprep.subr.mxu0 0.0
    %1070 = vmatpush1.msra.mxu0 %v285
    %1071 = vmatprep.subr.mxu0 0.0
    %1072 = vmatpush1.msra.mxu0 %v286
    %1073 = vmatprep.subr.mxu0 0.0
    %1074 = vmatpush1.msra.mxu0 %v287
    %1075 = vmatprep.subr.mxu0 0.0
    %1076 = vmatpush1.msra.mxu0 %v288
    %1077 = vmatprep.subr.mxu0 0.0
    %1078 = vmatpush1.msra.mxu0 %v289
    %1079 = vmatprep.subr.mxu0 0.0
    %1080 = vmatpush1.msra.mxu0 %v290
    %1081 = vmatprep.subr.mxu0 0.0
    %1082 = vmatpush1.msra.mxu0 %v291
    %1083 = vmatprep.subr.mxu0 0.0
    %1084 = vmatpush1.msra.mxu0 %v292
    %1085 = vmatprep.subr.mxu0 0.0
    %1086 = vmatpush1.msra.mxu0 0.0
    %1087 = vmatprep.subr.mxu0 0.0
    %1088 = vmatpush1.msra.mxu0 0.0
    %1089 = vmatprep.subr.mxu0 0.0
    %1090 = vmatpush1.msra.mxu0 0.0
    %1091 = vmatprep.subr.mxu0 0.0
    %1092 = vmatpush1.msra.mxu0 0.0
    %1093 = vmatprep.subr.mxu0 0.0
    %1094 = vmatpush1.msra.mxu0 0.0
    %1095 = vmatprep.subr.mxu0 0.0
    %1096 = vmatpush1.msra.mxu0 0.0
    %1097 = vmatprep.subr.mxu0 0.0
    %1098 = vmatpush1.msra.mxu0 0.0
    %1099 = vmatprep.subr.mxu0 0.0
    %1100 = vmatpush1.msra.mxu0 0.0
    %1101 = vmatprep.subr.mxu0 0.0
    %1102 = vmatpush1.msra.mxu0 0.0
    %1103 = vmatprep.subr.mxu0 0.0
    %1104 = vmatpush1.msra.mxu0 0.0
    %1105 = vmatprep.subr.mxu0 0.0
    %1106 = vmatpush1.msra.mxu0 0.0
    %1107 = vmatprep.subr.mxu0 0.0
    %1108 = vmatpush1.msra.mxu0 0.0
    %1109 = vmatprep.subr.mxu0 0.0
    %1110 = vmatpush1.msra.mxu0 0.0
    %1111 = vmatprep.subr.mxu0 0.0
    %1112 = vmatpush1.msra.mxu0 0.0
    %1113 = vmatprep.subr.mxu0 0.0
    %1114 = vmatpush1.msra.mxu0 0.0
    %1115 = vmatprep.subr.mxu0 0.0
    %1116 = vmatpush1.msra.mxu0 0.0
    %1117 = vmatprep.mubr.f32.mxu0 0.0
    %1118 = vmatmul.mubr.f32.gmra.mrb[0].mxu0 %v1051
    %v1119 = vpop.f32.mrb[0].mxu0
    %v1120 = vadd.f32 0.0, %v1119
    %v1121 = vpop.f32.mrb[0].mxu0
    %1122 = vdwg.mxu0
    %v1123 = vadd.f32 %v971, %v1120
    %vm1124 = vcmp.gt.f32.partialorder %v1123, 0.0
    %v1125 = vmul.f32 %v1123, 1.442695
    %v1126 = vpow.pop %v1125
    %v1127 = vsub.f32 %v1126, 1.0
    %v1128 = vsel %vm1124, %v1123, %v1127
    %1129 = vmatprep.subr.mxu0 0.0
    %1130 = vmatpush1.msra.mxu0 %v185
    %1131 = vmatprep.subr.mxu0 0.0
    %1132 = vmatpush1.msra.mxu0 %v186
    %1133 = vmatprep.subr.mxu0 0.0
    %1134 = vmatpush1.msra.mxu0 %v187
    %1135 = vmatprep.subr.mxu0 0.0
    %1136 = vmatpush1.msra.mxu0 %v188
    %1137 = vmatprep.subr.mxu0 0.0
    %1138 = vmatpush1.msra.mxu0 %v189
    %1139 = vmatprep.subr.mxu0 0.0
    %1140 = vmatpush1.msra.mxu0 %v190
    %1141 = vmatprep.subr.mxu0 0.0
    %1142 = vmatpush1.msra.mxu0 %v191
    %1143 = vmatprep.subr.mxu0 0.0
    %1144 = vmatpush1.msra.mxu0 %v192
    %1145 = vmatprep.subr.mxu0 0.0
    %1146 = vmatpush1.msra.mxu0 %v193
    %1147 = vmatprep.subr.mxu0 0.0
    %1148 = vmatpush1.msra.mxu0 %v194
    %1149 = vmatprep.subr.mxu0 0.0
    %1150 = vmatpush1.msra.mxu0 %v195
    %1151 = vmatprep.subr.mxu0 0.0
    %1152 = vmatpush1.msra.mxu0 %v196
    %1153 = vmatprep.subr.mxu0 0.0
    %1154 = vmatpush1.msra.mxu0 %v197
    %1155 = vmatprep.subr.mxu0 0.0
    %1156 = vmatpush1.msra.mxu0 %v198
    %1157 = vmatprep.subr.mxu0 0.0
    %1158 = vmatpush1.msra.mxu0 %v199
    %1159 = vmatprep.subr.mxu0 0.0
    %1160 = vmatpush1.msra.mxu0 %v200
    %1161 = vmatprep.subr.mxu0 0.0
    %1162 = vmatpush1.msra.mxu0 0.0
    %1163 = vmatprep.subr.mxu0 0.0
    %1164 = vmatpush1.msra.mxu0 0.0
    %1165 = vmatprep.subr.mxu0 0.0
    %1166 = vmatpush1.msra.mxu0 0.0
    %1167 = vmatprep.subr.mxu0 0.0
    %1168 = vmatpush1.msra.mxu0 0.0
    %1169 = vmatprep.subr.mxu0 0.0
    %1170 = vmatpush1.msra.mxu0 0.0
    %1171 = vmatprep.subr.mxu0 0.0
    %1172 = vmatpush1.msra.mxu0 0.0
    %1173 = vmatprep.subr.mxu0 0.0
    %1174 = vmatpush1.msra.mxu0 0.0
    %1175 = vmatprep.subr.mxu0 0.0
    %1176 = vmatpush1.msra.mxu0 0.0
    %1177 = vmatprep.subr.mxu0 0.0
    %1178 = vmatpush1.msra.mxu0 0.0
    %1179 = vmatprep.subr.mxu0 0.0
    %1180 = vmatpush1.msra.mxu0 0.0
    %1181 = vmatprep.subr.mxu0 0.0
    %1182 = vmatpush1.msra.mxu0 0.0
    %1183 = vmatprep.subr.mxu0 0.0
    %1184 = vmatpush1.msra.mxu0 0.0
    %1185 = vmatprep.subr.mxu0 0.0
    %1186 = vmatpush1.msra.mxu0 0.0
    %1187 = vmatprep.subr.mxu0 0.0
    %1188 = vmatpush1.msra.mxu0 0.0
    %1189 = vmatprep.subr.mxu0 0.0
    %1190 = vmatpush1.msra.mxu0 0.0
    %1191 = vmatprep.subr.mxu0 0.0
    %1192 = vmatpush1.msra.mxu0 0.0
    %1193 = vmatprep.mubr.f32.mxu0 0.0
    %1194 = vmatmul.mubr.f32.gmra.mrb[0].mxu0 %v1128
    %v1195 = vpop.f32.mrb[0].mxu0
    %v1196 = vadd.f32 0.0, %v1195
    %v1197 = vpop.f32.mrb[0].mxu0
    %1198 = vdwg.mxu0
    %vm1199 = vcmp.gt.f32.partialorder %v1196, 0.0
    %v1200 = vmul.f32 %v1196, 1.442695
    %v1201 = vpow.pop %v1200
    %v1202 = vsub.f32 %v1201, 1.0
    %v1203 = vsel %vm1199, %v1196, %v1202
    %v1204 = vadd.f32 %v1052, %v1203
    %1205 = vmatprep.subr.mxu0 0.0
    %1206 = vmatpush1.msra.mxu0 %v277
    %1207 = vmatprep.subr.mxu0 0.0
    %1208 = vmatpush1.msra.mxu0 %v278
    %1209 = vmatprep.subr.mxu0 0.0
    %1210 = vmatpush1.msra.mxu0 %v279
    %1211 = vmatprep.subr.mxu0 0.0
    %1212 = vmatpush1.msra.mxu0 %v280
    %1213 = vmatprep.subr.mxu0 0.0
    %1214 = vmatpush1.msra.mxu0 %v281
    %1215 = vmatprep.subr.mxu0 0.0
    %1216 = vmatpush1.msra.mxu0 %v282
    %1217 = vmatprep.subr.mxu0 0.0
    %1218 = vmatpush1.msra.mxu0 %v283
    %1219 = vmatprep.subr.mxu0 0.0
    %1220 = vmatpush1.msra.mxu0 %v284
    %1221 = vmatprep.subr.mxu0 0.0
    %1222 = vmatpush1.msra.mxu0 %v285
    %1223 = vmatprep.subr.mxu0 0.0
    %1224 = vmatpush1.msra.mxu0 %v286
    %1225 = vmatprep.subr.mxu0 0.0
    %1226 = vmatpush1.msra.mxu0 %v287
    %1227 = vmatprep.subr.mxu0 0.0
    %1228 = vmatpush1.msra.mxu0 %v288
    %1229 = vmatprep.subr.mxu0 0.0
    %1230 = vmatpush1.msra.mxu0 %v289
    %1231 = vmatprep.subr.mxu0 0.0
    %1232 = vmatpush1.msra.mxu0 %v290
    %1233 = vmatprep.subr.mxu0 0.0
    %1234 = vmatpush1.msra.mxu0 %v291
    %1235 = vmatprep.subr.mxu0 0.0
    %1236 = vmatpush1.msra.mxu0 %v292
    %1237 = vmatprep.subr.mxu0 0.0
    %1238 = vmatpush1.msra.mxu0 0.0
    %1239 = vmatprep.subr.mxu0 0.0
    %1240 = vmatpush1.msra.mxu0 0.0
    %1241 = vmatprep.subr.mxu0 0.0
    %1242 = vmatpush1.msra.mxu0 0.0
    %1243 = vmatprep.subr.mxu0 0.0
    %1244 = vmatpush1.msra.mxu0 0.0
    %1245 = vmatprep.subr.mxu0 0.0
    %1246 = vmatpush1.msra.mxu0 0.0
    %1247 = vmatprep.subr.mxu0 0.0
    %1248 = vmatpush1.msra.mxu0 0.0
    %1249 = vmatprep.subr.mxu0 0.0
    %1250 = vmatpush1.msra.mxu0 0.0
    %1251 = vmatprep.subr.mxu0 0.0
    %1252 = vmatpush1.msra.mxu0 0.0
    %1253 = vmatprep.subr.mxu0 0.0
    %1254 = vmatpush1.msra.mxu0 0.0
    %1255 = vmatprep.subr.mxu0 0.0
    %1256 = vmatpush1.msra.mxu0 0.0
    %1257 = vmatprep.subr.mxu0 0.0
    %1258 = vmatpush1.msra.mxu0 0.0
    %1259 = vmatprep.subr.mxu0 0.0
    %1260 = vmatpush1.msra.mxu0 0.0
    %1261 = vmatprep.subr.mxu0 0.0
    %1262 = vmatpush1.msra.mxu0 0.0
    %1263 = vmatprep.subr.mxu0 0.0
    %1264 = vmatpush1.msra.mxu0 0.0
    %1265 = vmatprep.subr.mxu0 0.0
    %1266 = vmatpush1.msra.mxu0 0.0
    %1267 = vmatprep.subr.mxu0 0.0
    %1268 = vmatpush1.msra.mxu0 0.0
    %1269 = vmatprep.mubr.f32.mxu0 0.0
    %1270 = vmatmul.mubr.f32.gmra.mrb[0].mxu0 %v1203
    %v1271 = vpop.f32.mrb[0].mxu0
    %v1272 = vadd.f32 0.0, %v1271
    %v1273 = vpop.f32.mrb[0].mxu0
    %1274 = vdwg.mxu0
    %v1275 = vadd.f32 %v1123, %v1272
    %vm1276 = vcmp.gt.f32.partialorder %v1275, 0.0
    %v1277 = vmul.f32 %v1275, 1.442695
    %v1278 = vpow.pop %v1277
    %v1279 = vsub.f32 %v1278, 1.0
    %v1280 = vsel %vm1276, %v1275, %v1279
    %1281 = vmatprep.subr.mxu0 0.0
    %1282 = vmatpush1.msra.mxu0 %v185
    %1283 = vmatprep.subr.mxu0 0.0
    %1284 = vmatpush1.msra.mxu0 %v186
    %1285 = vmatprep.subr.mxu0 0.0
    %1286 = vmatpush1.msra.mxu0 %v187
    %1287 = vmatprep.subr.mxu0 0.0
    %1288 = vmatpush1.msra.mxu0 %v188
    %1289 = vmatprep.subr.mxu0 0.0
    %1290 = vmatpush1.msra.mxu0 %v189
    %1291 = vmatprep.subr.mxu0 0.0
    %1292 = vmatpush1.msra.mxu0 %v190
    %1293 = vmatprep.subr.mxu0 0.0
    %1294 = vmatpush1.msra.mxu0 %v191
    %1295 = vmatprep.subr.mxu0 0.0
    %1296 = vmatpush1.msra.mxu0 %v192
    %1297 = vmatprep.subr.mxu0 0.0
    %1298 = vmatpush1.msra.mxu0 %v193
    %1299 = vmatprep.subr.mxu0 0.0
    %1300 = vmatpush1.msra.mxu0 %v194
    %1301 = vmatprep.subr.mxu0 0.0
    %1302 = vmatpush1.msra.mxu0 %v195
    %1303 = vmatprep.subr.mxu0 0.0
    %1304 = vmatpush1.msra.mxu0 %v196
    %1305 = vmatprep.subr.mxu0 0.0
    %1306 = vmatpush1.msra.mxu0 %v197
    %1307 = vmatprep.subr.mxu0 0.0
    %1308 = vmatpush1.msra.mxu0 %v198
    %1309 = vmatprep.subr.mxu0 0.0
    %1310 = vmatpush1.msra.mxu0 %v199
    %1311 = vmatprep.subr.mxu0 0.0
    %1312 = vmatpush1.msra.mxu0 %v200
    %1313 = vmatprep.subr.mxu0 0.0
    %1314 = vmatpush1.msra.mxu0 0.0
    %1315 = vmatprep.subr.mxu0 0.0
    %1316 = vmatpush1.msra.mxu0 0.0
    %1317 = vmatprep.subr.mxu0 0.0
    %1318 = vmatpush1.msra.mxu0 0.0
    %1319 = vmatprep.subr.mxu0 0.0
    %1320 = vmatpush1.msra.mxu0 0.0
    %1321 = vmatprep.subr.mxu0 0.0
    %1322 = vmatpush1.msra.mxu0 0.0
    %1323 = vmatprep.subr.mxu0 0.0
    %1324 = vmatpush1.msra.mxu0 0.0
    %1325 = vmatprep.subr.mxu0 0.0
    %1326 = vmatpush1.msra.mxu0 0.0
    %1327 = vmatprep.subr.mxu0 0.0
    %1328 = vmatpush1.msra.mxu0 0.0
    %1329 = vmatprep.subr.mxu0 0.0
    %1330 = vmatpush1.msra.mxu0 0.0
    %1331 = vmatprep.subr.mxu0 0.0
    %1332 = vmatpush1.msra.mxu0 0.0
    %1333 = vmatprep.subr.mxu0 0.0
    %1334 = vmatpush1.msra.mxu0 0.0
    %1335 = vmatprep.subr.mxu0 0.0
    %1336 = vmatpush1.msra.mxu0 0.0
    %1337 = vmatprep.subr.mxu0 0.0
    %1338 = vmatpush1.msra.mxu0 0.0
    %1339 = vmatprep.subr.mxu0 0.0
    %1340 = vmatpush1.msra.mxu0 0.0
    %1341 = vmatprep.subr.mxu0 0.0
    %1342 = vmatpush1.msra.mxu0 0.0
    %1343 = vmatprep.subr.mxu0 0.0
    %1344 = vmatpush1.msra.mxu0 0.0
    %1345 = vmatprep.mubr.f32.mxu0 0.0
    %1346 = vmatmul.mubr.f32.gmra.mrb[0].mxu0 %v1280
    %v1347 = vpop.f32.mrb[0].mxu0
    %v1348 = vadd.f32 0.0, %v1347
    %v1349 = vpop.f32.mrb[0].mxu0
    %1350 = vdwg.mxu0
    %vm1351 = vcmp.gt.f32.partialorder %v1348, 0.0
    %v1352 = vmul.f32 %v1348, 1.442695
    %v1353 = vpow.pop %v1352
    %v1354 = vsub.f32 %v1353, 1.0
    %v1355 = vsel %vm1351, %v1348, %v1354
    %v1356 = vadd.f32 %v1204, %v1355
    %1357 = vmatprep.subr.mxu0 0.0
    %1358 = vmatpush1.msra.mxu0 %v277
    %1359 = vmatprep.subr.mxu0 0.0
    %1360 = vmatpush1.msra.mxu0 %v278
    %1361 = vmatprep.subr.mxu0 0.0
    %1362 = vmatpush1.msra.mxu0 %v279
    %1363 = vmatprep.subr.mxu0 0.0
    %1364 = vmatpush1.msra.mxu0 %v280
    %1365 = vmatprep.subr.mxu0 0.0
    %1366 = vmatpush1.msra.mxu0 %v281
    %1367 = vmatprep.subr.mxu0 0.0
    %1368 = vmatpush1.msra.mxu0 %v282
    %1369 = vmatprep.subr.mxu0 0.0
    %1370 = vmatpush1.msra.mxu0 %v283
    %1371 = vmatprep.subr.mxu0 0.0
    %1372 = vmatpush1.msra.mxu0 %v284
    %1373 = vmatprep.subr.mxu0 0.0
    %1374 = vmatpush1.msra.mxu0 %v285
    %1375 = vmatprep.subr.mxu0 0.0
    %1376 = vmatpush1.msra.mxu0 %v286
    %1377 = vmatprep.subr.mxu0 0.0
    %1378 = vmatpush1.msra.mxu0 %v287
    %1379 = vmatprep.subr.mxu0 0.0
    %1380 = vmatpush1.msra.mxu0 %v288
    %1381 = vmatprep.subr.mxu0 0.0
    %1382 = vmatpush1.msra.mxu0 %v289
    %1383 = vmatprep.subr.mxu0 0.0
    %1384 = vmatpush1.msra.mxu0 %v290
    %1385 = vmatprep.subr.mxu0 0.0
    %1386 = vmatpush1.msra.mxu0 %v291
    %1387 = vmatprep.subr.mxu0 0.0
    %1388 = vmatpush1.msra.mxu0 %v292
    %1389 = vmatprep.subr.mxu0 0.0
    %1390 = vmatpush1.msra.mxu0 0.0
    %1391 = vmatprep.subr.mxu0 0.0
    %1392 = vmatpush1.msra.mxu0 0.0
    %1393 = vmatprep.subr.mxu0 0.0
    %1394 = vmatpush1.msra.mxu0 0.0
    %1395 = vmatprep.subr.mxu0 0.0
    %1396 = vmatpush1.msra.mxu0 0.0
    %1397 = vmatprep.subr.mxu0 0.0
    %1398 = vmatpush1.msra.mxu0 0.0
    %1399 = vmatprep.subr.mxu0 0.0
    %1400 = vmatpush1.msra.mxu0 0.0
    %1401 = vmatprep.subr.mxu0 0.0
    %1402 = vmatpush1.msra.mxu0 0.0
    %1403 = vmatprep.subr.mxu0 0.0
    %1404 = vmatpush1.msra.mxu0 0.0
    %1405 = vmatprep.subr.mxu0 0.0
    %1406 = vmatpush1.msra.mxu0 0.0
    %1407 = vmatprep.subr.mxu0 0.0
    %1408 = vmatpush1.msra.mxu0 0.0
    %1409 = vmatprep.subr.mxu0 0.0
    %1410 = vmatpush1.msra.mxu0 0.0
    %1411 = vmatprep.subr.mxu0 0.0
    %1412 = vmatpush1.msra.mxu0 0.0
    %1413 = vmatprep.subr.mxu0 0.0
    %1414 = vmatpush1.msra.mxu0 0.0
    %1415 = vmatprep.subr.mxu0 0.0
    %1416 = vmatpush1.msra.mxu0 0.0
    %1417 = vmatprep.subr.mxu0 0.0
    %1418 = vmatpush1.msra.mxu0 0.0
    %1419 = vmatprep.subr.mxu0 0.0
    %1420 = vmatpush1.msra.mxu0 0.0
    %1421 = vmatprep.mubr.f32.mxu0 0.0
    %1422 = vmatmul.mubr.f32.gmra.mrb[0].mxu0 %v1355
    %v1423 = vpop.f32.mrb[0].mxu0
    %v1424 = vadd.f32 0.0, %v1423
    %v1425 = vpop.f32.mrb[0].mxu0
    %1426 = vdwg.mxu0
    %v1427 = vadd.f32 %v1275, %v1424
    %vm1428 = vcmp.gt.f32.partialorder %v1427, 0.0
    %v1429 = vmul.f32 %v1427, 1.442695
    %v1430 = vpow.pop %v1429
    %v1431 = vsub.f32 %v1430, 1.0
    %v1432 = vsel %vm1428, %v1427, %v1431
    %1433 = vmatprep.subr.mxu0 0.0
    %1434 = vmatpush1.msra.mxu0 %v185
    %1435 = vmatprep.subr.mxu0 0.0
    %1436 = vmatpush1.msra.mxu0 %v186
    %1437 = vmatprep.subr.mxu0 0.0
    %1438 = vmatpush1.msra.mxu0 %v187
    %1439 = vmatprep.subr.mxu0 0.0
    %1440 = vmatpush1.msra.mxu0 %v188
    %1441 = vmatprep.subr.mxu0 0.0
    %1442 = vmatpush1.msra.mxu0 %v189
    %1443 = vmatprep.subr.mxu0 0.0
    %1444 = vmatpush1.msra.mxu0 %v190
    %1445 = vmatprep.subr.mxu0 0.0
    %1446 = vmatpush1.msra.mxu0 %v191
    %1447 = vmatprep.subr.mxu0 0.0
    %1448 = vmatpush1.msra.mxu0 %v192
    %1449 = vmatprep.subr.mxu0 0.0
    %1450 = vmatpush1.msra.mxu0 %v193
    %1451 = vmatprep.subr.mxu0 0.0
    %1452 = vmatpush1.msra.mxu0 %v194
    %1453 = vmatprep.subr.mxu0 0.0
    %1454 = vmatpush1.msra.mxu0 %v195
    %1455 = vmatprep.subr.mxu0 0.0
    %1456 = vmatpush1.msra.mxu0 %v196
    %1457 = vmatprep.subr.mxu0 0.0
    %1458 = vmatpush1.msra.mxu0 %v197
    %1459 = vmatprep.subr.mxu0 0.0
    %1460 = vmatpush1.msra.mxu0 %v198
    %1461 = vmatprep.subr.mxu0 0.0
    %1462 = vmatpush1.msra.mxu0 %v199
    %1463 = vmatprep.subr.mxu0 0.0
    %1464 = vmatpush1.msra.mxu0 %v200
    %1465 = vmatprep.subr.mxu0 0.0
    %1466 = vmatpush1.msra.mxu0 0.0
    %1467 = vmatprep.subr.mxu0 0.0
    %1468 = vmatpush1.msra.mxu0 0.0
    %1469 = vmatprep.subr.mxu0 0.0
    %1470 = vmatpush1.msra.mxu0 0.0
    %1471 = vmatprep.subr.mxu0 0.0
    %1472 = vmatpush1.msra.mxu0 0.0
    %1473 = vmatprep.subr.mxu0 0.0
    %1474 = vmatpush1.msra.mxu0 0.0
    %1475 = vmatprep.subr.mxu0 0.0
    %1476 = vmatpush1.msra.mxu0 0.0
    %1477 = vmatprep.subr.mxu0 0.0
    %1478 = vmatpush1.msra.mxu0 0.0
    %1479 = vmatprep.subr.mxu0 0.0
    %1480 = vmatpush1.msra.mxu0 0.0
    %1481 = vmatprep.subr.mxu0 0.0
    %1482 = vmatpush1.msra.mxu0 0.0
    %1483 = vmatprep.subr.mxu0 0.0
    %1484 = vmatpush1.msra.mxu0 0.0
    %1485 = vmatprep.subr.mxu0 0.0
    %1486 = vmatpush1.msra.mxu0 0.0
    %1487 = vmatprep.subr.mxu0 0.0
    %1488 = vmatpush1.msra.mxu0 0.0
    %1489 = vmatprep.subr.mxu0 0.0
    %1490 = vmatpush1.msra.mxu0 0.0
    %1491 = vmatprep.subr.mxu0 0.0
    %1492 = vmatpush1.msra.mxu0 0.0
    %1493 = vmatprep.subr.mxu0 0.0
    %1494 = vmatpush1.msra.mxu0 0.0
    %1495 = vmatprep.subr.mxu0 0.0
    %1496 = vmatpush1.msra.mxu0 0.0
    %1497 = vmatprep.mubr.f32.mxu0 0.0
    %1498 = vmatmul.mubr.f32.gmra.mrb[0].mxu0 %v1432
    %v1499 = vpop.f32.mrb[0].mxu0
    %v1500 = vadd.f32 0.0, %v1499
    %v1501 = vpop.f32.mrb[0].mxu0
    %1502 = vdwg.mxu0
    %vm1503 = vcmp.gt.f32.partialorder %v1500, 0.0
    %v1504 = vmul.f32 %v1500, 1.442695
    %v1505 = vpow.pop %v1504
    %v1506 = vsub.f32 %v1505, 1.0
    %v1507 = vsel %vm1503, %v1500, %v1506
    %v1508 = vadd.f32 %v1356, %v1507
    %1509 = vmatprep.subr.mxu0 0.0
    %1510 = vmatpush1.msra.mxu0 %v277
    %1511 = vmatprep.subr.mxu0 0.0
    %1512 = vmatpush1.msra.mxu0 %v278
    %1513 = vmatprep.subr.mxu0 0.0
    %1514 = vmatpush1.msra.mxu0 %v279
    %1515 = vmatprep.subr.mxu0 0.0
    %1516 = vmatpush1.msra.mxu0 %v280
    %1517 = vmatprep.subr.mxu0 0.0
    %1518 = vmatpush1.msra.mxu0 %v281
    %1519 = vmatprep.subr.mxu0 0.0
    %1520 = vmatpush1.msra.mxu0 %v282
    %1521 = vmatprep.subr.mxu0 0.0
    %1522 = vmatpush1.msra.mxu0 %v283
    %1523 = vmatprep.subr.mxu0 0.0
    %1524 = vmatpush1.msra.mxu0 %v284
    %1525 = vmatprep.subr.mxu0 0.0
    %1526 = vmatpush1.msra.mxu0 %v285
    %1527 = vmatprep.subr.mxu0 0.0
    %1528 = vmatpush1.msra.mxu0 %v286
    %1529 = vmatprep.subr.mxu0 0.0
    %1530 = vmatpush1.msra.mxu0 %v287
    %1531 = vmatprep.subr.mxu0 0.0
    %1532 = vmatpush1.msra.mxu0 %v288
    %1533 = vmatprep.subr.mxu0 0.0
    %1534 = vmatpush1.msra.mxu0 %v289
    %1535 = vmatprep.subr.mxu0 0.0
    %1536 = vmatpush1.msra.mxu0 %v290
    %1537 = vmatprep.subr.mxu0 0.0
    %1538 = vmatpush1.msra.mxu0 %v291
    %1539 = vmatprep.subr.mxu0 0.0
    %1540 = vmatpush1.msra.mxu0 %v292
    %1541 = vmatprep.subr.mxu0 0.0
    %1542 = vmatpush1.msra.mxu0 0.0
    %1543 = vmatprep.subr.mxu0 0.0
    %1544 = vmatpush1.msra.mxu0 0.0
    %1545 = vmatprep.subr.mxu0 0.0
    %1546 = vmatpush1.msra.mxu0 0.0
    %1547 = vmatprep.subr.mxu0 0.0
    %1548 = vmatpush1.msra.mxu0 0.0
    %1549 = vmatprep.subr.mxu0 0.0
    %1550 = vmatpush1.msra.mxu0 0.0
    %1551 = vmatprep.subr.mxu0 0.0
    %1552 = vmatpush1.msra.mxu0 0.0
    %1553 = vmatprep.subr.mxu0 0.0
    %1554 = vmatpush1.msra.mxu0 0.0
    %1555 = vmatprep.subr.mxu0 0.0
    %1556 = vmatpush1.msra.mxu0 0.0
    %1557 = vmatprep.subr.mxu0 0.0
    %1558 = vmatpush1.msra.mxu0 0.0
    %1559 = vmatprep.subr.mxu0 0.0
    %1560 = vmatpush1.msra.mxu0 0.0
    %1561 = vmatprep.subr.mxu0 0.0
    %1562 = vmatpush1.msra.mxu0 0.0
    %1563 = vmatprep.subr.mxu0 0.0
    %1564 = vmatpush1.msra.mxu0 0.0
    %1565 = vmatprep.subr.mxu0 0.0
    %1566 = vmatpush1.msra.mxu0 0.0
    %1567 = vmatprep.subr.mxu0 0.0
    %1568 = vmatpush1.msra.mxu0 0.0
    %1569 = vmatprep.subr.mxu0 0.0
    %1570 = vmatpush1.msra.mxu0 0.0
    %1571 = vmatprep.subr.mxu0 0.0
    %1572 = vmatpush1.msra.mxu0 0.0
    %1573 = vmatprep.mubr.f32.mxu0 0.0
    %1574 = vmatmul.mubr.f32.gmra.mrb[0].mxu0 %v1507
    %v1575 = vpop.f32.mrb[0].mxu0
    %v1576 = vadd.f32 0.0, %v1575
    %v1577 = vpop.f32.mrb[0].mxu0
    %1578 = vdwg.mxu0
    %v1579 = vadd.f32 %v1427, %v1576
    %vm1580 = vcmp.gt.f32.partialorder %v1579, 0.0
    %v1581 = vmul.f32 %v1579, 1.442695
    %v1582 = vpow.pop %v1581
    %v1583 = vsub.f32 %v1582, 1.0
    %v1584 = vsel %vm1580, %v1579, %v1583
    %1585 = vmatprep.subr.mxu0 0.0
    %1586 = vmatpush1.msra.mxu0 %v185
    %1587 = vmatprep.subr.mxu0 0.0
    %1588 = vmatpush1.msra.mxu0 %v186
    %1589 = vmatprep.subr.mxu0 0.0
    %1590 = vmatpush1.msra.mxu0 %v187
    %1591 = vmatprep.subr.mxu0 0.0
    %1592 = vmatpush1.msra.mxu0 %v188
    %1593 = vmatprep.subr.mxu0 0.0
    %1594 = vmatpush1.msra.mxu0 %v189
    %1595 = vmatprep.subr.mxu0 0.0
    %1596 = vmatpush1.msra.mxu0 %v190
    %1597 = vmatprep.subr.mxu0 0.0
    %1598 = vmatpush1.msra.mxu0 %v191
    %1599 = vmatprep.subr.mxu0 0.0
    %1600 = vmatpush1.msra.mxu0 %v192
    %1601 = vmatprep.subr.mxu0 0.0
    %1602 = vmatpush1.msra.mxu0 %v193
    %1603 = vmatprep.subr.mxu0 0.0
    %1604 = vmatpush1.msra.mxu0 %v194
    %1605 = vmatprep.subr.mxu0 0.0
    %1606 = vmatpush1.msra.mxu0 %v195
    %1607 = vmatprep.subr.mxu0 0.0
    %1608 = vmatpush1.msra.mxu0 %v196
    %1609 = vmatprep.subr.mxu0 0.0
    %1610 = vmatpush1.msra.mxu0 %v197
    %1611 = vmatprep.subr.mxu0 0.0
    %1612 = vmatpush1.msra.mxu0 %v198
    %1613 = vmatprep.subr.mxu0 0.0
    %1614 = vmatpush1.msra.mxu0 %v199
    %1615 = vmatprep.subr.mxu0 0.0
    %1616 = vmatpush1.msra.mxu0 %v200
    %1617 = vmatprep.subr.mxu0 0.0
    %1618 = vmatpush1.msra.mxu0 0.0
    %1619 = vmatprep.subr.mxu0 0.0
    %1620 = vmatpush1.msra.mxu0 0.0
    %1621 = vmatprep.subr.mxu0 0.0
    %1622 = vmatpush1.msra.mxu0 0.0
    %1623 = vmatprep.subr.mxu0 0.0
    %1624 = vmatpush1.msra.mxu0 0.0
    %1625 = vmatprep.subr.mxu0 0.0
    %1626 = vmatpush1.msra.mxu0 0.0
    %1627 = vmatprep.subr.mxu0 0.0
    %1628 = vmatpush1.msra.mxu0 0.0
    %1629 = vmatprep.subr.mxu0 0.0
    %1630 = vmatpush1.msra.mxu0 0.0
    %1631 = vmatprep.subr.mxu0 0.0
    %1632 = vmatpush1.msra.mxu0 0.0
    %1633 = vmatprep.subr.mxu0 0.0
    %1634 = vmatpush1.msra.mxu0 0.0
    %1635 = vmatprep.subr.mxu0 0.0
    %1636 = vmatpush1.msra.mxu0 0.0
    %1637 = vmatprep.subr.mxu0 0.0
    %1638 = vmatpush1.msra.mxu0 0.0
    %1639 = vmatprep.subr.mxu0 0.0
    %1640 = vmatpush1.msra.mxu0 0.0
    %1641 = vmatprep.subr.mxu0 0.0
    %1642 = vmatpush1.msra.mxu0 0.0
    %1643 = vmatprep.subr.mxu0 0.0
    %1644 = vmatpush1.msra.mxu0 0.0
    %1645 = vmatprep.subr.mxu0 0.0
    %1646 = vmatpush1.msra.mxu0 0.0
    %1647 = vmatprep.subr.mxu0 0.0
    %1648 = vmatpush1.msra.mxu0 0.0
    %1649 = vmatprep.mubr.f32.mxu0 0.0
    %1650 = vmatmul.mubr.f32.gmra.mrb[0].mxu0 %v1584
    %v1651 = vpop.f32.mrb[0].mxu0
    %v1652 = vadd.f32 0.0, %v1651
    %v1653 = vpop.f32.mrb[0].mxu0
    %1654 = vdwg.mxu0
    %vm1655 = vcmp.gt.f32.partialorder %v1652, 0.0
    %v1656 = vmul.f32 %v1652, 1.442695
    %v1657 = vpow.pop %v1656
    %v1658 = vsub.f32 %v1657, 1.0
    %v1659 = vsel %vm1655, %v1652, %v1658
    %v1660 = vadd.f32 %v1508, %v1659
    %1661 = vmatprep.subr.mxu0 0.0
    %1662 = vmatpush1.msra.mxu0 %v277
    %1663 = vmatprep.subr.mxu0 0.0
    %1664 = vmatpush1.msra.mxu0 %v278
    %1665 = vmatprep.subr.mxu0 0.0
    %1666 = vmatpush1.msra.mxu0 %v279
    %1667 = vmatprep.subr.mxu0 0.0
    %1668 = vmatpush1.msra.mxu0 %v280
    %1669 = vmatprep.subr.mxu0 0.0
    %1670 = vmatpush1.msra.mxu0 %v281
    %1671 = vmatprep.subr.mxu0 0.0
    %1672 = vmatpush1.msra.mxu0 %v282
    %1673 = vmatprep.subr.mxu0 0.0
    %1674 = vmatpush1.msra.mxu0 %v283
    %1675 = vmatprep.subr.mxu0 0.0
    %1676 = vmatpush1.msra.mxu0 %v284
    %1677 = vmatprep.subr.mxu0 0.0
    %1678 = vmatpush1.msra.mxu0 %v285
    %1679 = vmatprep.subr.mxu0 0.0
    %1680 = vmatpush1.msra.mxu0 %v286
    %1681 = vmatprep.subr.mxu0 0.0
    %1682 = vmatpush1.msra.mxu0 %v287
    %1683 = vmatprep.subr.mxu0 0.0
    %1684 = vmatpush1.msra.mxu0 %v288
    %1685 = vmatprep.subr.mxu0 0.0
    %1686 = vmatpush1.msra.mxu0 %v289
    %1687 = vmatprep.subr.mxu0 0.0
    %1688 = vmatpush1.msra.mxu0 %v290
    %1689 = vmatprep.subr.mxu0 0.0
    %1690 = vmatpush1.msra.mxu0 %v291
    %1691 = vmatprep.subr.mxu0 0.0
    %1692 = vmatpush1.msra.mxu0 %v292
    %1693 = vmatprep.subr.mxu0 0.0
    %1694 = vmatpush1.msra.mxu0 0.0
    %1695 = vmatprep.subr.mxu0 0.0
    %1696 = vmatpush1.msra.mxu0 0.0
    %1697 = vmatprep.subr.mxu0 0.0
    %1698 = vmatpush1.msra.mxu0 0.0
    %1699 = vmatprep.subr.mxu0 0.0
    %1700 = vmatpush1.msra.mxu0 0.0
    %1701 = vmatprep.subr.mxu0 0.0
    %1702 = vmatpush1.msra.mxu0 0.0
    %1703 = vmatprep.subr.mxu0 0.0
    %1704 = vmatpush1.msra.mxu0 0.0
    %1705 = vmatprep.subr.mxu0 0.0
    %1706 = vmatpush1.msra.mxu0 0.0
    %1707 = vmatprep.subr.mxu0 0.0
    %1708 = vmatpush1.msra.mxu0 0.0
    %1709 = vmatprep.subr.mxu0 0.0
    %1710 = vmatpush1.msra.mxu0 0.0
    %1711 = vmatprep.subr.mxu0 0.0
    %1712 = vmatpush1.msra.mxu0 0.0
    %1713 = vmatprep.subr.mxu0 0.0
    %1714 = vmatpush1.msra.mxu0 0.0
    %1715 = vmatprep.subr.mxu0 0.0
    %1716 = vmatpush1.msra.mxu0 0.0
    %1717 = vmatprep.subr.mxu0 0.0
    %1718 = vmatpush1.msra.mxu0 0.0
    %1719 = vmatprep.subr.mxu0 0.0
    %1720 = vmatpush1.msra.mxu0 0.0
    %1721 = vmatprep.subr.mxu0 0.0
    %1722 = vmatpush1.msra.mxu0 0.0
    %1723 = vmatprep.subr.mxu0 0.0
    %1724 = vmatpush1.msra.mxu0 0.0
    %1725 = vmatprep.mubr.f32.mxu0 0.0
    %1726 = vmatmul.mubr.f32.gmra.mrb[0].mxu0 %v1659
    %v1727 = vpop.f32.mrb[0].mxu0
    %v1728 = vadd.f32 0.0, %v1727
    %v1729 = vpop.f32.mrb[0].mxu0
    %1730 = vdwg.mxu0
    %v1731 = vadd.f32 %v1579, %v1728
    %vm1732 = vcmp.gt.f32.partialorder %v1731, 0.0
    %v1733 = vmul.f32 %v1731, 1.442695
    %v1734 = vpow.pop %v1733
    %v1735 = vsub.f32 %v1734, 1.0
    %v1736 = vsel %vm1732, %v1731, %v1735
    %1737 = vmatprep.subr.mxu0 0.0
    %1738 = vmatpush1.msra.mxu0 %v185
    %1739 = vmatprep.subr.mxu0 0.0
    %1740 = vmatpush1.msra.mxu0 %v186
    %1741 = vmatprep.subr.mxu0 0.0
    %1742 = vmatpush1.msra.mxu0 %v187
    %1743 = vmatprep.subr.mxu0 0.0
    %1744 = vmatpush1.msra.mxu0 %v188
    %1745 = vmatprep.subr.mxu0 0.0
    %1746 = vmatpush1.msra.mxu0 %v189
    %1747 = vmatprep.subr.mxu0 0.0
    %1748 = vmatpush1.msra.mxu0 %v190
    %1749 = vmatprep.subr.mxu0 0.0
    %1750 = vmatpush1.msra.mxu0 %v191
    %1751 = vmatprep.subr.mxu0 0.0
    %1752 = vmatpush1.msra.mxu0 %v192
    %1753 = vmatprep.subr.mxu0 0.0
    %1754 = vmatpush1.msra.mxu0 %v193
    %1755 = vmatprep.subr.mxu0 0.0
    %1756 = vmatpush1.msra.mxu0 %v194
    %1757 = vmatprep.subr.mxu0 0.0
    %1758 = vmatpush1.msra.mxu0 %v195
    %1759 = vmatprep.subr.mxu0 0.0
    %1760 = vmatpush1.msra.mxu0 %v196
    %1761 = vmatprep.subr.mxu0 0.0
    %1762 = vmatpush1.msra.mxu0 %v197
    %1763 = vmatprep.subr.mxu0 0.0
    %1764 = vmatpush1.msra.mxu0 %v198
    %1765 = vmatprep.subr.mxu0 0.0
    %1766 = vmatpush1.msra.mxu0 %v199
    %1767 = vmatprep.subr.mxu0 0.0
    %1768 = vmatpush1.msra.mxu0 %v200
    %1769 = vmatprep.subr.mxu0 0.0
    %1770 = vmatpush1.msra.mxu0 0.0
    %1771 = vmatprep.subr.mxu0 0.0
    %1772 = vmatpush1.msra.mxu0 0.0
    %1773 = vmatprep.subr.mxu0 0.0
    %1774 = vmatpush1.msra.mxu0 0.0
    %1775 = vmatprep.subr.mxu0 0.0
    %1776 = vmatpush1.msra.mxu0 0.0
    %1777 = vmatprep.subr.mxu0 0.0
    %1778 = vmatpush1.msra.mxu0 0.0
    %1779 = vmatprep.subr.mxu0 0.0
    %1780 = vmatpush1.msra.mxu0 0.0
    %1781 = vmatprep.subr.mxu0 0.0
    %1782 = vmatpush1.msra.mxu0 0.0
    %1783 = vmatprep.subr.mxu0 0.0
    %1784 = vmatpush1.msra.mxu0 0.0
    %1785 = vmatprep.subr.mxu0 0.0
    %1786 = vmatpush1.msra.mxu0 0.0
    %1787 = vmatprep.subr.mxu0 0.0
    %1788 = vmatpush1.msra.mxu0 0.0
    %1789 = vmatprep.subr.mxu0 0.0
    %1790 = vmatpush1.msra.mxu0 0.0
    %1791 = vmatprep.subr.mxu0 0.0
    %1792 = vmatpush1.msra.mxu0 0.0
    %1793 = vmatprep.subr.mxu0 0.0
    %1794 = vmatpush1.msra.mxu0 0.0
    %1795 = vmatprep.subr.mxu0 0.0
    %1796 = vmatpush1.msra.mxu0 0.0
    %1797 = vmatprep.subr.mxu0 0.0
    %1798 = vmatpush1.msra.mxu0 0.0
    %1799 = vmatprep.subr.mxu0 0.0
    %1800 = vmatpush1.msra.mxu0 0.0
    %1801 = vmatprep.mubr.f32.mxu0 0.0
    %1802 = vmatmul.mubr.f32.gmra.mrb[0].mxu0 %v1736
    %v1803 = vpop.f32.mrb[0].mxu0
    %v1804 = vadd.f32 0.0, %v1803
    %v1805 = vpop.f32.mrb[0].mxu0
    %1806 = vdwg.mxu0
    %vm1807 = vcmp.gt.f32.partialorder %v1804, 0.0
    %v1808 = vmul.f32 %v1804, 1.442695
    %v1809 = vpow.pop %v1808
    %v1810 = vsub.f32 %v1809, 1.0
    %v1811 = vsel %vm1807, %v1804, %v1810
    %v1812 = vadd.f32 %v1660, %v1811
    %1813 = vmatprep.subr.mxu0 0.0
    %1814 = vmatpush1.msra.mxu0 %v277
    %1815 = vmatprep.subr.mxu0 0.0
    %1816 = vmatpush1.msra.mxu0 %v278
    %1817 = vmatprep.subr.mxu0 0.0
    %1818 = vmatpush1.msra.mxu0 %v279
    %1819 = vmatprep.subr.mxu0 0.0
    %1820 = vmatpush1.msra.mxu0 %v280
    %1821 = vmatprep.subr.mxu0 0.0
    %1822 = vmatpush1.msra.mxu0 %v281
    %1823 = vmatprep.subr.mxu0 0.0
    %1824 = vmatpush1.msra.mxu0 %v282
    %1825 = vmatprep.subr.mxu0 0.0
    %1826 = vmatpush1.msra.mxu0 %v283
    %1827 = vmatprep.subr.mxu0 0.0
    %1828 = vmatpush1.msra.mxu0 %v284
    %1829 = vmatprep.subr.mxu0 0.0
    %1830 = vmatpush1.msra.mxu0 %v285
    %1831 = vmatprep.subr.mxu0 0.0
    %1832 = vmatpush1.msra.mxu0 %v286
    %1833 = vmatprep.subr.mxu0 0.0
    %1834 = vmatpush1.msra.mxu0 %v287
    %1835 = vmatprep.subr.mxu0 0.0
    %1836 = vmatpush1.msra.mxu0 %v288
    %1837 = vmatprep.subr.mxu0 0.0
    %1838 = vmatpush1.msra.mxu0 %v289
    %1839 = vmatprep.subr.mxu0 0.0
    %1840 = vmatpush1.msra.mxu0 %v290
    %1841 = vmatprep.subr.mxu0 0.0
    %1842 = vmatpush1.msra.mxu0 %v291
    %1843 = vmatprep.subr.mxu0 0.0
    %1844 = vmatpush1.msra.mxu0 %v292
    %1845 = vmatprep.subr.mxu0 0.0
    %1846 = vmatpush1.msra.mxu0 0.0
    %1847 = vmatprep.subr.mxu0 0.0
    %1848 = vmatpush1.msra.mxu0 0.0
    %1849 = vmatprep.subr.mxu0 0.0
    %1850 = vmatpush1.msra.mxu0 0.0
    %1851 = vmatprep.subr.mxu0 0.0
    %1852 = vmatpush1.msra.mxu0 0.0
    %1853 = vmatprep.subr.mxu0 0.0
    %1854 = vmatpush1.msra.mxu0 0.0
    %1855 = vmatprep.subr.mxu0 0.0
    %1856 = vmatpush1.msra.mxu0 0.0
    %1857 = vmatprep.subr.mxu0 0.0
    %1858 = vmatpush1.msra.mxu0 0.0
    %1859 = vmatprep.subr.mxu0 0.0
    %1860 = vmatpush1.msra.mxu0 0.0
    %1861 = vmatprep.subr.mxu0 0.0
    %1862 = vmatpush1.msra.mxu0 0.0
    %1863 = vmatprep.subr.mxu0 0.0
    %1864 = vmatpush1.msra.mxu0 0.0
    %1865 = vmatprep.subr.mxu0 0.0
    %1866 = vmatpush1.msra.mxu0 0.0
    %1867 = vmatprep.subr.mxu0 0.0
    %1868 = vmatpush1.msra.mxu0 0.0
    %1869 = vmatprep.subr.mxu0 0.0
    %1870 = vmatpush1.msra.mxu0 0.0
    %1871 = vmatprep.subr.mxu0 0.0
    %1872 = vmatpush1.msra.mxu0 0.0
    %1873 = vmatprep.subr.mxu0 0.0
    %1874 = vmatpush1.msra.mxu0 0.0
    %1875 = vmatprep.subr.mxu0 0.0
    %1876 = vmatpush1.msra.mxu0 0.0
    %1877 = vmatprep.mubr.f32.mxu0 0.0
    %1878 = vmatmul.mubr.f32.gmra.mrb[0].mxu0 %v1811
    %v1879 = vpop.f32.mrb[0].mxu0
    %v1880 = vadd.f32 0.0, %v1879
    %v1881 = vpop.f32.mrb[0].mxu0
    %1882 = vdwg.mxu0
    %v1883 = vadd.f32 %v1731, %v1880
    %vm1884 = vcmp.gt.f32.partialorder %v1883, 0.0
    %v1885 = vmul.f32 %v1883, 1.442695
    %v1886 = vpow.pop %v1885
    %v1887 = vsub.f32 %v1886, 1.0
    %v1888 = vsel %vm1884, %v1883, %v1887
    %1889 = vmatprep.subr.mxu0 0.0
    %1890 = vmatpush1.msra.mxu0 %v185
    %1891 = vmatprep.subr.mxu0 0.0
    %1892 = vmatpush1.msra.mxu0 %v186
    %1893 = vmatprep.subr.mxu0 0.0
    %1894 = vmatpush1.msra.mxu0 %v187
    %1895 = vmatprep.subr.mxu0 0.0
    %1896 = vmatpush1.msra.mxu0 %v188
    %1897 = vmatprep.subr.mxu0 0.0
    %1898 = vmatpush1.msra.mxu0 %v189
    %1899 = vmatprep.subr.mxu0 0.0
    %1900 = vmatpush1.msra.mxu0 %v190
    %1901 = vmatprep.subr.mxu0 0.0
    %1902 = vmatpush1.msra.mxu0 %v191
    %1903 = vmatprep.subr.mxu0 0.0
    %1904 = vmatpush1.msra.mxu0 %v192
    %1905 = vmatprep.subr.mxu0 0.0
    %1906 = vmatpush1.msra.mxu0 %v193
    %1907 = vmatprep.subr.mxu0 0.0
    %1908 = vmatpush1.msra.mxu0 %v194
    %1909 = vmatprep.subr.mxu0 0.0
    %1910 = vmatpush1.msra.mxu0 %v195
    %1911 = vmatprep.subr.mxu0 0.0
    %1912 = vmatpush1.msra.mxu0 %v196
    %1913 = vmatprep.subr.mxu0 0.0
    %1914 = vmatpush1.msra.mxu0 %v197
    %1915 = vmatprep.subr.mxu0 0.0
    %1916 = vmatpush1.msra.mxu0 %v198
    %1917 = vmatprep.subr.mxu0 0.0
    %1918 = vmatpush1.msra.mxu0 %v199
    %1919 = vmatprep.subr.mxu0 0.0
    %1920 = vmatpush1.msra.mxu0 %v200
    %1921 = vmatprep.subr.mxu0 0.0
    %1922 = vmatpush1.msra.mxu0 0.0
    %1923 = vmatprep.subr.mxu0 0.0
    %1924 = vmatpush1.msra.mxu0 0.0
    %1925 = vmatprep.subr.mxu0 0.0
    %1926 = vmatpush1.msra.mxu0 0.0
    %1927 = vmatprep.subr.mxu0 0.0
    %1928 = vmatpush1.msra.mxu0 0.0
    %1929 = vmatprep.subr.mxu0 0.0
    %1930 = vmatpush1.msra.mxu0 0.0
    %1931 = vmatprep.subr.mxu0 0.0
    %1932 = vmatpush1.msra.mxu0 0.0
    %1933 = vmatprep.subr.mxu0 0.0
    %1934 = vmatpush1.msra.mxu0 0.0
    %1935 = vmatprep.subr.mxu0 0.0
    %1936 = vmatpush1.msra.mxu0 0.0
    %1937 = vmatprep.subr.mxu0 0.0
    %1938 = vmatpush1.msra.mxu0 0.0
    %1939 = vmatprep.subr.mxu0 0.0
    %1940 = vmatpush1.msra.mxu0 0.0
    %1941 = vmatprep.subr.mxu0 0.0
    %1942 = vmatpush1.msra.mxu0 0.0
    %1943 = vmatprep.subr.mxu0 0.0
    %1944 = vmatpush1.msra.mxu0 0.0
    %1945 = vmatprep.subr.mxu0 0.0
    %1946 = vmatpush1.msra.mxu0 0.0
    %1947 = vmatprep.subr.mxu0 0.0
    %1948 = vmatpush1.msra.mxu0 0.0
    %1949 = vmatprep.subr.mxu0 0.0
    %1950 = vmatpush1.msra.mxu0 0.0
    %1951 = vmatprep.subr.mxu0 0.0
    %1952 = vmatpush1.msra.mxu0 0.0
    %1953 = vmatprep.mubr.f32.mxu0 0.0
    %1954 = vmatmul.mubr.f32.gmra.mrb[0].mxu0 %v1888
    %v1955 = vpop.f32.mrb[0].mxu0
    %v1956 = vadd.f32 0.0, %v1955
    %v1957 = vpop.f32.mrb[0].mxu0
    %1958 = vdwg.mxu0
    %vm1959 = vcmp.gt.f32.partialorder %v1956, 0.0
    %v1960 = vmul.f32 %v1956, 1.442695
    %v1961 = vpow.pop %v1960
    %v1962 = vsub.f32 %v1961, 1.0
    %v1963 = vsel %vm1959, %v1956, %v1962
    %v1964 = vadd.f32 %v1812, %v1963
    %1965 = vmatprep.subr.mxu0 0.0
    %1966 = vmatpush1.msra.mxu0 %v277
    %1967 = vmatprep.subr.mxu0 0.0
    %1968 = vmatpush1.msra.mxu0 %v278
    %1969 = vmatprep.subr.mxu0 0.0
    %1970 = vmatpush1.msra.mxu0 %v279
    %1971 = vmatprep.subr.mxu0 0.0
    %1972 = vmatpush1.msra.mxu0 %v280
    %1973 = vmatprep.subr.mxu0 0.0
    %1974 = vmatpush1.msra.mxu0 %v281
    %1975 = vmatprep.subr.mxu0 0.0
    %1976 = vmatpush1.msra.mxu0 %v282
    %1977 = vmatprep.subr.mxu0 0.0
    %1978 = vmatpush1.msra.mxu0 %v283
    %1979 = vmatprep.subr.mxu0 0.0
    %1980 = vmatpush1.msra.mxu0 %v284
    %1981 = vmatprep.subr.mxu0 0.0
    %1982 = vmatpush1.msra.mxu0 %v285
    %1983 = vmatprep.subr.mxu0 0.0
    %1984 = vmatpush1.msra.mxu0 %v286
    %1985 = vmatprep.subr.mxu0 0.0
    %1986 = vmatpush1.msra.mxu0 %v287
    %1987 = vmatprep.subr.mxu0 0.0
    %1988 = vmatpush1.msra.mxu0 %v288
    %1989 = vmatprep.subr.mxu0 0.0
    %1990 = vmatpush1.msra.mxu0 %v289
    %1991 = vmatprep.subr.mxu0 0.0
    %1992 = vmatpush1.msra.mxu0 %v290
    %1993 = vmatprep.subr.mxu0 0.0
    %1994 = vmatpush1.msra.mxu0 %v291
    %1995 = vmatprep.subr.mxu0 0.0
    %1996 = vmatpush1.msra.mxu0 %v292
    %1997 = vmatprep.subr.mxu0 0.0
    %1998 = vmatpush1.msra.mxu0 0.0
    %1999 = vmatprep.subr.mxu0 0.0
    %2000 = vmatpush1.msra.mxu0 0.0
    %2001 = vmatprep.subr.mxu0 0.0
    %2002 = vmatpush1.msra.mxu0 0.0
    %2003 = vmatprep.subr.mxu0 0.0
    %2004 = vmatpush1.msra.mxu0 0.0
    %2005 = vmatprep.subr.mxu0 0.0
    %2006 = vmatpush1.msra.mxu0 0.0
    %2007 = vmatprep.subr.mxu0 0.0
    %2008 = vmatpush1.msra.mxu0 0.0
    %2009 = vmatprep.subr.mxu0 0.0
    %2010 = vmatpush1.msra.mxu0 0.0
    %2011 = vmatprep.subr.mxu0 0.0
    %2012 = vmatpush1.msra.mxu0 0.0
    %2013 = vmatprep.subr.mxu0 0.0
    %2014 = vmatpush1.msra.mxu0 0.0
    %2015 = vmatprep.subr.mxu0 0.0
    %2016 = vmatpush1.msra.mxu0 0.0
    %2017 = vmatprep.subr.mxu0 0.0
    %2018 = vmatpush1.msra.mxu0 0.0
    %2019 = vmatprep.subr.mxu0 0.0
    %2020 = vmatpush1.msra.mxu0 0.0
    %2021 = vmatprep.subr.mxu0 0.0
    %2022 = vmatpush1.msra.mxu0 0.0
    %2023 = vmatprep.subr.mxu0 0.0
    %2024 = vmatpush1.msra.mxu0 0.0
    %2025 = vmatprep.subr.mxu0 0.0
    %2026 = vmatpush1.msra.mxu0 0.0
    %2027 = vmatprep.subr.mxu0 0.0
    %2028 = vmatpush1.msra.mxu0 0.0
    %2029 = vmatprep.mubr.f32.mxu0 0.0
    %2030 = vmatmul.mubr.f32.gmra.mrb[0].mxu0 %v1963
    %v2031 = vpop.f32.mrb[0].mxu0
    %v2032 = vadd.f32 0.0, %v2031
    %v2033 = vpop.f32.mrb[0].mxu0
    %2034 = vdwg.mxu0
    %v2035 = vadd.f32 %v1883, %v2032
    %vm2036 = vcmp.gt.f32.partialorder %v2035, 0.0
    %v2037 = vmul.f32 %v2035, 1.442695
    %v2038 = vpow.pop %v2037
    %v2039 = vsub.f32 %v2038, 1.0
    %v2040 = vsel %vm2036, %v2035, %v2039
    %2041 = vmatprep.subr.mxu0 0.0
    %2042 = vmatpush1.msra.mxu0 %v185
    %2043 = vmatprep.subr.mxu0 0.0
    %2044 = vmatpush1.msra.mxu0 %v186
    %2045 = vmatprep.subr.mxu0 0.0
    %2046 = vmatpush1.msra.mxu0 %v187
    %2047 = vmatprep.subr.mxu0 0.0
    %2048 = vmatpush1.msra.mxu0 %v188
    %2049 = vmatprep.subr.mxu0 0.0
    %2050 = vmatpush1.msra.mxu0 %v189
    %2051 = vmatprep.subr.mxu0 0.0
    %2052 = vmatpush1.msra.mxu0 %v190
    %2053 = vmatprep.subr.mxu0 0.0
    %2054 = vmatpush1.msra.mxu0 %v191
    %2055 = vmatprep.subr.mxu0 0.0
    %2056 = vmatpush1.msra.mxu0 %v192
    %2057 = vmatprep.subr.mxu0 0.0
    %2058 = vmatpush1.msra.mxu0 %v193
    %2059 = vmatprep.subr.mxu0 0.0
    %2060 = vmatpush1.msra.mxu0 %v194
    %2061 = vmatprep.subr.mxu0 0.0
    %2062 = vmatpush1.msra.mxu0 %v195
    %2063 = vmatprep.subr.mxu0 0.0
    %2064 = vmatpush1.msra.mxu0 %v196
    %2065 = vmatprep.subr.mxu0 0.0
    %2066 = vmatpush1.msra.mxu0 %v197
    %2067 = vmatprep.subr.mxu0 0.0
    %2068 = vmatpush1.msra.mxu0 %v198
    %2069 = vmatprep.subr.mxu0 0.0
    %2070 = vmatpush1.msra.mxu0 %v199
    %2071 = vmatprep.subr.mxu0 0.0
    %2072 = vmatpush1.msra.mxu0 %v200
    %2073 = vmatprep.subr.mxu0 0.0
    %2074 = vmatpush1.msra.mxu0 0.0
    %2075 = vmatprep.subr.mxu0 0.0
    %2076 = vmatpush1.msra.mxu0 0.0
    %2077 = vmatprep.subr.mxu0 0.0
    %2078 = vmatpush1.msra.mxu0 0.0
    %2079 = vmatprep.subr.mxu0 0.0
    %2080 = vmatpush1.msra.mxu0 0.0
    %2081 = vmatprep.subr.mxu0 0.0
    %2082 = vmatpush1.msra.mxu0 0.0
    %2083 = vmatprep.subr.mxu0 0.0
    %2084 = vmatpush1.msra.mxu0 0.0
    %2085 = vmatprep.subr.mxu0 0.0
    %2086 = vmatpush1.msra.mxu0 0.0
    %2087 = vmatprep.subr.mxu0 0.0
    %2088 = vmatpush1.msra.mxu0 0.0
    %2089 = vmatprep.subr.mxu0 0.0
    %2090 = vmatpush1.msra.mxu0 0.0
    %2091 = vmatprep.subr.mxu0 0.0
    %2092 = vmatpush1.msra.mxu0 0.0
    %2093 = vmatprep.subr.mxu0 0.0
    %2094 = vmatpush1.msra.mxu0 0.0
    %2095 = vmatprep.subr.mxu0 0.0
    %2096 = vmatpush1.msra.mxu0 0.0
    %2097 = vmatprep.subr.mxu0 0.0
    %2098 = vmatpush1.msra.mxu0 0.0
    %2099 = vmatprep.subr.mxu0 0.0
    %2100 = vmatpush1.msra.mxu0 0.0
    %2101 = vmatprep.subr.mxu0 0.0
    %2102 = vmatpush1.msra.mxu0 0.0
    %2103 = vmatprep.subr.mxu0 0.0
    %2104 = vmatpush1.msra.mxu0 0.0
    %2105 = vmatprep.mubr.f32.mxu0 0.0
    %2106 = vmatmul.mubr.f32.gmra.mrb[0].mxu0 %v2040
    %v2107 = vpop.f32.mrb[0].mxu0
    %v2108 = vadd.f32 0.0, %v2107
    %v2109 = vpop.f32.mrb[0].mxu0
    %2110 = vdwg.mxu0
    %vm2111 = vcmp.gt.f32.partialorder %v2108, 0.0
    %v2112 = vmul.f32 %v2108, 1.442695
    %v2113 = vpow.pop %v2112
    %v2114 = vsub.f32 %v2113, 1.0
    %v2115 = vsel %vm2111, %v2108, %v2114
    %v2116 = vadd.f32 %v1964, %v2115
    %2117 = vmatprep.subr.mxu0 0.0
    %2118 = vmatpush1.msra.mxu0 %v277
    %2119 = vmatprep.subr.mxu0 0.0
    %2120 = vmatpush1.msra.mxu0 %v278
    %2121 = vmatprep.subr.mxu0 0.0
    %2122 = vmatpush1.msra.mxu0 %v279
    %2123 = vmatprep.subr.mxu0 0.0
    %2124 = vmatpush1.msra.mxu0 %v280
    %2125 = vmatprep.subr.mxu0 0.0
    %2126 = vmatpush1.msra.mxu0 %v281
    %2127 = vmatprep.subr.mxu0 0.0
    %2128 = vmatpush1.msra.mxu0 %v282
    %2129 = vmatprep.subr.mxu0 0.0
    %2130 = vmatpush1.msra.mxu0 %v283
    %2131 = vmatprep.subr.mxu0 0.0
    %2132 = vmatpush1.msra.mxu0 %v284
    %2133 = vmatprep.subr.mxu0 0.0
    %2134 = vmatpush1.msra.mxu0 %v285
    %2135 = vmatprep.subr.mxu0 0.0
    %2136 = vmatpush1.msra.mxu0 %v286
    %2137 = vmatprep.subr.mxu0 0.0
    %2138 = vmatpush1.msra.mxu0 %v287
    %2139 = vmatprep.subr.mxu0 0.0
    %2140 = vmatpush1.msra.mxu0 %v288
    %2141 = vmatprep.subr.mxu0 0.0
    %2142 = vmatpush1.msra.mxu0 %v289
    %2143 = vmatprep.subr.mxu0 0.0
    %2144 = vmatpush1.msra.mxu0 %v290
    %2145 = vmatprep.subr.mxu0 0.0
    %2146 = vmatpush1.msra.mxu0 %v291
    %2147 = vmatprep.subr.mxu0 0.0
    %2148 = vmatpush1.msra.mxu0 %v292
    %2149 = vmatprep.subr.mxu0 0.0
    %2150 = vmatpush1.msra.mxu0 0.0
    %2151 = vmatprep.subr.mxu0 0.0
    %2152 = vmatpush1.msra.mxu0 0.0
    %2153 = vmatprep.subr.mxu0 0.0
    %2154 = vmatpush1.msra.mxu0 0.0
    %2155 = vmatprep.subr.mxu0 0.0
    %2156 = vmatpush1.msra.mxu0 0.0
    %2157 = vmatprep.subr.mxu0 0.0
    %2158 = vmatpush1.msra.mxu0 0.0
    %2159 = vmatprep.subr.mxu0 0.0
    %2160 = vmatpush1.msra.mxu0 0.0
    %2161 = vmatprep.subr.mxu0 0.0
    %2162 = vmatpush1.msra.mxu0 0.0
    %2163 = vmatprep.subr.mxu0 0.0
    %2164 = vmatpush1.msra.mxu0 0.0
    %2165 = vmatprep.subr.mxu0 0.0
    %2166 = vmatpush1.msra.mxu0 0.0
    %2167 = vmatprep.subr.mxu0 0.0
    %2168 = vmatpush1.msra.mxu0 0.0
    %2169 = vmatprep.subr.mxu0 0.0
    %2170 = vmatpush1.msra.mxu0 0.0
    %2171 = vmatprep.subr.mxu0 0.0
    %2172 = vmatpush1.msra.mxu0 0.0
    %2173 = vmatprep.subr.mxu0 0.0
    %2174 = vmatpush1.msra.mxu0 0.0
    %2175 = vmatprep.subr.mxu0 0.0
    %2176 = vmatpush1.msra.mxu0 0.0
    %2177 = vmatprep.subr.mxu0 0.0
    %2178 = vmatpush1.msra.mxu0 0.0
    %2179 = vmatprep.subr.mxu0 0.0
    %2180 = vmatpush1.msra.mxu0 0.0
    %2181 = vmatprep.mubr.f32.mxu0 0.0
    %2182 = vmatmul.mubr.f32.gmra.mrb[0].mxu0 %v2115
    %v2183 = vpop.f32.mrb[0].mxu0
    %v2184 = vadd.f32 0.0, %v2183
    %v2185 = vpop.f32.mrb[0].mxu0
    %2186 = vdwg.mxu0
    %v2187 = vadd.f32 %v2035, %v2184
    %vm2188 = vcmp.gt.f32.partialorder %v2187, 0.0
    %v2189 = vmul.f32 %v2187, 1.442695
    %v2190 = vpow.pop %v2189
    %v2191 = vsub.f32 %v2190, 1.0
    %v2192 = vsel %vm2188, %v2187, %v2191
    %2193 = vmatprep.subr.mxu0 0.0
    %2194 = vmatpush1.msra.mxu0 %v185
    %2195 = vmatprep.subr.mxu0 0.0
    %2196 = vmatpush1.msra.mxu0 %v186
    %2197 = vmatprep.subr.mxu0 0.0
    %2198 = vmatpush1.msra.mxu0 %v187
    %2199 = vmatprep.subr.mxu0 0.0
    %2200 = vmatpush1.msra.mxu0 %v188
    %2201 = vmatprep.subr.mxu0 0.0
    %2202 = vmatpush1.msra.mxu0 %v189
    %2203 = vmatprep.subr.mxu0 0.0
    %2204 = vmatpush1.msra.mxu0 %v190
    %2205 = vmatprep.subr.mxu0 0.0
    %2206 = vmatpush1.msra.mxu0 %v191
    %2207 = vmatprep.subr.mxu0 0.0
    %2208 = vmatpush1.msra.mxu0 %v192
    %2209 = vmatprep.subr.mxu0 0.0
    %2210 = vmatpush1.msra.mxu0 %v193
    %2211 = vmatprep.subr.mxu0 0.0
    %2212 = vmatpush1.msra.mxu0 %v194
    %2213 = vmatprep.subr.mxu0 0.0
    %2214 = vmatpush1.msra.mxu0 %v195
    %2215 = vmatprep.subr.mxu0 0.0
    %2216 = vmatpush1.msra.mxu0 %v196
    %2217 = vmatprep.subr.mxu0 0.0
    %2218 = vmatpush1.msra.mxu0 %v197
    %2219 = vmatprep.subr.mxu0 0.0
    %2220 = vmatpush1.msra.mxu0 %v198
    %2221 = vmatprep.subr.mxu0 0.0
    %2222 = vmatpush1.msra.mxu0 %v199
    %2223 = vmatprep.subr.mxu0 0.0
    %2224 = vmatpush1.msra.mxu0 %v200
    %2225 = vmatprep.subr.mxu0 0.0
    %2226 = vmatpush1.msra.mxu0 0.0
    %2227 = vmatprep.subr.mxu0 0.0
    %2228 = vmatpush1.msra.mxu0 0.0
    %2229 = vmatprep.subr.mxu0 0.0
    %2230 = vmatpush1.msra.mxu0 0.0
    %2231 = vmatprep.subr.mxu0 0.0
    %2232 = vmatpush1.msra.mxu0 0.0
    %2233 = vmatprep.subr.mxu0 0.0
    %2234 = vmatpush1.msra.mxu0 0.0
    %2235 = vmatprep.subr.mxu0 0.0
    %2236 = vmatpush1.msra.mxu0 0.0
    %2237 = vmatprep.subr.mxu0 0.0
    %2238 = vmatpush1.msra.mxu0 0.0
    %2239 = vmatprep.subr.mxu0 0.0
    %2240 = vmatpush1.msra.mxu0 0.0
    %2241 = vmatprep.subr.mxu0 0.0
    %2242 = vmatpush1.msra.mxu0 0.0
    %2243 = vmatprep.subr.mxu0 0.0
    %2244 = vmatpush1.msra.mxu0 0.0
    %2245 = vmatprep.subr.mxu0 0.0
    %2246 = vmatpush1.msra.mxu0 0.0
    %2247 = vmatprep.subr.mxu0 0.0
    %2248 = vmatpush1.msra.mxu0 0.0
    %2249 = vmatprep.subr.mxu0 0.0
    %2250 = vmatpush1.msra.mxu0 0.0
    %2251 = vmatprep.subr.mxu0 0.0
    %2252 = vmatpush1.msra.mxu0 0.0
    %2253 = vmatprep.subr.mxu0 0.0
    %2254 = vmatpush1.msra.mxu0 0.0
    %2255 = vmatprep.subr.mxu0 0.0
    %2256 = vmatpush1.msra.mxu0 0.0
    %2257 = vmatprep.mubr.f32.mxu0 0.0
    %2258 = vmatmul.mubr.f32.gmra.mrb[0].mxu0 %v2192
    %v2259 = vpop.f32.mrb[0].mxu0
    %v2260 = vadd.f32 0.0, %v2259
    %v2261 = vpop.f32.mrb[0].mxu0
    %2262 = vdwg.mxu0
    %vm2263 = vcmp.gt.f32.partialorder %v2260, 0.0
    %v2264 = vmul.f32 %v2260, 1.442695
    %v2265 = vpow.pop %v2264
    %v2266 = vsub.f32 %v2265, 1.0
    %v2267 = vsel %vm2263, %v2260, %v2266
    %v2268 = vadd.f32 %v2116, %v2267
    %2269 = vmatprep.subr.mxu0 0.0
    %2270 = vmatpush1.msra.mxu0 %v277
    %2271 = vmatprep.subr.mxu0 0.0
    %2272 = vmatpush1.msra.mxu0 %v278
    %2273 = vmatprep.subr.mxu0 0.0
    %2274 = vmatpush1.msra.mxu0 %v279
    %2275 = vmatprep.subr.mxu0 0.0
    %2276 = vmatpush1.msra.mxu0 %v280
    %2277 = vmatprep.subr.mxu0 0.0
    %2278 = vmatpush1.msra.mxu0 %v281
    %2279 = vmatprep.subr.mxu0 0.0
    %2280 = vmatpush1.msra.mxu0 %v282
    %2281 = vmatprep.subr.mxu0 0.0
    %2282 = vmatpush1.msra.mxu0 %v283
    %2283 = vmatprep.subr.mxu0 0.0
    %2284 = vmatpush1.msra.mxu0 %v284
    %2285 = vmatprep.subr.mxu0 0.0
    %2286 = vmatpush1.msra.mxu0 %v285
    %2287 = vmatprep.subr.mxu0 0.0
    %2288 = vmatpush1.msra.mxu0 %v286
    %2289 = vmatprep.subr.mxu0 0.0
    %2290 = vmatpush1.msra.mxu0 %v287
    %2291 = vmatprep.subr.mxu0 0.0
    %2292 = vmatpush1.msra.mxu0 %v288
    %2293 = vmatprep.subr.mxu0 0.0
    %2294 = vmatpush1.msra.mxu0 %v289
    %2295 = vmatprep.subr.mxu0 0.0
    %2296 = vmatpush1.msra.mxu0 %v290
    %2297 = vmatprep.subr.mxu0 0.0
    %2298 = vmatpush1.msra.mxu0 %v291
    %2299 = vmatprep.subr.mxu0 0.0
    %2300 = vmatpush1.msra.mxu0 %v292
    %2301 = vmatprep.subr.mxu0 0.0
    %2302 = vmatpush1.msra.mxu0 0.0
    %2303 = vmatprep.subr.mxu0 0.0
    %2304 = vmatpush1.msra.mxu0 0.0
    %2305 = vmatprep.subr.mxu0 0.0
    %2306 = vmatpush1.msra.mxu0 0.0
    %2307 = vmatprep.subr.mxu0 0.0
    %2308 = vmatpush1.msra.mxu0 0.0
    %2309 = vmatprep.subr.mxu0 0.0
    %2310 = vmatpush1.msra.mxu0 0.0
    %2311 = vmatprep.subr.mxu0 0.0
    %2312 = vmatpush1.msra.mxu0 0.0
    %2313 = vmatprep.subr.mxu0 0.0
    %2314 = vmatpush1.msra.mxu0 0.0
    %2315 = vmatprep.subr.mxu0 0.0
    %2316 = vmatpush1.msra.mxu0 0.0
    %2317 = vmatprep.subr.mxu0 0.0
    %2318 = vmatpush1.msra.mxu0 0.0
    %2319 = vmatprep.subr.mxu0 0.0
    %2320 = vmatpush1.msra.mxu0 0.0
    %2321 = vmatprep.subr.mxu0 0.0
    %2322 = vmatpush1.msra.mxu0 0.0
    %2323 = vmatprep.subr.mxu0 0.0
    %2324 = vmatpush1.msra.mxu0 0.0
    %2325 = vmatprep.subr.mxu0 0.0
    %2326 = vmatpush1.msra.mxu0 0.0
    %2327 = vmatprep.subr.mxu0 0.0
    %2328 = vmatpush1.msra.mxu0 0.0
    %2329 = vmatprep.subr.mxu0 0.0
    %2330 = vmatpush1.msra.mxu0 0.0
    %2331 = vmatprep.subr.mxu0 0.0
    %2332 = vmatpush1.msra.mxu0 0.0
    %2333 = vmatprep.mubr.f32.mxu0 0.0
    %2334 = vmatmul.mubr.f32.gmra.mrb[0].mxu0 %v2267
    %v2335 = vpop.f32.mrb[0].mxu0
    %v2336 = vadd.f32 0.0, %v2335
    %v2337 = vpop.f32.mrb[0].mxu0
    %2338 = vdwg.mxu0
    %v2339 = vadd.f32 %v2187, %v2336
    %vm2340 = vcmp.gt.f32.partialorder %v2339, 0.0
    %v2341 = vmul.f32 %v2339, 1.442695
    %v2342 = vpow.pop %v2341
    %v2343 = vsub.f32 %v2342, 1.0
    %v2344 = vsel %vm2340, %v2339, %v2343
    %2345 = vmatprep.subr.mxu0 0.0
    %2346 = vmatpush1.msra.mxu0 %v185
    %2347 = vmatprep.subr.mxu0 0.0
    %2348 = vmatpush1.msra.mxu0 %v186
    %2349 = vmatprep.subr.mxu0 0.0
    %2350 = vmatpush1.msra.mxu0 %v187
    %2351 = vmatprep.subr.mxu0 0.0
    %2352 = vmatpush1.msra.mxu0 %v188
    %2353 = vmatprep.subr.mxu0 0.0
    %2354 = vmatpush1.msra.mxu0 %v189
    %2355 = vmatprep.subr.mxu0 0.0
    %2356 = vmatpush1.msra.mxu0 %v190
    %2357 = vmatprep.subr.mxu0 0.0
    %2358 = vmatpush1.msra.mxu0 %v191
    %2359 = vmatprep.subr.mxu0 0.0
    %2360 = vmatpush1.msra.mxu0 %v192
    %2361 = vmatprep.subr.mxu0 0.0
    %2362 = vmatpush1.msra.mxu0 %v193
    %2363 = vmatprep.subr.mxu0 0.0
    %2364 = vmatpush1.msra.mxu0 %v194
    %2365 = vmatprep.subr.mxu0 0.0
    %2366 = vmatpush1.msra.mxu0 %v195
    %2367 = vmatprep.subr.mxu0 0.0
    %2368 = vmatpush1.msra.mxu0 %v196
    %2369 = vmatprep.subr.mxu0 0.0
    %2370 = vmatpush1.msra.mxu0 %v197
    %2371 = vmatprep.subr.mxu0 0.0
    %2372 = vmatpush1.msra.mxu0 %v198
    %2373 = vmatprep.subr.mxu0 0.0
    %2374 = vmatpush1.msra.mxu0 %v199
    %2375 = vmatprep.subr.mxu0 0.0
    %2376 = vmatpush1.msra.mxu0 %v200
    %2377 = vmatprep.subr.mxu0 0.0
    %2378 = vmatpush1.msra.mxu0 0.0
    %2379 = vmatprep.subr.mxu0 0.0
    %2380 = vmatpush1.msra.mxu0 0.0
    %2381 = vmatprep.subr.mxu0 0.0
    %2382 = vmatpush1.msra.mxu0 0.0
    %2383 = vmatprep.subr.mxu0 0.0
    %2384 = vmatpush1.msra.mxu0 0.0
    %2385 = vmatprep.subr.mxu0 0.0
    %2386 = vmatpush1.msra.mxu0 0.0
    %2387 = vmatprep.subr.mxu0 0.0
    %2388 = vmatpush1.msra.mxu0 0.0
    %2389 = vmatprep.subr.mxu0 0.0
    %2390 = vmatpush1.msra.mxu0 0.0
    %2391 = vmatprep.subr.mxu0 0.0
    %2392 = vmatpush1.msra.mxu0 0.0
    %2393 = vmatprep.subr.mxu0 0.0
    %2394 = vmatpush1.msra.mxu0 0.0
    %2395 = vmatprep.subr.mxu0 0.0
    %2396 = vmatpush1.msra.mxu0 0.0
    %2397 = vmatprep.subr.mxu0 0.0
    %2398 = vmatpush1.msra.mxu0 0.0
    %2399 = vmatprep.subr.mxu0 0.0
    %2400 = vmatpush1.msra.mxu0 0.0
    %2401 = vmatprep.subr.mxu0 0.0
    %2402 = vmatpush1.msra.mxu0 0.0
    %2403 = vmatprep.subr.mxu0 0.0
    %2404 = vmatpush1.msra.mxu0 0.0
    %2405 = vmatprep.subr.mxu0 0.0
    %2406 = vmatpush1.msra.mxu0 0.0
    %2407 = vmatprep.subr.mxu0 0.0
    %2408 = vmatpush1.msra.mxu0 0.0
    %2409 = vmatprep.mubr.f32.mxu0 0.0
    %2410 = vmatmul.mubr.f32.gmra.mrb[0].mxu0 %v2344
    %v2411 = vpop.f32.mrb[0].mxu0
    %v2412 = vadd.f32 0.0, %v2411
    %v2413 = vpop.f32.mrb[0].mxu0
    %2414 = vdwg.mxu0
    %vm2415 = vcmp.gt.f32.partialorder %v2412, 0.0
    %v2416 = vmul.f32 %v2412, 1.442695
    %v2417 = vpow.pop %v2416
    %v2418 = vsub.f32 %v2417, 1.0
    %v2419 = vsel %vm2415, %v2412, %v2418
    %v2420 = vadd.f32 %v2268, %v2419
    %2421 = vmatprep.subr.mxu0 0.0
    %2422 = vmatpush1.msra.mxu0 %v277
    %2423 = vmatprep.subr.mxu0 0.0
    %2424 = vmatpush1.msra.mxu0 %v278
    %2425 = vmatprep.subr.mxu0 0.0
    %2426 = vmatpush1.msra.mxu0 %v279
    %2427 = vmatprep.subr.mxu0 0.0
    %2428 = vmatpush1.msra.mxu0 %v280
    %2429 = vmatprep.subr.mxu0 0.0
    %2430 = vmatpush1.msra.mxu0 %v281
    %2431 = vmatprep.subr.mxu0 0.0
    %2432 = vmatpush1.msra.mxu0 %v282
    %2433 = vmatprep.subr.mxu0 0.0
    %2434 = vmatpush1.msra.mxu0 %v283
    %2435 = vmatprep.subr.mxu0 0.0
    %2436 = vmatpush1.msra.mxu0 %v284
    %2437 = vmatprep.subr.mxu0 0.0
    %2438 = vmatpush1.msra.mxu0 %v285
    %2439 = vmatprep.subr.mxu0 0.0
    %2440 = vmatpush1.msra.mxu0 %v286
    %2441 = vmatprep.subr.mxu0 0.0
    %2442 = vmatpush1.msra.mxu0 %v287
    %2443 = vmatprep.subr.mxu0 0.0
    %2444 = vmatpush1.msra.mxu0 %v288
    %2445 = vmatprep.subr.mxu0 0.0
    %2446 = vmatpush1.msra.mxu0 %v289
    %2447 = vmatprep.subr.mxu0 0.0
    %2448 = vmatpush1.msra.mxu0 %v290
    %2449 = vmatprep.subr.mxu0 0.0
    %2450 = vmatpush1.msra.mxu0 %v291
    %2451 = vmatprep.subr.mxu0 0.0
    %2452 = vmatpush1.msra.mxu0 %v292
    %2453 = vmatprep.subr.mxu0 0.0
    %2454 = vmatpush1.msra.mxu0 0.0
    %2455 = vmatprep.subr.mxu0 0.0
    %2456 = vmatpush1.msra.mxu0 0.0
    %2457 = vmatprep.subr.mxu0 0.0
    %2458 = vmatpush1.msra.mxu0 0.0
    %2459 = vmatprep.subr.mxu0 0.0
    %2460 = vmatpush1.msra.mxu0 0.0
    %2461 = vmatprep.subr.mxu0 0.0
    %2462 = vmatpush1.msra.mxu0 0.0
    %2463 = vmatprep.subr.mxu0 0.0
    %2464 = vmatpush1.msra.mxu0 0.0
    %2465 = vmatprep.subr.mxu0 0.0
    %2466 = vmatpush1.msra.mxu0 0.0
    %2467 = vmatprep.subr.mxu0 0.0
    %2468 = vmatpush1.msra.mxu0 0.0
    %2469 = vmatprep.subr.mxu0 0.0
    %2470 = vmatpush1.msra.mxu0 0.0
    %2471 = vmatprep.subr.mxu0 0.0
    %2472 = vmatpush1.msra.mxu0 0.0
    %2473 = vmatprep.subr.mxu0 0.0
    %2474 = vmatpush1.msra.mxu0 0.0
    %2475 = vmatprep.subr.mxu0 0.0
    %2476 = vmatpush1.msra.mxu0 0.0
    %2477 = vmatprep.subr.mxu0 0.0
    %2478 = vmatpush1.msra.mxu0 0.0
    %2479 = vmatprep.subr.mxu0 0.0
    %2480 = vmatpush1.msra.mxu0 0.0
    %2481 = vmatprep.subr.mxu0 0.0
    %2482 = vmatpush1.msra.mxu0 0.0
    %2483 = vmatprep.subr.mxu0 0.0
    %2484 = vmatpush1.msra.mxu0 0.0
    %2485 = vmatprep.mubr.f32.mxu0 0.0
    %2486 = vmatmul.mubr.f32.gmra.mrb[0].mxu0 %v2419
    %v2487 = vpop.f32.mrb[0].mxu0
    %v2488 = vadd.f32 0.0, %v2487
    %v2489 = vpop.f32.mrb[0].mxu0
    %2490 = vdwg.mxu0
    %v2491 = vadd.f32 %v2339, %v2488
    %vm2492 = vcmp.gt.f32.partialorder %v2491, 0.0
    %v2493 = vmul.f32 %v2491, 1.442695
    %v2494 = vpow.pop %v2493
    %v2495 = vsub.f32 %v2494, 1.0
    %v2496 = vsel %vm2492, %v2491, %v2495
    %2497 = vmatprep.subr.mxu0 0.0
    %2498 = vmatpush1.msra.mxu0 %v185
    %2499 = vmatprep.subr.mxu0 0.0
    %2500 = vmatpush1.msra.mxu0 %v186
    %2501 = vmatprep.subr.mxu0 0.0
    %2502 = vmatpush1.msra.mxu0 %v187
    %2503 = vmatprep.subr.mxu0 0.0
    %2504 = vmatpush1.msra.mxu0 %v188
    %2505 = vmatprep.subr.mxu0 0.0
    %2506 = vmatpush1.msra.mxu0 %v189
    %2507 = vmatprep.subr.mxu0 0.0
    %2508 = vmatpush1.msra.mxu0 %v190
    %2509 = vmatprep.subr.mxu0 0.0
    %2510 = vmatpush1.msra.mxu0 %v191
    %2511 = vmatprep.subr.mxu0 0.0
    %2512 = vmatpush1.msra.mxu0 %v192
    %2513 = vmatprep.subr.mxu0 0.0
    %2514 = vmatpush1.msra.mxu0 %v193
    %2515 = vmatprep.subr.mxu0 0.0
    %2516 = vmatpush1.msra.mxu0 %v194
    %2517 = vmatprep.subr.mxu0 0.0
    %2518 = vmatpush1.msra.mxu0 %v195
    %2519 = vmatprep.subr.mxu0 0.0
    %2520 = vmatpush1.msra.mxu0 %v196
    %2521 = vmatprep.subr.mxu0 0.0
    %2522 = vmatpush1.msra.mxu0 %v197
    %2523 = vmatprep.subr.mxu0 0.0
    %2524 = vmatpush1.msra.mxu0 %v198
    %2525 = vmatprep.subr.mxu0 0.0
    %2526 = vmatpush1.msra.mxu0 %v199
    %2527 = vmatprep.subr.mxu0 0.0
    %2528 = vmatpush1.msra.mxu0 %v200
    %2529 = vmatprep.subr.mxu0 0.0
    %2530 = vmatpush1.msra.mxu0 0.0
    %2531 = vmatprep.subr.mxu0 0.0
    %2532 = vmatpush1.msra.mxu0 0.0
    %2533 = vmatprep.subr.mxu0 0.0
    %2534 = vmatpush1.msra.mxu0 0.0
    %2535 = vmatprep.subr.mxu0 0.0
    %2536 = vmatpush1.msra.mxu0 0.0
    %2537 = vmatprep.subr.mxu0 0.0
    %2538 = vmatpush1.msra.mxu0 0.0
    %2539 = vmatprep.subr.mxu0 0.0
    %2540 = vmatpush1.msra.mxu0 0.0
    %2541 = vmatprep.subr.mxu0 0.0
    %2542 = vmatpush1.msra.mxu0 0.0
    %2543 = vmatprep.subr.mxu0 0.0
    %2544 = vmatpush1.msra.mxu0 0.0
    %2545 = vmatprep.subr.mxu0 0.0
    %2546 = vmatpush1.msra.mxu0 0.0
    %2547 = vmatprep.subr.mxu0 0.0
    %2548 = vmatpush1.msra.mxu0 0.0
    %2549 = vmatprep.subr.mxu0 0.0
    %2550 = vmatpush1.msra.mxu0 0.0
    %2551 = vmatprep.subr.mxu0 0.0
    %2552 = vmatpush1.msra.mxu0 0.0
    %2553 = vmatprep.subr.mxu0 0.0
    %2554 = vmatpush1.msra.mxu0 0.0
    %2555 = vmatprep.subr.mxu0 0.0
    %2556 = vmatpush1.msra.mxu0 0.0
    %2557 = vmatprep.subr.mxu0 0.0
    %2558 = vmatpush1.msra.mxu0 0.0
    %2559 = vmatprep.subr.mxu0 0.0
    %2560 = vmatpush1.msra.mxu0 0.0
    %2561 = vmatprep.mubr.f32.mxu0 0.0
    %2562 = vmatmul.mubr.f32.gmra.mrb[0].mxu0 %v2496
    %v2563 = vpop.f32.mrb[0].mxu0
    %v2564 = vadd.f32 0.0, %v2563
    %v2565 = vpop.f32.mrb[0].mxu0
    %2566 = vdwg.mxu0
    %vm2567 = vcmp.gt.f32.partialorder %v2564, 0.0
    %v2568 = vmul.f32 %v2564, 1.442695
    %v2569 = vpow.pop %v2568
    %v2570 = vsub.f32 %v2569, 1.0
    %v2571 = vsel %vm2567, %v2564, %v2570
    %v2572 = vadd.f32 %v2420, %v2571
    %2573 = vmatprep.subr.mxu0 0.0
    %2574 = vmatpush1.msra.mxu0 %v277
    %2575 = vmatprep.subr.mxu0 0.0
    %2576 = vmatpush1.msra.mxu0 %v278
    %2577 = vmatprep.subr.mxu0 0.0
    %2578 = vmatpush1.msra.mxu0 %v279
    %2579 = vmatprep.subr.mxu0 0.0
    %2580 = vmatpush1.msra.mxu0 %v280
    %2581 = vmatprep.subr.mxu0 0.0
    %2582 = vmatpush1.msra.mxu0 %v281
    %2583 = vmatprep.subr.mxu0 0.0
    %2584 = vmatpush1.msra.mxu0 %v282
    %2585 = vmatprep.subr.mxu0 0.0
    %2586 = vmatpush1.msra.mxu0 %v283
    %2587 = vmatprep.subr.mxu0 0.0
    %2588 = vmatpush1.msra.mxu0 %v284
    %2589 = vmatprep.subr.mxu0 0.0
    %2590 = vmatpush1.msra.mxu0 %v285
    %2591 = vmatprep.subr.mxu0 0.0
    %2592 = vmatpush1.msra.mxu0 %v286
    %2593 = vmatprep.subr.mxu0 0.0
    %2594 = vmatpush1.msra.mxu0 %v287
    %2595 = vmatprep.subr.mxu0 0.0
    %2596 = vmatpush1.msra.mxu0 %v288
    %2597 = vmatprep.subr.mxu0 0.0
    %2598 = vmatpush1.msra.mxu0 %v289
    %2599 = vmatprep.subr.mxu0 0.0
    %2600 = vmatpush1.msra.mxu0 %v290
    %2601 = vmatprep.subr.mxu0 0.0
    %2602 = vmatpush1.msra.mxu0 %v291
    %2603 = vmatprep.subr.mxu0 0.0
    %2604 = vmatpush1.msra.mxu0 %v292
    %2605 = vmatprep.subr.mxu0 0.0
    %2606 = vmatpush1.msra.mxu0 0.0
    %2607 = vmatprep.subr.mxu0 0.0
    %2608 = vmatpush1.msra.mxu0 0.0
    %2609 = vmatprep.subr.mxu0 0.0
    %2610 = vmatpush1.msra.mxu0 0.0
    %2611 = vmatprep.subr.mxu0 0.0
    %2612 = vmatpush1.msra.mxu0 0.0
    %2613 = vmatprep.subr.mxu0 0.0
    %2614 = vmatpush1.msra.mxu0 0.0
    %2615 = vmatprep.subr.mxu0 0.0
    %2616 = vmatpush1.msra.mxu0 0.0
    %2617 = vmatprep.subr.mxu0 0.0
    %2618 = vmatpush1.msra.mxu0 0.0
    %2619 = vmatprep.subr.mxu0 0.0
    %2620 = vmatpush1.msra.mxu0 0.0
    %2621 = vmatprep.subr.mxu0 0.0
    %2622 = vmatpush1.msra.mxu0 0.0
    %2623 = vmatprep.subr.mxu0 0.0
    %2624 = vmatpush1.msra.mxu0 0.0
    %2625 = vmatprep.subr.mxu0 0.0
    %2626 = vmatpush1.msra.mxu0 0.0
    %2627 = vmatprep.subr.mxu0 0.0
    %2628 = vmatpush1.msra.mxu0 0.0
    %2629 = vmatprep.subr.mxu0 0.0
    %2630 = vmatpush1.msra.mxu0 0.0
    %2631 = vmatprep.subr.mxu0 0.0
    %2632 = vmatpush1.msra.mxu0 0.0
    %2633 = vmatprep.subr.mxu0 0.0
    %2634 = vmatpush1.msra.mxu0 0.0
    %2635 = vmatprep.subr.mxu0 0.0
    %2636 = vmatpush1.msra.mxu0 0.0
    %2637 = vmatprep.mubr.f32.mxu0 0.0
    %2638 = vmatmul.mubr.f32.gmra.mrb[0].mxu0 %v2571
    %v2639 = vpop.f32.mrb[0].mxu0
    %v2640 = vadd.f32 0.0, %v2639
    %v2641 = vpop.f32.mrb[0].mxu0
    %2642 = vdwg.mxu0
    %v2643 = vadd.f32 %v2491, %v2640
    %vm2644 = vcmp.gt.f32.partialorder %v2643, 0.0
    %v2645 = vmul.f32 %v2643, 1.442695
    %v2646 = vpow.pop %v2645
    %v2647 = vsub.f32 %v2646, 1.0
    %v2648 = vsel %vm2644, %v2643, %v2647
    %2649 = vmatprep.subr.mxu0 0.0
    %2650 = vmatpush1.msra.mxu0 %v185
    %2651 = vmatprep.subr.mxu0 0.0
    %2652 = vmatpush1.msra.mxu0 %v186
    %2653 = vmatprep.subr.mxu0 0.0
    %2654 = vmatpush1.msra.mxu0 %v187
    %2655 = vmatprep.subr.mxu0 0.0
    %2656 = vmatpush1.msra.mxu0 %v188
    %2657 = vmatprep.subr.mxu0 0.0
    %2658 = vmatpush1.msra.mxu0 %v189
    %2659 = vmatprep.subr.mxu0 0.0
    %2660 = vmatpush1.msra.mxu0 %v190
    %2661 = vmatprep.subr.mxu0 0.0
    %2662 = vmatpush1.msra.mxu0 %v191
    %2663 = vmatprep.subr.mxu0 0.0
    %2664 = vmatpush1.msra.mxu0 %v192
    %2665 = vmatprep.subr.mxu0 0.0
    %2666 = vmatpush1.msra.mxu0 %v193
    %2667 = vmatprep.subr.mxu0 0.0
    %2668 = vmatpush1.msra.mxu0 %v194
    %2669 = vmatprep.subr.mxu0 0.0
    %2670 = vmatpush1.msra.mxu0 %v195
    %2671 = vmatprep.subr.mxu0 0.0
    %2672 = vmatpush1.msra.mxu0 %v196
    %2673 = vmatprep.subr.mxu0 0.0
    %2674 = vmatpush1.msra.mxu0 %v197
    %2675 = vmatprep.subr.mxu0 0.0
    %2676 = vmatpush1.msra.mxu0 %v198
    %2677 = vmatprep.subr.mxu0 0.0
    %2678 = vmatpush1.msra.mxu0 %v199
    %2679 = vmatprep.subr.mxu0 0.0
    %2680 = vmatpush1.msra.mxu0 %v200
    %2681 = vmatprep.subr.mxu0 0.0
    %2682 = vmatpush1.msra.mxu0 0.0
    %2683 = vmatprep.subr.mxu0 0.0
    %2684 = vmatpush1.msra.mxu0 0.0
    %2685 = vmatprep.subr.mxu0 0.0
    %2686 = vmatpush1.msra.mxu0 0.0
    %2687 = vmatprep.subr.mxu0 0.0
    %2688 = vmatpush1.msra.mxu0 0.0
    %2689 = vmatprep.subr.mxu0 0.0
    %2690 = vmatpush1.msra.mxu0 0.0
    %2691 = vmatprep.subr.mxu0 0.0
    %2692 = vmatpush1.msra.mxu0 0.0
    %2693 = vmatprep.subr.mxu0 0.0
    %2694 = vmatpush1.msra.mxu0 0.0
    %2695 = vmatprep.subr.mxu0 0.0
    %2696 = vmatpush1.msra.mxu0 0.0
    %2697 = vmatprep.subr.mxu0 0.0
    %2698 = vmatpush1.msra.mxu0 0.0
    %2699 = vmatprep.subr.mxu0 0.0
    %2700 = vmatpush1.msra.mxu0 0.0
    %2701 = vmatprep.subr.mxu0 0.0
    %2702 = vmatpush1.msra.mxu0 0.0
    %2703 = vmatprep.subr.mxu0 0.0
    %2704 = vmatpush1.msra.mxu0 0.0
    %2705 = vmatprep.subr.mxu0 0.0
    %2706 = vmatpush1.msra.mxu0 0.0
    %2707 = vmatprep.subr.mxu0 0.0
    %2708 = vmatpush1.msra.mxu0 0.0
    %2709 = vmatprep.subr.mxu0 0.0
    %2710 = vmatpush1.msra.mxu0 0.0
    %2711 = vmatprep.subr.mxu0 0.0
    %2712 = vmatpush1.msra.mxu0 0.0
    %2713 = vmatprep.mubr.f32.mxu0 0.0
    %2714 = vmatmul.mubr.f32.gmra.mrb[0].mxu0 %v2648
    %v2715 = vpop.f32.mrb[0].mxu0
    %v2716 = vadd.f32 0.0, %v2715
    %v2717 = vpop.f32.mrb[0].mxu0
    %2718 = vdwg.mxu0
    %vm2719 = vcmp.gt.f32.partialorder %v2716, 0.0
    %v2720 = vmul.f32 %v2716, 1.442695
    %v2721 = vpow.pop %v2720
    %v2722 = vsub.f32 %v2721, 1.0
    %v2723 = vsel %vm2719, %v2716, %v2722
    %v2724 = vadd.f32 %v2572, %v2723
    %2725 = vmatprep.subr.mxu0 0.0
    %2726 = vmatpush1.msra.mxu0 %v277
    %2727 = vmatprep.subr.mxu0 0.0
    %2728 = vmatpush1.msra.mxu0 %v278
    %2729 = vmatprep.subr.mxu0 0.0
    %2730 = vmatpush1.msra.mxu0 %v279
    %2731 = vmatprep.subr.mxu0 0.0
    %2732 = vmatpush1.msra.mxu0 %v280
    %2733 = vmatprep.subr.mxu0 0.0
    %2734 = vmatpush1.msra.mxu0 %v281
    %2735 = vmatprep.subr.mxu0 0.0
    %2736 = vmatpush1.msra.mxu0 %v282
    %2737 = vmatprep.subr.mxu0 0.0
    %2738 = vmatpush1.msra.mxu0 %v283
    %2739 = vmatprep.subr.mxu0 0.0
    %2740 = vmatpush1.msra.mxu0 %v284
    %2741 = vmatprep.subr.mxu0 0.0
    %2742 = vmatpush1.msra.mxu0 %v285
    %2743 = vmatprep.subr.mxu0 0.0
    %2744 = vmatpush1.msra.mxu0 %v286
    %2745 = vmatprep.subr.mxu0 0.0
    %2746 = vmatpush1.msra.mxu0 %v287
    %2747 = vmatprep.subr.mxu0 0.0
    %2748 = vmatpush1.msra.mxu0 %v288
    %2749 = vmatprep.subr.mxu0 0.0
    %2750 = vmatpush1.msra.mxu0 %v289
    %2751 = vmatprep.subr.mxu0 0.0
    %2752 = vmatpush1.msra.mxu0 %v290
    %2753 = vmatprep.subr.mxu0 0.0
    %2754 = vmatpush1.msra.mxu0 %v291
    %2755 = vmatprep.subr.mxu0 0.0
    %2756 = vmatpush1.msra.mxu0 %v292
    %2757 = vmatprep.subr.mxu0 0.0
    %2758 = vmatpush1.msra.mxu0 0.0
    %2759 = vmatprep.subr.mxu0 0.0
    %2760 = vmatpush1.msra.mxu0 0.0
    %2761 = vmatprep.subr.mxu0 0.0
    %2762 = vmatpush1.msra.mxu0 0.0
    %2763 = vmatprep.subr.mxu0 0.0
    %2764 = vmatpush1.msra.mxu0 0.0
    %2765 = vmatprep.subr.mxu0 0.0
    %2766 = vmatpush1.msra.mxu0 0.0
    %2767 = vmatprep.subr.mxu0 0.0
    %2768 = vmatpush1.msra.mxu0 0.0
    %2769 = vmatprep.subr.mxu0 0.0
    %2770 = vmatpush1.msra.mxu0 0.0
    %2771 = vmatprep.subr.mxu0 0.0
    %2772 = vmatpush1.msra.mxu0 0.0
    %2773 = vmatprep.subr.mxu0 0.0
    %2774 = vmatpush1.msra.mxu0 0.0
    %2775 = vmatprep.subr.mxu0 0.0
    %2776 = vmatpush1.msra.mxu0 0.0
    %2777 = vmatprep.subr.mxu0 0.0
    %2778 = vmatpush1.msra.mxu0 0.0
    %2779 = vmatprep.subr.mxu0 0.0
    %2780 = vmatpush1.msra.mxu0 0.0
    %2781 = vmatprep.subr.mxu0 0.0
    %2782 = vmatpush1.msra.mxu0 0.0
    %2783 = vmatprep.subr.mxu0 0.0
    %2784 = vmatpush1.msra.mxu0 0.0
    %2785 = vmatprep.subr.mxu0 0.0
    %2786 = vmatpush1.msra.mxu0 0.0
    %2787 = vmatprep.subr.mxu0 0.0
    %2788 = vmatpush1.msra.mxu0 0.0
    %2789 = vmatprep.mubr.f32.mxu0 0.0
    %2790 = vmatmul.mubr.f32.gmra.mrb[0].mxu0 %v2723
    %v2791 = vpop.f32.mrb[0].mxu0
    %v2792 = vadd.f32 0.0, %v2791
    %v2793 = vpop.f32.mrb[0].mxu0
    %2794 = vdwg.mxu0
    %v2795 = vadd.f32 %v2643, %v2792
    %vm2796 = vcmp.gt.f32.partialorder %v2795, 0.0
    %v2797 = vmul.f32 %v2795, 1.442695
    %v2798 = vpow.pop %v2797
    %v2799 = vsub.f32 %v2798, 1.0
    %v2800 = vsel %vm2796, %v2795, %v2799
    %2801 = vmatprep.subr.mxu0 0.0
    %2802 = vmatpush1.msra.mxu0 %v185
    %2803 = vmatprep.subr.mxu0 0.0
    %2804 = vmatpush1.msra.mxu0 %v186
    %2805 = vmatprep.subr.mxu0 0.0
    %2806 = vmatpush1.msra.mxu0 %v187
    %2807 = vmatprep.subr.mxu0 0.0
    %2808 = vmatpush1.msra.mxu0 %v188
    %2809 = vmatprep.subr.mxu0 0.0
    %2810 = vmatpush1.msra.mxu0 %v189
    %2811 = vmatprep.subr.mxu0 0.0
    %2812 = vmatpush1.msra.mxu0 %v190
    %2813 = vmatprep.subr.mxu0 0.0
    %2814 = vmatpush1.msra.mxu0 %v191
    %2815 = vmatprep.subr.mxu0 0.0
    %2816 = vmatpush1.msra.mxu0 %v192
    %2817 = vmatprep.subr.mxu0 0.0
    %2818 = vmatpush1.msra.mxu0 %v193
    %2819 = vmatprep.subr.mxu0 0.0
    %2820 = vmatpush1.msra.mxu0 %v194
    %2821 = vmatprep.subr.mxu0 0.0
    %2822 = vmatpush1.msra.mxu0 %v195
    %2823 = vmatprep.subr.mxu0 0.0
    %2824 = vmatpush1.msra.mxu0 %v196
    %2825 = vmatprep.subr.mxu0 0.0
    %2826 = vmatpush1.msra.mxu0 %v197
    %2827 = vmatprep.subr.mxu0 0.0
    %2828 = vmatpush1.msra.mxu0 %v198
    %2829 = vmatprep.subr.mxu0 0.0
    %2830 = vmatpush1.msra.mxu0 %v199
    %2831 = vmatprep.subr.mxu0 0.0
    %2832 = vmatpush1.msra.mxu0 %v200
    %2833 = vmatprep.subr.mxu0 0.0
    %2834 = vmatpush1.msra.mxu0 0.0
    %2835 = vmatprep.subr.mxu0 0.0
    %2836 = vmatpush1.msra.mxu0 0.0
    %2837 = vmatprep.subr.mxu0 0.0
    %2838 = vmatpush1.msra.mxu0 0.0
    %2839 = vmatprep.subr.mxu0 0.0
    %2840 = vmatpush1.msra.mxu0 0.0
    %2841 = vmatprep.subr.mxu0 0.0
    %2842 = vmatpush1.msra.mxu0 0.0
    %2843 = vmatprep.subr.mxu0 0.0
    %2844 = vmatpush1.msra.mxu0 0.0
    %2845 = vmatprep.subr.mxu0 0.0
    %2846 = vmatpush1.msra.mxu0 0.0
    %2847 = vmatprep.subr.mxu0 0.0
    %2848 = vmatpush1.msra.mxu0 0.0
    %2849 = vmatprep.subr.mxu0 0.0
    %2850 = vmatpush1.msra.mxu0 0.0
    %2851 = vmatprep.subr.mxu0 0.0
    %2852 = vmatpush1.msra.mxu0 0.0
    %2853 = vmatprep.subr.mxu0 0.0
    %2854 = vmatpush1.msra.mxu0 0.0
    %2855 = vmatprep.subr.mxu0 0.0
    %2856 = vmatpush1.msra.mxu0 0.0
    %2857 = vmatprep.subr.mxu0 0.0
    %2858 = vmatpush1.msra.mxu0 0.0
    %2859 = vmatprep.subr.mxu0 0.0
    %2860 = vmatpush1.msra.mxu0 0.0
    %2861 = vmatprep.subr.mxu0 0.0
    %2862 = vmatpush1.msra.mxu0 0.0
    %2863 = vmatprep.subr.mxu0 0.0
    %2864 = vmatpush1.msra.mxu0 0.0
    %2865 = vmatprep.mubr.f32.mxu0 0.0
    %2866 = vmatmul.mubr.f32.gmra.mrb[0].mxu0 %v2800
    %v2867 = vpop.f32.mrb[0].mxu0
    %v2868 = vadd.f32 0.0, %v2867
    %v2869 = vpop.f32.mrb[0].mxu0
    %2870 = vdwg.mxu0
    %vm2871 = vcmp.gt.f32.partialorder %v2868, 0.0
    %v2872 = vmul.f32 %v2868, 1.442695
    %v2873 = vpow.pop %v2872
    %v2874 = vsub.f32 %v2873, 1.0
    %v2875 = vsel %vm2871, %v2868, %v2874
    %v2876 = vadd.f32 %v2724, %v2875
    %2877 = vmatprep.subr.mxu0 0.0
    %2878 = vmatpush1.msra.mxu0 %v277
    %2879 = vmatprep.subr.mxu0 0.0
    %2880 = vmatpush1.msra.mxu0 %v278
    %2881 = vmatprep.subr.mxu0 0.0
    %2882 = vmatpush1.msra.mxu0 %v279
    %2883 = vmatprep.subr.mxu0 0.0
    %2884 = vmatpush1.msra.mxu0 %v280
    %2885 = vmatprep.subr.mxu0 0.0
    %2886 = vmatpush1.msra.mxu0 %v281
    %2887 = vmatprep.subr.mxu0 0.0
    %2888 = vmatpush1.msra.mxu0 %v282
    %2889 = vmatprep.subr.mxu0 0.0
    %2890 = vmatpush1.msra.mxu0 %v283
    %2891 = vmatprep.subr.mxu0 0.0
    %2892 = vmatpush1.msra.mxu0 %v284
    %2893 = vmatprep.subr.mxu0 0.0
    %2894 = vmatpush1.msra.mxu0 %v285
    %2895 = vmatprep.subr.mxu0 0.0
    %2896 = vmatpush1.msra.mxu0 %v286
    %2897 = vmatprep.subr.mxu0 0.0
    %2898 = vmatpush1.msra.mxu0 %v287
    %2899 = vmatprep.subr.mxu0 0.0
    %2900 = vmatpush1.msra.mxu0 %v288
    %2901 = vmatprep.subr.mxu0 0.0
    %2902 = vmatpush1.msra.mxu0 %v289
    %2903 = vmatprep.subr.mxu0 0.0
    %2904 = vmatpush1.msra.mxu0 %v290
    %2905 = vmatprep.subr.mxu0 0.0
    %2906 = vmatpush1.msra.mxu0 %v291
    %2907 = vmatprep.subr.mxu0 0.0
    %2908 = vmatpush1.msra.mxu0 %v292
    %2909 = vmatprep.subr.mxu0 0.0
    %2910 = vmatpush1.msra.mxu0 0.0
    %2911 = vmatprep.subr.mxu0 0.0
    %2912 = vmatpush1.msra.mxu0 0.0
    %2913 = vmatprep.subr.mxu0 0.0
    %2914 = vmatpush1.msra.mxu0 0.0
    %2915 = vmatprep.subr.mxu0 0.0
    %2916 = vmatpush1.msra.mxu0 0.0
    %2917 = vmatprep.subr.mxu0 0.0
    %2918 = vmatpush1.msra.mxu0 0.0
    %2919 = vmatprep.subr.mxu0 0.0
    %2920 = vmatpush1.msra.mxu0 0.0
    %2921 = vmatprep.subr.mxu0 0.0
    %2922 = vmatpush1.msra.mxu0 0.0
    %2923 = vmatprep.subr.mxu0 0.0
    %2924 = vmatpush1.msra.mxu0 0.0
    %2925 = vmatprep.subr.mxu0 0.0
    %2926 = vmatpush1.msra.mxu0 0.0
    %2927 = vmatprep.subr.mxu0 0.0
    %2928 = vmatpush1.msra.mxu0 0.0
    %2929 = vmatprep.subr.mxu0 0.0
    %2930 = vmatpush1.msra.mxu0 0.0
    %2931 = vmatprep.subr.mxu0 0.0
    %2932 = vmatpush1.msra.mxu0 0.0
    %2933 = vmatprep.subr.mxu0 0.0
    %2934 = vmatpush1.msra.mxu0 0.0
    %2935 = vmatprep.subr.mxu0 0.0
    %2936 = vmatpush1.msra.mxu0 0.0
    %2937 = vmatprep.subr.mxu0 0.0
    %2938 = vmatpush1.msra.mxu0 0.0
    %2939 = vmatprep.subr.mxu0 0.0
    %2940 = vmatpush1.msra.mxu0 0.0
    %2941 = vmatprep.mubr.f32.mxu0 0.0
    %2942 = vmatmul.mubr.f32.gmra.mrb[0].mxu0 %v2875
    %v2943 = vpop.f32.mrb[0].mxu0
    %v2944 = vadd.f32 0.0, %v2943
    %v2945 = vpop.f32.mrb[0].mxu0
    %2946 = vdwg.mxu0
    %v2947 = vadd.f32 %v2795, %v2944
    %vm2948 = vcmp.gt.f32.partialorder %v2947, 0.0
    %v2949 = vmul.f32 %v2947, 1.442695
    %v2950 = vpow.pop %v2949
    %v2951 = vsub.f32 %v2950, 1.0
    %v2952 = vsel %vm2948, %v2947, %v2951
    %2953 = vmatprep.subr.mxu0 0.0
    %2954 = vmatpush1.msra.mxu0 %v185
    %2955 = vmatprep.subr.mxu0 0.0
    %2956 = vmatpush1.msra.mxu0 %v186
    %2957 = vmatprep.subr.mxu0 0.0
    %2958 = vmatpush1.msra.mxu0 %v187
    %2959 = vmatprep.subr.mxu0 0.0
    %2960 = vmatpush1.msra.mxu0 %v188
    %2961 = vmatprep.subr.mxu0 0.0
    %2962 = vmatpush1.msra.mxu0 %v189
    %2963 = vmatprep.subr.mxu0 0.0
    %2964 = vmatpush1.msra.mxu0 %v190
    %2965 = vmatprep.subr.mxu0 0.0
    %2966 = vmatpush1.msra.mxu0 %v191
    %2967 = vmatprep.subr.mxu0 0.0
    %2968 = vmatpush1.msra.mxu0 %v192
    %2969 = vmatprep.subr.mxu0 0.0
    %2970 = vmatpush1.msra.mxu0 %v193
    %2971 = vmatprep.subr.mxu0 0.0
    %2972 = vmatpush1.msra.mxu0 %v194
    %2973 = vmatprep.subr.mxu0 0.0
    %2974 = vmatpush1.msra.mxu0 %v195
    %2975 = vmatprep.subr.mxu0 0.0
    %2976 = vmatpush1.msra.mxu0 %v196
    %2977 = vmatprep.subr.mxu0 0.0
    %2978 = vmatpush1.msra.mxu0 %v197
    %2979 = vmatprep.subr.mxu0 0.0
    %2980 = vmatpush1.msra.mxu0 %v198
    %2981 = vmatprep.subr.mxu0 0.0
    %2982 = vmatpush1.msra.mxu0 %v199
    %2983 = vmatprep.subr.mxu0 0.0
    %2984 = vmatpush1.msra.mxu0 %v200
    %2985 = vmatprep.subr.mxu0 0.0
    %2986 = vmatpush1.msra.mxu0 0.0
    %2987 = vmatprep.subr.mxu0 0.0
    %2988 = vmatpush1.msra.mxu0 0.0
    %2989 = vmatprep.subr.mxu0 0.0
    %2990 = vmatpush1.msra.mxu0 0.0
    %2991 = vmatprep.subr.mxu0 0.0
    %2992 = vmatpush1.msra.mxu0 0.0
    %2993 = vmatprep.subr.mxu0 0.0
    %2994 = vmatpush1.msra.mxu0 0.0
    %2995 = vmatprep.subr.mxu0 0.0
    %2996 = vmatpush1.msra.mxu0 0.0
    %2997 = vmatprep.subr.mxu0 0.0
    %2998 = vmatpush1.msra.mxu0 0.0
    %2999 = vmatprep.subr.mxu0 0.0
    %3000 = vmatpush1.msra.mxu0 0.0
    %3001 = vmatprep.subr.mxu0 0.0
    %3002 = vmatpush1.msra.mxu0 0.0
    %3003 = vmatprep.subr.mxu0 0.0
    %3004 = vmatpush1.msra.mxu0 0.0
    %3005 = vmatprep.subr.mxu0 0.0
    %3006 = vmatpush1.msra.mxu0 0.0
    %3007 = vmatprep.subr.mxu0 0.0
    %3008 = vmatpush1.msra.mxu0 0.0
    %3009 = vmatprep.subr.mxu0 0.0
    %3010 = vmatpush1.msra.mxu0 0.0
    %3011 = vmatprep.subr.mxu0 0.0
    %3012 = vmatpush1.msra.mxu0 0.0
    %3013 = vmatprep.subr.mxu0 0.0
    %3014 = vmatpush1.msra.mxu0 0.0
    %3015 = vmatprep.subr.mxu0 0.0
    %3016 = vmatpush1.msra.mxu0 0.0
    %3017 = vmatprep.mubr.f32.mxu0 0.0
    %3018 = vmatmul.mubr.f32.gmra.mrb[0].mxu0 %v2952
    %v3019 = vpop.f32.mrb[0].mxu0
    %v3020 = vadd.f32 0.0, %v3019
    %v3021 = vpop.f32.mrb[0].mxu0
    %3022 = vdwg.mxu0
    %vm3023 = vcmp.gt.f32.partialorder %v3020, 0.0
    %v3024 = vmul.f32 %v3020, 1.442695
    %v3025 = vpow.pop %v3024
    %v3026 = vsub.f32 %v3025, 1.0
    %v3027 = vsel %vm3023, %v3020, %v3026
    %v3028 = vadd.f32 %v2876, %v3027
    %3029 = vmatprep.subr.mxu0 0.0
    %3030 = vmatpush1.msra.mxu0 %v277
    %3031 = vmatprep.subr.mxu0 0.0
    %3032 = vmatpush1.msra.mxu0 %v278
    %3033 = vmatprep.subr.mxu0 0.0
    %3034 = vmatpush1.msra.mxu0 %v279
    %3035 = vmatprep.subr.mxu0 0.0
    %3036 = vmatpush1.msra.mxu0 %v280
    %3037 = vmatprep.subr.mxu0 0.0
    %3038 = vmatpush1.msra.mxu0 %v281
    %3039 = vmatprep.subr.mxu0 0.0
    %3040 = vmatpush1.msra.mxu0 %v282
    %3041 = vmatprep.subr.mxu0 0.0
    %3042 = vmatpush1.msra.mxu0 %v283
    %3043 = vmatprep.subr.mxu0 0.0
    %3044 = vmatpush1.msra.mxu0 %v284
    %3045 = vmatprep.subr.mxu0 0.0
    %3046 = vmatpush1.msra.mxu0 %v285
    %3047 = vmatprep.subr.mxu0 0.0
    %3048 = vmatpush1.msra.mxu0 %v286
    %3049 = vmatprep.subr.mxu0 0.0
    %3050 = vmatpush1.msra.mxu0 %v287
    %3051 = vmatprep.subr.mxu0 0.0
    %3052 = vmatpush1.msra.mxu0 %v288
    %3053 = vmatprep.subr.mxu0 0.0
    %3054 = vmatpush1.msra.mxu0 %v289
    %3055 = vmatprep.subr.mxu0 0.0
    %3056 = vmatpush1.msra.mxu0 %v290
    %3057 = vmatprep.subr.mxu0 0.0
    %3058 = vmatpush1.msra.mxu0 %v291
    %3059 = vmatprep.subr.mxu0 0.0
    %3060 = vmatpush1.msra.mxu0 %v292
    %3061 = vmatprep.subr.mxu0 0.0
    %3062 = vmatpush1.msra.mxu0 0.0
    %3063 = vmatprep.subr.mxu0 0.0
    %3064 = vmatpush1.msra.mxu0 0.0
    %3065 = vmatprep.subr.mxu0 0.0
    %3066 = vmatpush1.msra.mxu0 0.0
    %3067 = vmatprep.subr.mxu0 0.0
    %3068 = vmatpush1.msra.mxu0 0.0
    %3069 = vmatprep.subr.mxu0 0.0
    %3070 = vmatpush1.msra.mxu0 0.0
    %3071 = vmatprep.subr.mxu0 0.0
    %3072 = vmatpush1.msra.mxu0 0.0
    %3073 = vmatprep.subr.mxu0 0.0
    %3074 = vmatpush1.msra.mxu0 0.0
    %3075 = vmatprep.subr.mxu0 0.0
    %3076 = vmatpush1.msra.mxu0 0.0
    %3077 = vmatprep.subr.mxu0 0.0
    %3078 = vmatpush1.msra.mxu0 0.0
    %3079 = vmatprep.subr.mxu0 0.0
    %3080 = vmatpush1.msra.mxu0 0.0
    %3081 = vmatprep.subr.mxu0 0.0
    %3082 = vmatpush1.msra.mxu0 0.0
    %3083 = vmatprep.subr.mxu0 0.0
    %3084 = vmatpush1.msra.mxu0 0.0
    %3085 = vmatprep.subr.mxu0 0.0
    %3086 = vmatpush1.msra.mxu0 0.0
    %3087 = vmatprep.subr.mxu0 0.0
    %3088 = vmatpush1.msra.mxu0 0.0
    %3089 = vmatprep.subr.mxu0 0.0
    %3090 = vmatpush1.msra.mxu0 0.0
    %3091 = vmatprep.subr.mxu0 0.0
    %3092 = vmatpush1.msra.mxu0 0.0
    %3093 = vmatprep.mubr.f32.mxu0 0.0
    %3094 = vmatmul.mubr.f32.gmra.mrb[0].mxu0 %v3027
    %v3095 = vpop.f32.mrb[0].mxu0
    %v3096 = vadd.f32 0.0, %v3095
    %v3097 = vpop.f32.mrb[0].mxu0
    %3098 = vdwg.mxu0
    %v3099 = vadd.f32 %v2947, %v3096
    %vm3100 = vcmp.gt.f32.partialorder %v3099, 0.0
    %v3101 = vmul.f32 %v3099, 1.442695
    %v3102 = vpow.pop %v3101
    %v3103 = vsub.f32 %v3102, 1.0
    %v3104 = vsel %vm3100, %v3099, %v3103
    %3105 = vmatprep.subr.mxu0 0.0
    %3106 = vmatpush1.msra.mxu0 %v185
    %3107 = vmatprep.subr.mxu0 0.0
    %3108 = vmatpush1.msra.mxu0 %v186
    %3109 = vmatprep.subr.mxu0 0.0
    %3110 = vmatpush1.msra.mxu0 %v187
    %3111 = vmatprep.subr.mxu0 0.0
    %3112 = vmatpush1.msra.mxu0 %v188
    %3113 = vmatprep.subr.mxu0 0.0
    %3114 = vmatpush1.msra.mxu0 %v189
    %3115 = vmatprep.subr.mxu0 0.0
    %3116 = vmatpush1.msra.mxu0 %v190
    %3117 = vmatprep.subr.mxu0 0.0
    %3118 = vmatpush1.msra.mxu0 %v191
    %3119 = vmatprep.subr.mxu0 0.0
    %3120 = vmatpush1.msra.mxu0 %v192
    %3121 = vmatprep.subr.mxu0 0.0
    %3122 = vmatpush1.msra.mxu0 %v193
    %3123 = vmatprep.subr.mxu0 0.0
    %3124 = vmatpush1.msra.mxu0 %v194
    %3125 = vmatprep.subr.mxu0 0.0
    %3126 = vmatpush1.msra.mxu0 %v195
    %3127 = vmatprep.subr.mxu0 0.0
    %3128 = vmatpush1.msra.mxu0 %v196
    %3129 = vmatprep.subr.mxu0 0.0
    %3130 = vmatpush1.msra.mxu0 %v197
    %3131 = vmatprep.subr.mxu0 0.0
    %3132 = vmatpush1.msra.mxu0 %v198
    %3133 = vmatprep.subr.mxu0 0.0
    %3134 = vmatpush1.msra.mxu0 %v199
    %3135 = vmatprep.subr.mxu0 0.0
    %3136 = vmatpush1.msra.mxu0 %v200
    %3137 = vmatprep.subr.mxu0 0.0
    %3138 = vmatpush1.msra.mxu0 0.0
    %3139 = vmatprep.subr.mxu0 0.0
    %3140 = vmatpush1.msra.mxu0 0.0
    %3141 = vmatprep.subr.mxu0 0.0
    %3142 = vmatpush1.msra.mxu0 0.0
    %3143 = vmatprep.subr.mxu0 0.0
    %3144 = vmatpush1.msra.mxu0 0.0
    %3145 = vmatprep.subr.mxu0 0.0
    %3146 = vmatpush1.msra.mxu0 0.0
    %3147 = vmatprep.subr.mxu0 0.0
    %3148 = vmatpush1.msra.mxu0 0.0
    %3149 = vmatprep.subr.mxu0 0.0
    %3150 = vmatpush1.msra.mxu0 0.0
    %3151 = vmatprep.subr.mxu0 0.0
    %3152 = vmatpush1.msra.mxu0 0.0
    %3153 = vmatprep.subr.mxu0 0.0
    %3154 = vmatpush1.msra.mxu0 0.0
    %3155 = vmatprep.subr.mxu0 0.0
    %3156 = vmatpush1.msra.mxu0 0.0
    %3157 = vmatprep.subr.mxu0 0.0
    %3158 = vmatpush1.msra.mxu0 0.0
    %3159 = vmatprep.subr.mxu0 0.0
    %3160 = vmatpush1.msra.mxu0 0.0
    %3161 = vmatprep.subr.mxu0 0.0
    %3162 = vmatpush1.msra.mxu0 0.0
    %3163 = vmatprep.subr.mxu0 0.0
    %3164 = vmatpush1.msra.mxu0 0.0
    %3165 = vmatprep.subr.mxu0 0.0
    %3166 = vmatpush1.msra.mxu0 0.0
    %3167 = vmatprep.subr.mxu0 0.0
    %3168 = vmatpush1.msra.mxu0 0.0
    %3169 = vmatprep.mubr.f32.mxu0 0.0
    %3170 = vmatmul.mubr.f32.gmra.mrb[0].mxu0 %v3104
    %v3171 = vpop.f32.mrb[0].mxu0
    %v3172 = vadd.f32 0.0, %v3171
    %v3173 = vpop.f32.mrb[0].mxu0
    %3174 = vdwg.mxu0
    %vm3175 = vcmp.gt.f32.partialorder %v3172, 0.0
    %v3176 = vmul.f32 %v3172, 1.442695
    %v3177 = vpow.pop %v3176
    %v3178 = vsub.f32 %v3177, 1.0
    %v3179 = vsel %vm3175, %v3172, %v3178
    %v3180 = vadd.f32 %v3028, %v3179
    %v3181 = vld [vmem:[#allocation11] sm:$0xff]
    %v3182 = vld [vmem:[#allocation11 + $0x8] sm:$0xff]
    %v3183 = vld [vmem:[#allocation11 + $0x10] sm:$0xff]
    %v3184 = vld [vmem:[#allocation11 + $0x18] sm:$0xff]
    %v3185 = vld [vmem:[#allocation11 + $0x20] sm:$0xff]
    %v3186 = vld [vmem:[#allocation11 + $0x28] sm:$0xff]
    %v3187 = vld [vmem:[#allocation11 + $0x30] sm:$0xff]
    %v3188 = vld [vmem:[#allocation11 + $0x38] sm:$0xff]
    %v3189 = vld [vmem:[#allocation11 + $0x40] sm:$0xff]
    %v3190 = vld [vmem:[#allocation11 + $0x48] sm:$0xff]
    %v3191 = vld [vmem:[#allocation11 + $0x50] sm:$0xff]
    %v3192 = vld [vmem:[#allocation11 + $0x58] sm:$0xff]
    %v3193 = vld [vmem:[#allocation11 + $0x60] sm:$0xff]
    %v3194 = vld [vmem:[#allocation11 + $0x68] sm:$0xff]
    %v3195 = vld [vmem:[#allocation11 + $0x70] sm:$0xff]
    %v3196 = vld [vmem:[#allocation11 + $0x78] sm:$0xff]
    %3197 = vmatprep.subr.mxu0 0.0
    %3198 = vmatpush1.msra.mxu0 %v3181
    %3199 = vmatprep.subr.mxu0 0.0
    %3200 = vmatpush1.msra.mxu0 %v3182
    %3201 = vmatprep.subr.mxu0 0.0
    %3202 = vmatpush1.msra.mxu0 %v3183
    %3203 = vmatprep.subr.mxu0 0.0
    %3204 = vmatpush1.msra.mxu0 %v3184
    %3205 = vmatprep.subr.mxu0 0.0
    %3206 = vmatpush1.msra.mxu0 %v3185
    %3207 = vmatprep.subr.mxu0 0.0
    %3208 = vmatpush1.msra.mxu0 %v3186
    %3209 = vmatprep.subr.mxu0 0.0
    %3210 = vmatpush1.msra.mxu0 %v3187
    %3211 = vmatprep.subr.mxu0 0.0
    %3212 = vmatpush1.msra.mxu0 %v3188
    %3213 = vmatprep.subr.mxu0 0.0
    %3214 = vmatpush1.msra.mxu0 %v3189
    %3215 = vmatprep.subr.mxu0 0.0
    %3216 = vmatpush1.msra.mxu0 %v3190
    %3217 = vmatprep.subr.mxu0 0.0
    %3218 = vmatpush1.msra.mxu0 %v3191
    %3219 = vmatprep.subr.mxu0 0.0
    %3220 = vmatpush1.msra.mxu0 %v3192
    %3221 = vmatprep.subr.mxu0 0.0
    %3222 = vmatpush1.msra.mxu0 %v3193
    %3223 = vmatprep.subr.mxu0 0.0
    %3224 = vmatpush1.msra.mxu0 %v3194
    %3225 = vmatprep.subr.mxu0 0.0
    %3226 = vmatpush1.msra.mxu0 %v3195
    %3227 = vmatprep.subr.mxu0 0.0
    %3228 = vmatpush1.msra.mxu0 %v3196
    %3229 = vmatprep.subr.mxu0 0.0
    %3230 = vmatpush1.msra.mxu0 0.0
    %3231 = vmatprep.subr.mxu0 0.0
    %3232 = vmatpush1.msra.mxu0 0.0
    %3233 = vmatprep.subr.mxu0 0.0
    %3234 = vmatpush1.msra.mxu0 0.0
    %3235 = vmatprep.subr.mxu0 0.0
    %3236 = vmatpush1.msra.mxu0 0.0
    %3237 = vmatprep.subr.mxu0 0.0
    %3238 = vmatpush1.msra.mxu0 0.0
    %3239 = vmatprep.subr.mxu0 0.0
    %3240 = vmatpush1.msra.mxu0 0.0
    %3241 = vmatprep.subr.mxu0 0.0
    %3242 = vmatpush1.msra.mxu0 0.0
    %3243 = vmatprep.subr.mxu0 0.0
    %3244 = vmatpush1.msra.mxu0 0.0
    %3245 = vmatprep.subr.mxu0 0.0
    %3246 = vmatpush1.msra.mxu0 0.0
    %3247 = vmatprep.subr.mxu0 0.0
    %3248 = vmatpush1.msra.mxu0 0.0
    %3249 = vmatprep.subr.mxu0 0.0
    %3250 = vmatpush1.msra.mxu0 0.0
    %3251 = vmatprep.subr.mxu0 0.0
    %3252 = vmatpush1.msra.mxu0 0.0
    %3253 = vmatprep.subr.mxu0 0.0
    %3254 = vmatpush1.msra.mxu0 0.0
    %3255 = vmatprep.subr.mxu0 0.0
    %3256 = vmatpush1.msra.mxu0 0.0
    %3257 = vmatprep.subr.mxu0 0.0
    %3258 = vmatpush1.msra.mxu0 0.0
    %3259 = vmatprep.subr.mxu0 0.0
    %3260 = vmatpush1.msra.mxu0 0.0
    %3261 = vmatprep.mubr.f32.mxu0 0.0
    %3262 = vmatmul.mubr.f32.gmra.mrb[0].mxu0 %v3180
    %v3263 = vpop.f32.mrb[0].mxu0
    %v3264 = vadd.f32 0.0, %v3263
    %v3265 = vpop.f32.mrb[0].mxu0
    %3266 = vdwg.mxu0
    %v3267 = vadd.f32 %v93, %v3264
    %3268 = vst [vmem:[#allocation2] sm:$0xff] %v3267
    %3269 = vst [vmem:[#allocation12] sm:$0xff] %v3267
    // Predicated region
    $region46: #{tpu_custom_call.1} parent=1 // pred_check
      _
    $region47: #{tpu_custom_call.1} parent=1 // pred_check_branch
      %3271 = sbr.rel (0) target = $region49
    $region48: #{tpu_custom_call.1} parent=1 // pred_region
      %s3273 = ssub.s32 128, 128
      %3274 = vsyncadd [#allocation5], %s3273
      %s3276 = sshll.u32 [#allocation12], 4
      %s3277 = int_to_ptr.vmem [resolvable:$true] %s3276
      %3279 = dma.vmem_to_hbm [thread:$0]  %s3277, 128, %s5, [#allocation5]
    $region49: #{tpu_custom_call.1} parent=1 // pred_fallthru
      _
    // Predicated region
    $region50: #{tpu_custom_call.1} parent=1 // pred_check
      _
    $region51: #{tpu_custom_call.1} parent=1 // pred_check_branch
      %3281 = sbr.rel (0) target = $region53
    $region52: #{tpu_custom_call.1} parent=1 // pred_region
      %3282 = dma.done [#allocation5], 128
    $region53: #{tpu_custom_call.1} parent=1 // pred_fallthru
      _
    %3283 = vsyncpa [#allocation4], 1
    %3284 = vsyncpa [#allocation7], 1
    %3285 = vsyncpa [#allocation10], 1
    %3286 = vsyncpa [#allocation5], 1

</llo_original>
